<compile_context>
chip_gen: v6e
topology: v6e:2x2x1
jax: 0.10.0
libtpu: 0.0.40
codegen_flags: <defaults>
</compile_context>

<pallas_src>
from functools import partial

import jax
import jax.numpy as jnp
from jax import lax
from jax.experimental import pallas as pl
from jax.experimental.pallas import tpu as pltpu

# ---- scaled-down hyperparameters (real model: n_embd=768, block=512, 8h/8L) ----
VOCAB_SIZE = 128          # lane-dense lm_head output (multiple of 128)
N_EMBD = 32               # C
N_HEAD = 4
HEAD_SIZE = N_EMBD // N_HEAD   # 8
FFN_DIM = 4 * N_EMBD           # 128 (lane-dense FFN hidden)
BLOCK_SIZE = 16
N_LAYER = 2
BATCH = 2
SEQ_LEN = 8               # T <= BLOCK_SIZE


def _layernorm(x, g, b, eps=1e-5):
    """LayerNorm over last axis, PyTorch semantics (biased var, eps=1e-5)."""
    mu = jnp.mean(x, axis=-1, keepdims=True)
    var = jnp.mean(jnp.square(x - mu), axis=-1, keepdims=True)
    return (x - mu) * lax.rsqrt(var + eps) * g + b


# ---------------------------------------------------------------------------
# Fused kernel: embeddings + all transformer blocks + final LN + lm_head.
# One program handles G batch elements stacked as GT = G*T rows.
# ---------------------------------------------------------------------------
def _make_kernel(T, n_head):
    def kernel(
        # inputs (VMEM)
        idx_ref,                         # (GT, 1) int32
        tok_ref, pos_ref,                # (V, C), (GT, C)
        ln1g_ref, ln1b_ref,              # (L, 1, C)
        wqkv_ref,                        # (L, C, 3C)   [Q heads | K heads | V heads]
        wprojT_ref, bproj_ref,           # (L, C, C), (L, 1, C)
        ln2g_ref, ln2b_ref,              # (L, 1, C)
        w1_ref, b1_ref,                  # (L, C, FF), (L, 1, FF)
        w2_ref, b2_ref,                  # (L, FF, C), (L, 1, C)
        lnfg_ref, lnfb_ref,              # (1, C)
        wlm_ref, blm_ref,                # (C, V), (1, V)
        # output
        logits_ref,                      # (GT, V)
        # scratch
        head_buf,                        # (GT, C) f32 VMEM
    ):
        GT, C = head_buf.shape
        V = tok_ref.shape[0]
        n_layer = ln1g_ref.shape[0]
        G = GT // T
        hs = C // n_head
        scale = C ** (-0.5)              # reference uses C**-0.5 (n_embd)

        # ------------- embeddings: one-hot MXU gather + positional add -------------
        one_hot = (idx_ref[...] ==
                   lax.broadcasted_iota(jnp.int32, (GT, V), 1)).astype(jnp.float32)
        x = jnp.dot(one_hot, tok_ref[...], preferred_element_type=jnp.float32)
        x = x + pos_ref[...]                                     # (GT, C) f32

        # additive causal mask (0 / -1e30), built once and reused everywhere
        rows = lax.broadcasted_iota(jnp.int32, (T, T), 0)
        cols = lax.broadcasted_iota(jnp.int32, (T, T), 1)
        neg_mask = jnp.where(cols <= rows, 0.0, -1e30).astype(jnp.float32)

        for l in range(n_layer):
            # ------------- multi-head causal self-attention on ln1(x) -------------
            xl = _layernorm(x, ln1g_ref[l], ln1b_ref[l])
            # fused Q/K/V projection for all heads of this layer: one MXU push
            qkv = jnp.dot(xl, wqkv_ref[l],
                          preferred_element_type=jnp.float32)    # (GT, 3C)
            for g in range(G):                                   # per batch element
                r0 = g * T
                for h in range(n_head):                          # tiny per-head core
                    c0 = h * hs
                    q = qkv[r0:r0 + T, c0:c0 + hs]               # (T, hs)
                    k = qkv[r0:r0 + T, C + c0:C + c0 + hs]
                    v = qkv[r0:r0 + T, 2 * C + c0:2 * C + c0 + hs]
                    # q @ k^T without an in-kernel transpose
                    wei = lax.dot_general(
                        q, k, (((1,), (1,)), ((), ())),
                        preferred_element_type=jnp.float32) * scale + neg_mask
                    wei = jnp.exp(wei - jnp.max(wei, axis=-1, keepdims=True))
                    denom = jnp.sum(wei, axis=-1, keepdims=True)
                    inv = pl.reciprocal(denom, approx=True)      # EUP slot
                    inv = inv * (2.0 - denom * inv)              # one Newton step
                    wei = wei * inv
                    # write head output into its lane slab (concat-for-free)
                    head_buf[r0:r0 + T, c0:c0 + hs] = jnp.dot(
                        wei, v, preferred_element_type=jnp.float32)
            # single fused output projection over all heads / all rows
            sa = jnp.dot(head_buf[...], wprojT_ref[l],
                         preferred_element_type=jnp.float32) + bproj_ref[l]
            x = x + sa                                           # dropout = identity

            # ------------------------------ feed-forward ---------------------------
            x2 = _layernorm(x, ln2g_ref[l], ln2b_ref[l])
            hdn = jnp.maximum(
                jnp.dot(x2, w1_ref[l], preferred_element_type=jnp.float32)
                + b1_ref[l], 0.0)                                # ReLU
            x = x + jnp.dot(hdn, w2_ref[l],
                            preferred_element_type=jnp.float32) + b2_ref[l]

        # ----------------------- final LayerNorm + lm_head -------------------------
        xf = _layernorm(x, lnfg_ref[...], lnfb_ref[...])
        logits_ref[...] = (jnp.dot(xf, wlm_ref[...],
                                   preferred_element_type=jnp.float32)
                           + blm_ref[...]).astype(logits_ref.dtype)

    return kernel


def _default_batch_per_program(batch):
    """v7x (2 TensorCores/chip): one batch element per core. v5e/v6e (1 TC):
    collapse the batch grid so all B*T rows feed a single program."""
    try:
        kind = jax.devices()[0].device_kind.lower()
    except Exception:
        kind = ""
    return 1 if "v7" in kind else batch


# ---------------------------------------------------------------------------
# Wrapper: all layout plumbing (transposes / stacking / tiling) hoisted here.
# ---------------------------------------------------------------------------
@partial(jax.jit, static_argnames=("batch_per_program",))
def _forward_logits(idx, params, batch_per_program):
    B, T = idx.shape
    V, C = params["tok_emb"].shape
    L, H, hs, _ = params["wq"].shape
    FF = params["w_fc1"].shape[1]
    G = batch_per_program
    assert B % G == 0
    GT = G * T

    # torch nn.Linear weights are (out, in); the kernel consumes (in, out) and
    # never transposes. Q/K/V of all heads of a layer fuse into one (C, 3C) operand.
    def to_in_out(w):                      # (L, H, hs, C) -> (L, C, H*hs)
        return jnp.transpose(w, (0, 3, 1, 2)).reshape(L, C, H * hs)

    wqkv = jnp.concatenate([to_in_out(params["wq"]),
                            to_in_out(params["wk"]),
                            to_in_out(params["wv"])], axis=-1)    # (L, C, 3C)
    wprojT = jnp.swapaxes(params["w_proj"], -1, -2)               # (L, C, C)
    bproj = params["b_proj"].reshape(L, 1, C)
    ln1g = params["ln1_g"].reshape(L, 1, C)
    ln1b = params["ln1_b"].reshape(L, 1, C)
    ln2g = params["ln2_g"].reshape(L, 1, C)
    ln2b = params["ln2_b"].reshape(L, 1, C)
    w1 = jnp.swapaxes(params["w_fc1"], -1, -2)                    # (L, C, FF)
    b1 = params["b_fc1"].reshape(L, 1, FF)
    w2 = jnp.swapaxes(params["w_fc2"], -1, -2)                    # (L, FF, C)
    b2 = params["b_fc2"].reshape(L, 1, C)
    lnfg = params["lnf_g"].reshape(1, C)
    lnfb = params["lnf_b"].reshape(1, C)
    wlm = params["w_lm"].T                                        # (C, V)
    blm = params["b_lm"].reshape(1, V)

    idx_flat = idx.reshape(B * T, 1).astype(jnp.int32)            # (B*T, 1)
    pos_full = jnp.tile(params["pos_emb"][:T], (B, 1))            # (B*T, C)

    weights = (params["tok_emb"], ln1g, ln1b, wqkv, wprojT, bproj,
               ln2g, ln2b, w1, b1, w2, b2, lnfg, lnfb, wlm, blm)

    def _full(a):
        # grid-invariant weight: whole array resident, block index always 0.
        # TODO(synk): at real sizes use pipeline_mode=pl.Buffered(1) / per-layer
        # streaming so v7x's 64 MiB VMEM is not wasted on a second buffer.
        zeros = (0,) * a.ndim
        return pl.BlockSpec(a.shape, lambda g, _z=zeros: _z)

    in_specs = (
        [pl.BlockSpec((GT, 1), lambda g: (g, 0)),          # idx_flat
         _full(params["tok_emb"]),
         pl.BlockSpec((GT, C), lambda g: (g, 0))]           # pos_full
        + [_full(a) for a in weights[1:]]
    )

    logits_flat = pl.pallas_call(
        _make_kernel(T, H),
        out_shape=jax.ShapeDtypeStruct((B * T, V), jnp.float32),
        grid_spec=pltpu.PrefetchScalarGridSpec(
            num_scalar_prefetch=0,
            grid=(B // G,),
            in_specs=in_specs,
            out_specs=pl.BlockSpec((GT, V), lambda g: (g, 0)),
            scratch_shapes=[pltpu.VMEM((GT, C), jnp.float32)],
        ),
        compiler_params=pltpu.CompilerParams(
            dimension_semantics=("parallel",)),   # v7x: one batch group per core
    )(idx_flat, params["tok_emb"], pos_full, *weights[1:])

    return logits_flat.reshape(B, T, V)


def bigram_lm_forward(idx, params, targets=None):
    """Mirrors BigramLanguageModel.forward: returns (logits, loss)."""
    logits = _forward_logits(idx, params, _default_batch_per_program(idx.shape[0]))
    loss = None
    if targets is not None:
        # Plain-JAX epilogue (F.cross_entropy, mean reduction) on kernel logits.
        V = logits.shape[-1]
        flat = logits.reshape(-1, V)
        tgt = targets.reshape(-1)
        lse = jax.nn.logsumexp(flat, axis=-1)
        loss = jnp.mean(lse - jnp.take_along_axis(flat, tgt[:, None], axis=-1)[:, 0])
    return logits, loss


# ---------------------------------------------------------------------------
# Pure-JAX reference (mirrors the PyTorch module op-for-op, torch weight layout)
# ---------------------------------------------------------------------------
def _ln_ref(x, g, b, eps=1e-5):
    mu = x.mean(axis=-1, keepdims=True)
    var = ((x - mu) ** 2).mean(axis=-1, keepdims=True)
    return (x - mu) / jnp.sqrt(var + eps) * g + b


def reference_forward(idx, params):
    B, T = idx.shape
    V, C = params["tok_emb"].shape
    L, H, hs, _ = params["wq"].shape
    x = params["tok_emb"][idx] + params["pos_emb"][:T]
    mask = jnp.tril(jnp.ones((T, T), dtype=bool))
    for l in range(L):
        xl = _ln_ref(x, params["ln1_g"][l], params["ln1_b"][l])
        heads = []
        for h in range(H):
            q = xl @ params["wq"][l, h].T
            k = xl @ params["wk"][l, h].T
            v = xl @ params["wv"][l, h].T
            wei = (q @ jnp.swapaxes(k, -1, -2)) * (C ** -0.5)
            wei = jnp.where(mask, wei, -jnp.inf)
            wei = jax.nn.softmax(wei, axis=-1)
            heads.append(wei @ v)
        sa = jnp.concatenate(heads, axis=-1) @ params["w_proj"][l].T + params["b_proj"][l]
        x = x + sa
        x2 = _ln_ref(x, params["ln2_g"][l], params["ln2_b"][l])
        ff = (jax.nn.relu(x2 @ params["w_fc1"][l].T + params["b_fc1"][l])
              @ params["w_fc2"][l].T + params["b_fc2"][l])
        x = x + ff
    x = _ln_ref(x, params["lnf_g"], params["lnf_b"])
    return x @ params["w_lm"].T + params["b_lm"]


if __name__ == "__main__":
    key = jax.random.PRNGKey(0)
    keys = iter(jax.random.split(key, 32))

    def unif(shape, fan_in):
        bound = 1.0 / (fan_in ** 0.5)
        return jax.random.uniform(next(keys), shape, jnp.float32, -bound, bound)

    L, H, hs, C, FF, V = N_LAYER, N_HEAD, HEAD_SIZE, N_EMBD, FFN_DIM, VOCAB_SIZE

    params = {
        "tok_emb": jax.random.normal(next(keys), (V, C), jnp.float32),
        "pos_emb": jax.random.normal(next(keys), (BLOCK_SIZE, C), jnp.float32),
        # torch nn.Linear layout: weight is (out_features, in_features)
        "wq": unif((L, H, hs, C), C),
        "wk": unif((L, H, hs, C), C),
        "wv": unif((L, H, hs, C), C),
        "w_proj": unif((L, C, C), C),
        "b_proj": unif((L, C), C),
        "ln1_g": 1.0 + 0.1 * jax.random.normal(next(keys), (L, C), jnp.float32),
        "ln1_b": 0.1 * jax.random.normal(next(keys), (L, C), jnp.float32),
        "ln2_g": 1.0 + 0.1 * jax.random.normal(next(keys), (L, C), jnp.float32),
        "ln2_b": 0.1 * jax.random.normal(next(keys), (L, C), jnp.float32),
        "w_fc1": unif((L, FF, C), C),
        "b_fc1": unif((L, FF), C),
        "w_fc2": unif((L, C, FF), FF),
        "b_fc2": unif((L, C), FF),
        "lnf_g": 1.0 + 0.1 * jax.random.normal(next(keys), (C,), jnp.float32),
        "lnf_b": 0.1 * jax.random.normal(next(keys), (C,), jnp.float32),
        "w_lm": unif((V, C), C),
        "b_lm": unif((V,), C),
    }

    idx = jax.random.randint(next(keys), (BATCH, SEQ_LEN), 0, V, dtype=jnp.int32)

    logits, loss = bigram_lm_forward(idx, params)
    logits = jax.block_until_ready(logits)

    ref = reference_forward(idx, params)
    assert logits.shape == (BATCH, SEQ_LEN, V)
    assert jnp.allclose(logits, ref, atol=1e-2, rtol=1e-2), (
        f"mismatch vs reference, max abs err={jnp.max(jnp.abs(logits - ref))}")
    print("KERNEL_OK")
</pallas_src>

<mosaic_0001>
module attributes {stable_mosaic.version = 11 : i64} {
  func.func @kernel(%arg0: i32, %arg1: memref<16x1xi32, #tpu.memory_space<vmem>>, %arg2: memref<128x32xf32, #tpu.memory_space<vmem>>, %arg3: memref<16x32xf32, #tpu.memory_space<vmem>>, %arg4: memref<2x1x32xf32, #tpu.memory_space<vmem>>, %arg5: memref<2x1x32xf32, #tpu.memory_space<vmem>>, %arg6: memref<2x32x96xf32, #tpu.memory_space<vmem>>, %arg7: memref<2x32x32xf32, #tpu.memory_space<vmem>>, %arg8: memref<2x1x32xf32, #tpu.memory_space<vmem>>, %arg9: memref<2x1x32xf32, #tpu.memory_space<vmem>>, %arg10: memref<2x1x32xf32, #tpu.memory_space<vmem>>, %arg11: memref<2x32x128xf32, #tpu.memory_space<vmem>>, %arg12: memref<2x1x128xf32, #tpu.memory_space<vmem>>, %arg13: memref<2x128x32xf32, #tpu.memory_space<vmem>>, %arg14: memref<2x1x32xf32, #tpu.memory_space<vmem>>, %arg15: memref<1x32xf32, #tpu.memory_space<vmem>>, %arg16: memref<1x32xf32, #tpu.memory_space<vmem>>, %arg17: memref<32x128xf32, #tpu.memory_space<vmem>>, %arg18: memref<1x128xf32, #tpu.memory_space<vmem>>, %arg19: memref<16x128xf32, #tpu.memory_space<vmem>>, %arg20: memref<16x32xf32, #tpu.memory_space<vmem>>) attributes {dimension_semantics = [#tpu.dimension_semantics<parallel>], iteration_bounds = array<i64: 1>, scalar_prefetch = 0 : i64, scratch_operands = 1 : i64, tpu.core_type = #tpu.core_type<tc>, window_params = [{transform_indices = @transform_0, window_bounds = array<i64: 16, 1>}, {pipeline_mode = #tpu.pipeline_mode<synchronous>, transform_indices = @transform_1, window_bounds = array<i64: 128, 32>}, {transform_indices = @transform_2, window_bounds = array<i64: 16, 32>}, {pipeline_mode = #tpu.pipeline_mode<synchronous>, transform_indices = @transform_3, window_bounds = array<i64: 2, 1, 32>}, {pipeline_mode = #tpu.pipeline_mode<synchronous>, transform_indices = @transform_4, window_bounds = array<i64: 2, 1, 32>}, {pipeline_mode = #tpu.pipeline_mode<synchronous>, transform_indices = @transform_5, window_bounds = array<i64: 2, 32, 96>}, {pipeline_mode = #tpu.pipeline_mode<synchronous>, transform_indices = @transform_6, window_bounds = array<i64: 2, 32, 32>}, {pipeline_mode = #tpu.pipeline_mode<synchronous>, transform_indices = @transform_7, window_bounds = array<i64: 2, 1, 32>}, {pipeline_mode = #tpu.pipeline_mode<synchronous>, transform_indices = @transform_8, window_bounds = array<i64: 2, 1, 32>}, {pipeline_mode = #tpu.pipeline_mode<synchronous>, transform_indices = @transform_9, window_bounds = array<i64: 2, 1, 32>}, {pipeline_mode = #tpu.pipeline_mode<synchronous>, transform_indices = @transform_10, window_bounds = array<i64: 2, 32, 128>}, {pipeline_mode = #tpu.pipeline_mode<synchronous>, transform_indices = @transform_11, window_bounds = array<i64: 2, 1, 128>}, {pipeline_mode = #tpu.pipeline_mode<synchronous>, transform_indices = @transform_12, window_bounds = array<i64: 2, 128, 32>}, {pipeline_mode = #tpu.pipeline_mode<synchronous>, transform_indices = @transform_13, window_bounds = array<i64: 2, 1, 32>}, {pipeline_mode = #tpu.pipeline_mode<synchronous>, transform_indices = @transform_14, window_bounds = array<i64: 1, 32>}, {pipeline_mode = #tpu.pipeline_mode<synchronous>, transform_indices = @transform_15, window_bounds = array<i64: 1, 32>}, {pipeline_mode = #tpu.pipeline_mode<synchronous>, transform_indices = @transform_16, window_bounds = array<i64: 32, 128>}, {pipeline_mode = #tpu.pipeline_mode<synchronous>, transform_indices = @transform_17, window_bounds = array<i64: 1, 128>}, {transform_indices = @transform_18, window_bounds = array<i64: 16, 128>}]} {
    %c0 = arith.constant 0 : index
    %c0_0 = arith.constant 0 : index
    %0 = vector.load %arg1[%c0, %c0_0] : memref<16x1xi32, #tpu.memory_space<vmem>>, vector<16x1xi32>
    %1 = tpu.iota {dimensions = array<i32: 1>} : vector<16x128xi32>
    %2 = vector.broadcast %0 : vector<16x1xi32> to vector<16x128xi32>
    %3 = arith.cmpi eq, %2, %1 : vector<16x128xi32>
    %4 = arith.extui %3 : vector<16x128xi1> to vector<16x128xi32>
    %5 = arith.sitofp %4 : vector<16x128xi32> to vector<16x128xf32>
    %c0_1 = arith.constant 0 : index
    %c0_2 = arith.constant 0 : index
    %6 = vector.load %arg2[%c0_1, %c0_2] : memref<128x32xf32, #tpu.memory_space<vmem>>, vector<128x32xf32>
    %cst = arith.constant dense<0.000000e+00> : vector<16x32xf32>
    %7 = tpu.matmul %5, %6, %cst {dimension_numbers = #tpu.dot_dimension_numbers<[1], [0], [0], [1], [0, 0, 1, 1], [], []>} : vector<16x128xf32>, vector<128x32xf32>, vector<16x32xf32> -> vector<16x32xf32>
    %c0_3 = arith.constant 0 : index
    %c0_4 = arith.constant 0 : index
    %8 = vector.load %arg3[%c0_3, %c0_4] : memref<16x32xf32, #tpu.memory_space<vmem>>, vector<16x32xf32>
    %9 = arith.addf %7, %8 : vector<16x32xf32>
    %10 = tpu.iota {dimensions = array<i32: 0>} : vector<8x8xi32>
    %11 = tpu.iota {dimensions = array<i32: 1>} : vector<8x8xi32>
    %12 = arith.cmpi sle, %11, %10 : vector<8x8xi32>
    %cst_5 = arith.constant 0.000000e+00 : f32
    %cst_6 = arith.constant -1.000000e+30 : f32
    %13 = vector.broadcast %cst_5 : f32 to vector<8x8xf32>
    %14 = vector.broadcast %cst_6 : f32 to vector<8x8xf32>
    %15 = arith.select %12, %13, %14 : vector<8x8xi1>, vector<8x8xf32>
    %c0_7 = arith.constant 0 : index
    %c0_8 = arith.constant 0 : index
    %c0_9 = arith.constant 0 : index
    %16 = vector.load %arg4[%c0_7, %c0_8, %c0_9] : memref<2x1x32xf32, #tpu.memory_space<vmem>>, vector<1x1x32xf32>
    %17 = vector.shape_cast %16 : vector<1x1x32xf32> to vector<1x32xf32>
    %c0_10 = arith.constant 0 : index
    %c0_11 = arith.constant 0 : index
    %c0_12 = arith.constant 0 : index
    %18 = vector.load %arg5[%c0_10, %c0_11, %c0_12] : memref<2x1x32xf32, #tpu.memory_space<vmem>>, vector<1x1x32xf32>
    %19 = vector.shape_cast %18 : vector<1x1x32xf32> to vector<1x32xf32>
    %cst_13 = arith.constant dense<0.000000e+00> : vector<16xf32>
    %20 = vector.multi_reduction <add>, %9, %cst_13 [1] : vector<16x32xf32> to vector<16xf32>
    %21 = vector.shape_cast %20 : vector<16xf32> to vector<16x1xf32>
    %cst_14 = arith.constant 3.200000e+01 : f32
    %22 = vector.broadcast %cst_14 : f32 to vector<16x1xf32>
    %23 = arith.divf %21, %22 : vector<16x1xf32>
    %24 = vector.broadcast %23 : vector<16x1xf32> to vector<16x32xf32>
    %25 = arith.subf %9, %24 : vector<16x32xf32>
    %26 = arith.mulf %25, %25 : vector<16x32xf32>
    %cst_15 = arith.constant dense<0.000000e+00> : vector<16xf32>
    %27 = vector.multi_reduction <add>, %26, %cst_15 [1] : vector<16x32xf32> to vector<16xf32>
    %28 = vector.shape_cast %27 : vector<16xf32> to vector<16x1xf32>
    %cst_16 = arith.constant 3.200000e+01 : f32
    %29 = vector.broadcast %cst_16 : f32 to vector<16x1xf32>
    %30 = arith.divf %28, %29 : vector<16x1xf32>
    %31 = vector.broadcast %23 : vector<16x1xf32> to vector<16x32xf32>
    %32 = arith.subf %9, %31 : vector<16x32xf32>
    %cst_17 = arith.constant 9.99999974E-6 : f32
    %33 = vector.broadcast %cst_17 : f32 to vector<16x1xf32>
    %34 = arith.addf %30, %33 : vector<16x1xf32>
    %35 = math.rsqrt %34 : vector<16x1xf32>
    %36 = vector.broadcast %35 : vector<16x1xf32> to vector<16x32xf32>
    %37 = arith.mulf %32, %36 : vector<16x32xf32>
    %38 = vector.broadcast %17 : vector<1x32xf32> to vector<16x32xf32>
    %39 = arith.mulf %37, %38 : vector<16x32xf32>
    %40 = vector.broadcast %19 : vector<1x32xf32> to vector<16x32xf32>
    %41 = arith.addf %39, %40 : vector<16x32xf32>
    %c0_18 = arith.constant 0 : index
    %c0_19 = arith.constant 0 : index
    %c0_20 = arith.constant 0 : index
    %42 = vector.load %arg6[%c0_18, %c0_19, %c0_20] : memref<2x32x96xf32, #tpu.memory_space<vmem>>, vector<1x32x96xf32>
    %43 = vector.shape_cast %42 : vector<1x32x96xf32> to vector<32x96xf32>
    %cst_21 = arith.constant dense<0.000000e+00> : vector<16x96xf32>
    %44 = tpu.matmul %41, %43, %cst_21 {dimension_numbers = #tpu.dot_dimension_numbers<[1], [0], [0], [1], [0, 0, 1, 1], [], []>} : vector<16x32xf32>, vector<32x96xf32>, vector<16x96xf32> -> vector<16x96xf32>
    %45 = vector.extract_strided_slice %44 {offsets = [0, 0], sizes = [8, 8], strides = [1, 1]} : vector<16x96xf32> to vector<8x8xf32>
    %46 = vector.extract_strided_slice %44 {offsets = [0, 32], sizes = [8, 8], strides = [1, 1]} : vector<16x96xf32> to vector<8x8xf32>
    %47 = vector.extract_strided_slice %44 {offsets = [0, 64], sizes = [8, 8], strides = [1, 1]} : vector<16x96xf32> to vector<8x8xf32>
    %cst_22 = arith.constant dense<0.000000e+00> : vector<8x8xf32>
    %48 = tpu.matmul %45, %46, %cst_22 {dimension_numbers = #tpu.dot_dimension_numbers<[1], [1], [0], [0], [0, 0, 1, 0], [], []>} : vector<8x8xf32>, vector<8x8xf32>, vector<8x8xf32> -> vector<8x8xf32>
    %cst_23 = arith.constant 0.176776692 : f32
    %49 = vector.broadcast %cst_23 : f32 to vector<8x8xf32>
    %50 = arith.mulf %48, %49 : vector<8x8xf32>
    %51 = arith.addf %50, %15 : vector<8x8xf32>
    %cst_24 = arith.constant dense<0xFF800000> : vector<8xf32>
    %52 = vector.multi_reduction <maximumf>, %51, %cst_24 [1] : vector<8x8xf32> to vector<8xf32>
    %53 = vector.shape_cast %52 : vector<8xf32> to vector<8x1xf32>
    %54 = vector.broadcast %53 : vector<8x1xf32> to vector<8x8xf32>
    %55 = arith.subf %51, %54 : vector<8x8xf32>
    %56 = math.exp %55 : vector<8x8xf32>
    %cst_25 = arith.constant dense<0.000000e+00> : vector<8xf32>
    %57 = vector.multi_reduction <add>, %56, %cst_25 [1] : vector<8x8xf32> to vector<8xf32>
    %58 = vector.shape_cast %57 : vector<8xf32> to vector<8x1xf32>
    %59 = tpu.reciprocal %58 {approx = true} : vector<8x1xf32> -> vector<8x1xf32>
    %60 = arith.mulf %58, %59 : vector<8x1xf32>
    %cst_26 = arith.constant 2.000000e+00 : f32
    %61 = vector.broadcast %cst_26 : f32 to vector<8x1xf32>
    %62 = arith.subf %61, %60 : vector<8x1xf32>
    %63 = arith.mulf %59, %62 : vector<8x1xf32>
    %64 = vector.broadcast %63 : vector<8x1xf32> to vector<8x8xf32>
    %65 = arith.mulf %56, %64 : vector<8x8xf32>
    %cst_27 = arith.constant dense<0.000000e+00> : vector<8x8xf32>
    %66 = tpu.matmul %65, %47, %cst_27 {dimension_numbers = #tpu.dot_dimension_numbers<[1], [0], [0], [1], [0, 0, 1, 1], [], []>} : vector<8x8xf32>, vector<8x8xf32>, vector<8x8xf32> -> vector<8x8xf32>
    %c0_28 = arith.constant 0 : index
    %c0_29 = arith.constant 0 : index
    %67 = vector.load %arg20[%c0_28, %c0_29] : memref<16x32xf32, #tpu.memory_space<vmem>>, vector<8x8xf32>
    tpu.vector_store %arg20[%c0_28, %c0_29], %66 {strides = array<i32>} : memref<16x32xf32, #tpu.memory_space<vmem>>, vector<8x8xf32>,
    %68 = vector.extract_strided_slice %44 {offsets = [0, 8], sizes = [8, 8], strides = [1, 1]} : vector<16x96xf32> to vector<8x8xf32>
    %69 = vector.extract_strided_slice %44 {offsets = [0, 40], sizes = [8, 8], strides = [1, 1]} : vector<16x96xf32> to vector<8x8xf32>
    %70 = vector.extract_strided_slice %44 {offsets = [0, 72], sizes = [8, 8], strides = [1, 1]} : vector<16x96xf32> to vector<8x8xf32>
    %cst_30 = arith.constant dense<0.000000e+00> : vector<8x8xf32>
    %71 = tpu.matmul %68, %69, %cst_30 {dimension_numbers = #tpu.dot_dimension_numbers<[1], [1], [0], [0], [0, 0, 1, 0], [], []>} : vector<8x8xf32>, vector<8x8xf32>, vector<8x8xf32> -> vector<8x8xf32>
    %cst_31 = arith.constant 0.176776692 : f32
    %72 = vector.broadcast %cst_31 : f32 to vector<8x8xf32>
    %73 = arith.mulf %71, %72 : vector<8x8xf32>
    %74 = arith.addf %73, %15 : vector<8x8xf32>
    %cst_32 = arith.constant dense<0xFF800000> : vector<8xf32>
    %75 = vector.multi_reduction <maximumf>, %74, %cst_32 [1] : vector<8x8xf32> to vector<8xf32>
    %76 = vector.shape_cast %75 : vector<8xf32> to vector<8x1xf32>
    %77 = vector.broadcast %76 : vector<8x1xf32> to vector<8x8xf32>
    %78 = arith.subf %74, %77 : vector<8x8xf32>
    %79 = math.exp %78 : vector<8x8xf32>
    %cst_33 = arith.constant dense<0.000000e+00> : vector<8xf32>
    %80 = vector.multi_reduction <add>, %79, %cst_33 [1] : vector<8x8xf32> to vector<8xf32>
    %81 = vector.shape_cast %80 : vector<8xf32> to vector<8x1xf32>
    %82 = tpu.reciprocal %81 {approx = true} : vector<8x1xf32> -> vector<8x1xf32>
    %83 = arith.mulf %81, %82 : vector<8x1xf32>
    %cst_34 = arith.constant 2.000000e+00 : f32
    %84 = vector.broadcast %cst_34 : f32 to vector<8x1xf32>
    %85 = arith.subf %84, %83 : vector<8x1xf32>
    %86 = arith.mulf %82, %85 : vector<8x1xf32>
    %87 = vector.broadcast %86 : vector<8x1xf32> to vector<8x8xf32>
    %88 = arith.mulf %79, %87 : vector<8x8xf32>
    %cst_35 = arith.constant dense<0.000000e+00> : vector<8x8xf32>
    %89 = tpu.matmul %88, %70, %cst_35 {dimension_numbers = #tpu.dot_dimension_numbers<[1], [0], [0], [1], [0, 0, 1, 1], [], []>} : vector<8x8xf32>, vector<8x8xf32>, vector<8x8xf32> -> vector<8x8xf32>
    %c0_36 = arith.constant 0 : index
    %c8 = arith.constant 8 : index
    %90 = vector.load %arg20[%c0_36, %c8] : memref<16x32xf32, #tpu.memory_space<vmem>>, vector<8x8xf32>
    tpu.vector_store %arg20[%c0_36, %c8], %89 {strides = array<i32>} : memref<16x32xf32, #tpu.memory_space<vmem>>, vector<8x8xf32>,
    %91 = vector.extract_strided_slice %44 {offsets = [0, 16], sizes = [8, 8], strides = [1, 1]} : vector<16x96xf32> to vector<8x8xf32>
    %92 = vector.extract_strided_slice %44 {offsets = [0, 48], sizes = [8, 8], strides = [1, 1]} : vector<16x96xf32> to vector<8x8xf32>
    %93 = vector.extract_strided_slice %44 {offsets = [0, 80], sizes = [8, 8], strides = [1, 1]} : vector<16x96xf32> to vector<8x8xf32>
    %cst_37 = arith.constant dense<0.000000e+00> : vector<8x8xf32>
    %94 = tpu.matmul %91, %92, %cst_37 {dimension_numbers = #tpu.dot_dimension_numbers<[1], [1], [0], [0], [0, 0, 1, 0], [], []>} : vector<8x8xf32>, vector<8x8xf32>, vector<8x8xf32> -> vector<8x8xf32>
    %cst_38 = arith.constant 0.176776692 : f32
    %95 = vector.broadcast %cst_38 : f32 to vector<8x8xf32>
    %96 = arith.mulf %94, %95 : vector<8x8xf32>
    %97 = arith.addf %96, %15 : vector<8x8xf32>
    %cst_39 = arith.constant dense<0xFF800000> : vector<8xf32>
    %98 = vector.multi_reduction <maximumf>, %97, %cst_39 [1] : vector<8x8xf32> to vector<8xf32>
    %99 = vector.shape_cast %98 : vector<8xf32> to vector<8x1xf32>
    %100 = vector.broadcast %99 : vector<8x1xf32> to vector<8x8xf32>
    %101 = arith.subf %97, %100 : vector<8x8xf32>
    %102 = math.exp %101 : vector<8x8xf32>
    %cst_40 = arith.constant dense<0.000000e+00> : vector<8xf32>
    %103 = vector.multi_reduction <add>, %102, %cst_40 [1] : vector<8x8xf32> to vector<8xf32>
    %104 = vector.shape_cast %103 : vector<8xf32> to vector<8x1xf32>
    %105 = tpu.reciprocal %104 {approx = true} : vector<8x1xf32> -> vector<8x1xf32>
    %106 = arith.mulf %104, %105 : vector<8x1xf32>
    %cst_41 = arith.constant 2.000000e+00 : f32
    %107 = vector.broadcast %cst_41 : f32 to vector<8x1xf32>
    %108 = arith.subf %107, %106 : vector<8x1xf32>
    %109 = arith.mulf %105, %108 : vector<8x1xf32>
    %110 = vector.broadcast %109 : vector<8x1xf32> to vector<8x8xf32>
    %111 = arith.mulf %102, %110 : vector<8x8xf32>
    %cst_42 = arith.constant dense<0.000000e+00> : vector<8x8xf32>
    %112 = tpu.matmul %111, %93, %cst_42 {dimension_numbers = #tpu.dot_dimension_numbers<[1], [0], [0], [1], [0, 0, 1, 1], [], []>} : vector<8x8xf32>, vector<8x8xf32>, vector<8x8xf32> -> vector<8x8xf32>
    %c0_43 = arith.constant 0 : index
    %c16 = arith.constant 16 : index
    %113 = vector.load %arg20[%c0_43, %c16] : memref<16x32xf32, #tpu.memory_space<vmem>>, vector<8x8xf32>
    tpu.vector_store %arg20[%c0_43, %c16], %112 {strides = array<i32>} : memref<16x32xf32, #tpu.memory_space<vmem>>, vector<8x8xf32>,
    %114 = vector.extract_strided_slice %44 {offsets = [0, 24], sizes = [8, 8], strides = [1, 1]} : vector<16x96xf32> to vector<8x8xf32>
    %115 = vector.extract_strided_slice %44 {offsets = [0, 56], sizes = [8, 8], strides = [1, 1]} : vector<16x96xf32> to vector<8x8xf32>
    %116 = vector.extract_strided_slice %44 {offsets = [0, 88], sizes = [8, 8], strides = [1, 1]} : vector<16x96xf32> to vector<8x8xf32>
    %cst_44 = arith.constant dense<0.000000e+00> : vector<8x8xf32>
    %117 = tpu.matmul %114, %115, %cst_44 {dimension_numbers = #tpu.dot_dimension_numbers<[1], [1], [0], [0], [0, 0, 1, 0], [], []>} : vector<8x8xf32>, vector<8x8xf32>, vector<8x8xf32> -> vector<8x8xf32>
    %cst_45 = arith.constant 0.176776692 : f32
    %118 = vector.broadcast %cst_45 : f32 to vector<8x8xf32>
    %119 = arith.mulf %117, %118 : vector<8x8xf32>
    %120 = arith.addf %119, %15 : vector<8x8xf32>
    %cst_46 = arith.constant dense<0xFF800000> : vector<8xf32>
    %121 = vector.multi_reduction <maximumf>, %120, %cst_46 [1] : vector<8x8xf32> to vector<8xf32>
    %122 = vector.shape_cast %121 : vector<8xf32> to vector<8x1xf32>
    %123 = vector.broadcast %122 : vector<8x1xf32> to vector<8x8xf32>
    %124 = arith.subf %120, %123 : vector<8x8xf32>
    %125 = math.exp %124 : vector<8x8xf32>
    %cst_47 = arith.constant dense<0.000000e+00> : vector<8xf32>
    %126 = vector.multi_reduction <add>, %125, %cst_47 [1] : vector<8x8xf32> to vector<8xf32>
    %127 = vector.shape_cast %126 : vector<8xf32> to vector<8x1xf32>
    %128 = tpu.reciprocal %127 {approx = true} : vector<8x1xf32> -> vector<8x1xf32>
    %129 = arith.mulf %127, %128 : vector<8x1xf32>
    %cst_48 = arith.constant 2.000000e+00 : f32
    %130 = vector.broadcast %cst_48 : f32 to vector<8x1xf32>
    %131 = arith.subf %130, %129 : vector<8x1xf32>
    %132 = arith.mulf %128, %131 : vector<8x1xf32>
    %133 = vector.broadcast %132 : vector<8x1xf32> to vector<8x8xf32>
    %134 = arith.mulf %125, %133 : vector<8x8xf32>
    %cst_49 = arith.constant dense<0.000000e+00> : vector<8x8xf32>
    %135 = tpu.matmul %134, %116, %cst_49 {dimension_numbers = #tpu.dot_dimension_numbers<[1], [0], [0], [1], [0, 0, 1, 1], [], []>} : vector<8x8xf32>, vector<8x8xf32>, vector<8x8xf32> -> vector<8x8xf32>
    %c0_50 = arith.constant 0 : index
    %c24 = arith.constant 24 : index
    %136 = vector.load %arg20[%c0_50, %c24] : memref<16x32xf32, #tpu.memory_space<vmem>>, vector<8x8xf32>
    tpu.vector_store %arg20[%c0_50, %c24], %135 {strides = array<i32>} : memref<16x32xf32, #tpu.memory_space<vmem>>, vector<8x8xf32>,
    %137 = vector.extract_strided_slice %44 {offsets = [8, 0], sizes = [8, 8], strides = [1, 1]} : vector<16x96xf32> to vector<8x8xf32>
    %138 = vector.extract_strided_slice %44 {offsets = [8, 32], sizes = [8, 8], strides = [1, 1]} : vector<16x96xf32> to vector<8x8xf32>
    %139 = vector.extract_strided_slice %44 {offsets = [8, 64], sizes = [8, 8], strides = [1, 1]} : vector<16x96xf32> to vector<8x8xf32>
    %cst_51 = arith.constant dense<0.000000e+00> : vector<8x8xf32>
    %140 = tpu.matmul %137, %138, %cst_51 {dimension_numbers = #tpu.dot_dimension_numbers<[1], [1], [0], [0], [0, 0, 1, 0], [], []>} : vector<8x8xf32>, vector<8x8xf32>, vector<8x8xf32> -> vector<8x8xf32>
    %cst_52 = arith.constant 0.176776692 : f32
    %141 = vector.broadcast %cst_52 : f32 to vector<8x8xf32>
    %142 = arith.mulf %140, %141 : vector<8x8xf32>
    %143 = arith.addf %142, %15 : vector<8x8xf32>
    %cst_53 = arith.constant dense<0xFF800000> : vector<8xf32>
    %144 = vector.multi_reduction <maximumf>, %143, %cst_53 [1] : vector<8x8xf32> to vector<8xf32>
    %145 = vector.shape_cast %144 : vector<8xf32> to vector<8x1xf32>
    %146 = vector.broadcast %145 : vector<8x1xf32> to vector<8x8xf32>
    %147 = arith.subf %143, %146 : vector<8x8xf32>
    %148 = math.exp %147 : vector<8x8xf32>
    %cst_54 = arith.constant dense<0.000000e+00> : vector<8xf32>
    %149 = vector.multi_reduction <add>, %148, %cst_54 [1] : vector<8x8xf32> to vector<8xf32>
    %150 = vector.shape_cast %149 : vector<8xf32> to vector<8x1xf32>
    %151 = tpu.reciprocal %150 {approx = true} : vector<8x1xf32> -> vector<8x1xf32>
    %152 = arith.mulf %150, %151 : vector<8x1xf32>
    %cst_55 = arith.constant 2.000000e+00 : f32
    %153 = vector.broadcast %cst_55 : f32 to vector<8x1xf32>
    %154 = arith.subf %153, %152 : vector<8x1xf32>
    %155 = arith.mulf %151, %154 : vector<8x1xf32>
    %156 = vector.broadcast %155 : vector<8x1xf32> to vector<8x8xf32>
    %157 = arith.mulf %148, %156 : vector<8x8xf32>
    %cst_56 = arith.constant dense<0.000000e+00> : vector<8x8xf32>
    %158 = tpu.matmul %157, %139, %cst_56 {dimension_numbers = #tpu.dot_dimension_numbers<[1], [0], [0], [1], [0, 0, 1, 1], [], []>} : vector<8x8xf32>, vector<8x8xf32>, vector<8x8xf32> -> vector<8x8xf32>
    %c8_57 = arith.constant 8 : index
    %c0_58 = arith.constant 0 : index
    %159 = vector.load %arg20[%c8_57, %c0_58] : memref<16x32xf32, #tpu.memory_space<vmem>>, vector<8x8xf32>
    tpu.vector_store %arg20[%c8_57, %c0_58], %158 {strides = array<i32>} : memref<16x32xf32, #tpu.memory_space<vmem>>, vector<8x8xf32>,
    %160 = vector.extract_strided_slice %44 {offsets = [8, 8], sizes = [8, 8], strides = [1, 1]} : vector<16x96xf32> to vector<8x8xf32>
    %161 = vector.extract_strided_slice %44 {offsets = [8, 40], sizes = [8, 8], strides = [1, 1]} : vector<16x96xf32> to vector<8x8xf32>
    %162 = vector.extract_strided_slice %44 {offsets = [8, 72], sizes = [8, 8], strides = [1, 1]} : vector<16x96xf32> to vector<8x8xf32>
    %cst_59 = arith.constant dense<0.000000e+00> : vector<8x8xf32>
    %163 = tpu.matmul %160, %161, %cst_59 {dimension_numbers = #tpu.dot_dimension_numbers<[1], [1], [0], [0], [0, 0, 1, 0], [], []>} : vector<8x8xf32>, vector<8x8xf32>, vector<8x8xf32> -> vector<8x8xf32>
    %cst_60 = arith.constant 0.176776692 : f32
    %164 = vector.broadcast %cst_60 : f32 to vector<8x8xf32>
    %165 = arith.mulf %163, %164 : vector<8x8xf32>
    %166 = arith.addf %165, %15 : vector<8x8xf32>
    %cst_61 = arith.constant dense<0xFF800000> : vector<8xf32>
    %167 = vector.multi_reduction <maximumf>, %166, %cst_61 [1] : vector<8x8xf32> to vector<8xf32>
    %168 = vector.shape_cast %167 : vector<8xf32> to vector<8x1xf32>
    %169 = vector.broadcast %168 : vector<8x1xf32> to vector<8x8xf32>
    %170 = arith.subf %166, %169 : vector<8x8xf32>
    %171 = math.exp %170 : vector<8x8xf32>
    %cst_62 = arith.constant dense<0.000000e+00> : vector<8xf32>
    %172 = vector.multi_reduction <add>, %171, %cst_62 [1] : vector<8x8xf32> to vector<8xf32>
    %173 = vector.shape_cast %172 : vector<8xf32> to vector<8x1xf32>
    %174 = tpu.reciprocal %173 {approx = true} : vector<8x1xf32> -> vector<8x1xf32>
    %175 = arith.mulf %173, %174 : vector<8x1xf32>
    %cst_63 = arith.constant 2.000000e+00 : f32
    %176 = vector.broadcast %cst_63 : f32 to vector<8x1xf32>
    %177 = arith.subf %176, %175 : vector<8x1xf32>
    %178 = arith.mulf %174, %177 : vector<8x1xf32>
    %179 = vector.broadcast %178 : vector<8x1xf32> to vector<8x8xf32>
    %180 = arith.mulf %171, %179 : vector<8x8xf32>
    %cst_64 = arith.constant dense<0.000000e+00> : vector<8x8xf32>
    %181 = tpu.matmul %180, %162, %cst_64 {dimension_numbers = #tpu.dot_dimension_numbers<[1], [0], [0], [1], [0, 0, 1, 1], [], []>} : vector<8x8xf32>, vector<8x8xf32>, vector<8x8xf32> -> vector<8x8xf32>
    %c8_65 = arith.constant 8 : index
    %c8_66 = arith.constant 8 : index
    %182 = vector.load %arg20[%c8_65, %c8_66] : memref<16x32xf32, #tpu.memory_space<vmem>>, vector<8x8xf32>
    tpu.vector_store %arg20[%c8_65, %c8_66], %181 {strides = array<i32>} : memref<16x32xf32, #tpu.memory_space<vmem>>, vector<8x8xf32>,
    %183 = vector.extract_strided_slice %44 {offsets = [8, 16], sizes = [8, 8], strides = [1, 1]} : vector<16x96xf32> to vector<8x8xf32>
    %184 = vector.extract_strided_slice %44 {offsets = [8, 48], sizes = [8, 8], strides = [1, 1]} : vector<16x96xf32> to vector<8x8xf32>
    %185 = vector.extract_strided_slice %44 {offsets = [8, 80], sizes = [8, 8], strides = [1, 1]} : vector<16x96xf32> to vector<8x8xf32>
    %cst_67 = arith.constant dense<0.000000e+00> : vector<8x8xf32>
    %186 = tpu.matmul %183, %184, %cst_67 {dimension_numbers = #tpu.dot_dimension_numbers<[1], [1], [0], [0], [0, 0, 1, 0], [], []>} : vector<8x8xf32>, vector<8x8xf32>, vector<8x8xf32> -> vector<8x8xf32>
    %cst_68 = arith.constant 0.176776692 : f32
    %187 = vector.broadcast %cst_68 : f32 to vector<8x8xf32>
    %188 = arith.mulf %186, %187 : vector<8x8xf32>
    %189 = arith.addf %188, %15 : vector<8x8xf32>
    %cst_69 = arith.constant dense<0xFF800000> : vector<8xf32>
    %190 = vector.multi_reduction <maximumf>, %189, %cst_69 [1] : vector<8x8xf32> to vector<8xf32>
    %191 = vector.shape_cast %190 : vector<8xf32> to vector<8x1xf32>
    %192 = vector.broadcast %191 : vector<8x1xf32> to vector<8x8xf32>
    %193 = arith.subf %189, %192 : vector<8x8xf32>
    %194 = math.exp %193 : vector<8x8xf32>
    %cst_70 = arith.constant dense<0.000000e+00> : vector<8xf32>
    %195 = vector.multi_reduction <add>, %194, %cst_70 [1] : vector<8x8xf32> to vector<8xf32>
    %196 = vector.shape_cast %195 : vector<8xf32> to vector<8x1xf32>
    %197 = tpu.reciprocal %196 {approx = true} : vector<8x1xf32> -> vector<8x1xf32>
    %198 = arith.mulf %196, %197 : vector<8x1xf32>
    %cst_71 = arith.constant 2.000000e+00 : f32
    %199 = vector.broadcast %cst_71 : f32 to vector<8x1xf32>
    %200 = arith.subf %199, %198 : vector<8x1xf32>
    %201 = arith.mulf %197, %200 : vector<8x1xf32>
    %202 = vector.broadcast %201 : vector<8x1xf32> to vector<8x8xf32>
    %203 = arith.mulf %194, %202 : vector<8x8xf32>
    %cst_72 = arith.constant dense<0.000000e+00> : vector<8x8xf32>
    %204 = tpu.matmul %203, %185, %cst_72 {dimension_numbers = #tpu.dot_dimension_numbers<[1], [0], [0], [1], [0, 0, 1, 1], [], []>} : vector<8x8xf32>, vector<8x8xf32>, vector<8x8xf32> -> vector<8x8xf32>
    %c8_73 = arith.constant 8 : index
    %c16_74 = arith.constant 16 : index
    %205 = vector.load %arg20[%c8_73, %c16_74] : memref<16x32xf32, #tpu.memory_space<vmem>>, vector<8x8xf32>
    tpu.vector_store %arg20[%c8_73, %c16_74], %204 {strides = array<i32>} : memref<16x32xf32, #tpu.memory_space<vmem>>, vector<8x8xf32>,
    %206 = vector.extract_strided_slice %44 {offsets = [8, 24], sizes = [8, 8], strides = [1, 1]} : vector<16x96xf32> to vector<8x8xf32>
    %207 = vector.extract_strided_slice %44 {offsets = [8, 56], sizes = [8, 8], strides = [1, 1]} : vector<16x96xf32> to vector<8x8xf32>
    %208 = vector.extract_strided_slice %44 {offsets = [8, 88], sizes = [8, 8], strides = [1, 1]} : vector<16x96xf32> to vector<8x8xf32>
    %cst_75 = arith.constant dense<0.000000e+00> : vector<8x8xf32>
    %209 = tpu.matmul %206, %207, %cst_75 {dimension_numbers = #tpu.dot_dimension_numbers<[1], [1], [0], [0], [0, 0, 1, 0], [], []>} : vector<8x8xf32>, vector<8x8xf32>, vector<8x8xf32> -> vector<8x8xf32>
    %cst_76 = arith.constant 0.176776692 : f32
    %210 = vector.broadcast %cst_76 : f32 to vector<8x8xf32>
    %211 = arith.mulf %209, %210 : vector<8x8xf32>
    %212 = arith.addf %211, %15 : vector<8x8xf32>
    %cst_77 = arith.constant dense<0xFF800000> : vector<8xf32>
    %213 = vector.multi_reduction <maximumf>, %212, %cst_77 [1] : vector<8x8xf32> to vector<8xf32>
    %214 = vector.shape_cast %213 : vector<8xf32> to vector<8x1xf32>
    %215 = vector.broadcast %214 : vector<8x1xf32> to vector<8x8xf32>
    %216 = arith.subf %212, %215 : vector<8x8xf32>
    %217 = math.exp %216 : vector<8x8xf32>
    %cst_78 = arith.constant dense<0.000000e+00> : vector<8xf32>
    %218 = vector.multi_reduction <add>, %217, %cst_78 [1] : vector<8x8xf32> to vector<8xf32>
    %219 = vector.shape_cast %218 : vector<8xf32> to vector<8x1xf32>
    %220 = tpu.reciprocal %219 {approx = true} : vector<8x1xf32> -> vector<8x1xf32>
    %221 = arith.mulf %219, %220 : vector<8x1xf32>
    %cst_79 = arith.constant 2.000000e+00 : f32
    %222 = vector.broadcast %cst_79 : f32 to vector<8x1xf32>
    %223 = arith.subf %222, %221 : vector<8x1xf32>
    %224 = arith.mulf %220, %223 : vector<8x1xf32>
    %225 = vector.broadcast %224 : vector<8x1xf32> to vector<8x8xf32>
    %226 = arith.mulf %217, %225 : vector<8x8xf32>
    %cst_80 = arith.constant dense<0.000000e+00> : vector<8x8xf32>
    %227 = tpu.matmul %226, %208, %cst_80 {dimension_numbers = #tpu.dot_dimension_numbers<[1], [0], [0], [1], [0, 0, 1, 1], [], []>} : vector<8x8xf32>, vector<8x8xf32>, vector<8x8xf32> -> vector<8x8xf32>
    %c8_81 = arith.constant 8 : index
    %c24_82 = arith.constant 24 : index
    %228 = vector.load %arg20[%c8_81, %c24_82] : memref<16x32xf32, #tpu.memory_space<vmem>>, vector<8x8xf32>
    tpu.vector_store %arg20[%c8_81, %c24_82], %227 {strides = array<i32>} : memref<16x32xf32, #tpu.memory_space<vmem>>, vector<8x8xf32>,
    %c0_83 = arith.constant 0 : index
    %c0_84 = arith.constant 0 : index
    %229 = vector.load %arg20[%c0_83, %c0_84] : memref<16x32xf32, #tpu.memory_space<vmem>>, vector<16x32xf32>
    %c0_85 = arith.constant 0 : index
    %c0_86 = arith.constant 0 : index
    %c0_87 = arith.constant 0 : index
    %230 = vector.load %arg7[%c0_85, %c0_86, %c0_87] : memref<2x32x32xf32, #tpu.memory_space<vmem>>, vector<1x32x32xf32>
    %231 = vector.shape_cast %230 : vector<1x32x32xf32> to vector<32x32xf32>
    %cst_88 = arith.constant dense<0.000000e+00> : vector<16x32xf32>
    %232 = tpu.matmul %229, %231, %cst_88 {dimension_numbers = #tpu.dot_dimension_numbers<[1], [0], [0], [1], [0, 0, 1, 1], [], []>} : vector<16x32xf32>, vector<32x32xf32>, vector<16x32xf32> -> vector<16x32xf32>
    %c0_89 = arith.constant 0 : index
    %c0_90 = arith.constant 0 : index
    %c0_91 = arith.constant 0 : index
    %233 = vector.load %arg8[%c0_89, %c0_90, %c0_91] : memref<2x1x32xf32, #tpu.memory_space<vmem>>, vector<1x1x32xf32>
    %234 = vector.shape_cast %233 : vector<1x1x32xf32> to vector<1x32xf32>
    %235 = vector.broadcast %234 : vector<1x32xf32> to vector<16x32xf32>
    %236 = arith.addf %232, %235 : vector<16x32xf32>
    %237 = arith.addf %9, %236 : vector<16x32xf32>
    %c0_92 = arith.constant 0 : index
    %c0_93 = arith.constant 0 : index
    %c0_94 = arith.constant 0 : index
    %238 = vector.load %arg9[%c0_92, %c0_93, %c0_94] : memref<2x1x32xf32, #tpu.memory_space<vmem>>, vector<1x1x32xf32>
    %239 = vector.shape_cast %238 : vector<1x1x32xf32> to vector<1x32xf32>
    %c0_95 = arith.constant 0 : index
    %c0_96 = arith.constant 0 : index
    %c0_97 = arith.constant 0 : index
    %240 = vector.load %arg10[%c0_95, %c0_96, %c0_97] : memref<2x1x32xf32, #tpu.memory_space<vmem>>, vector<1x1x32xf32>
    %241 = vector.shape_cast %240 : vector<1x1x32xf32> to vector<1x32xf32>
    %cst_98 = arith.constant dense<0.000000e+00> : vector<16xf32>
    %242 = vector.multi_reduction <add>, %237, %cst_98 [1] : vector<16x32xf32> to vector<16xf32>
    %243 = vector.shape_cast %242 : vector<16xf32> to vector<16x1xf32>
    %cst_99 = arith.constant 3.200000e+01 : f32
    %244 = vector.broadcast %cst_99 : f32 to vector<16x1xf32>
    %245 = arith.divf %243, %244 : vector<16x1xf32>
    %246 = vector.broadcast %245 : vector<16x1xf32> to vector<16x32xf32>
    %247 = arith.subf %237, %246 : vector<16x32xf32>
    %248 = arith.mulf %247, %247 : vector<16x32xf32>
    %cst_100 = arith.constant dense<0.000000e+00> : vector<16xf32>
    %249 = vector.multi_reduction <add>, %248, %cst_100 [1] : vector<16x32xf32> to vector<16xf32>
    %250 = vector.shape_cast %249 : vector<16xf32> to vector<16x1xf32>
    %cst_101 = arith.constant 3.200000e+01 : f32
    %251 = vector.broadcast %cst_101 : f32 to vector<16x1xf32>
    %252 = arith.divf %250, %251 : vector<16x1xf32>
    %253 = vector.broadcast %245 : vector<16x1xf32> to vector<16x32xf32>
    %254 = arith.subf %237, %253 : vector<16x32xf32>
    %cst_102 = arith.constant 9.99999974E-6 : f32
    %255 = vector.broadcast %cst_102 : f32 to vector<16x1xf32>
    %256 = arith.addf %252, %255 : vector<16x1xf32>
    %257 = math.rsqrt %256 : vector<16x1xf32>
    %258 = vector.broadcast %257 : vector<16x1xf32> to vector<16x32xf32>
    %259 = arith.mulf %254, %258 : vector<16x32xf32>
    %260 = vector.broadcast %239 : vector<1x32xf32> to vector<16x32xf32>
    %261 = arith.mulf %259, %260 : vector<16x32xf32>
    %262 = vector.broadcast %241 : vector<1x32xf32> to vector<16x32xf32>
    %263 = arith.addf %261, %262 : vector<16x32xf32>
    %c0_103 = arith.constant 0 : index
    %c0_104 = arith.constant 0 : index
    %c0_105 = arith.constant 0 : index
    %264 = vector.load %arg11[%c0_103, %c0_104, %c0_105] : memref<2x32x128xf32, #tpu.memory_space<vmem>>, vector<1x32x128xf32>
    %265 = vector.shape_cast %264 : vector<1x32x128xf32> to vector<32x128xf32>
    %cst_106 = arith.constant dense<0.000000e+00> : vector<16x128xf32>
    %266 = tpu.matmul %263, %265, %cst_106 {dimension_numbers = #tpu.dot_dimension_numbers<[1], [0], [0], [1], [0, 0, 1, 1], [], []>} : vector<16x32xf32>, vector<32x128xf32>, vector<16x128xf32> -> vector<16x128xf32>
    %c0_107 = arith.constant 0 : index
    %c0_108 = arith.constant 0 : index
    %c0_109 = arith.constant 0 : index
    %267 = vector.load %arg12[%c0_107, %c0_108, %c0_109] : memref<2x1x128xf32, #tpu.memory_space<vmem>>, vector<1x1x128xf32>
    %268 = vector.shape_cast %267 : vector<1x1x128xf32> to vector<1x128xf32>
    %269 = vector.broadcast %268 : vector<1x128xf32> to vector<16x128xf32>
    %270 = arith.addf %266, %269 : vector<16x128xf32>
    %cst_110 = arith.constant 0.000000e+00 : f32
    %271 = vector.broadcast %cst_110 : f32 to vector<16x128xf32>
    %272 = arith.maximumf %270, %271 : vector<16x128xf32>
    %c0_111 = arith.constant 0 : index
    %c0_112 = arith.constant 0 : index
    %c0_113 = arith.constant 0 : index
    %273 = vector.load %arg13[%c0_111, %c0_112, %c0_113] : memref<2x128x32xf32, #tpu.memory_space<vmem>>, vector<1x128x32xf32>
    %274 = vector.shape_cast %273 : vector<1x128x32xf32> to vector<128x32xf32>
    %cst_114 = arith.constant dense<0.000000e+00> : vector<16x32xf32>
    %275 = tpu.matmul %272, %274, %cst_114 {dimension_numbers = #tpu.dot_dimension_numbers<[1], [0], [0], [1], [0, 0, 1, 1], [], []>} : vector<16x128xf32>, vector<128x32xf32>, vector<16x32xf32> -> vector<16x32xf32>
    %276 = arith.addf %237, %275 : vector<16x32xf32>
    %c0_115 = arith.constant 0 : index
    %c0_116 = arith.constant 0 : index
    %c0_117 = arith.constant 0 : index
    %277 = vector.load %arg14[%c0_115, %c0_116, %c0_117] : memref<2x1x32xf32, #tpu.memory_space<vmem>>, vector<1x1x32xf32>
    %278 = vector.shape_cast %277 : vector<1x1x32xf32> to vector<1x32xf32>
    %279 = vector.broadcast %278 : vector<1x32xf32> to vector<16x32xf32>
    %280 = arith.addf %276, %279 : vector<16x32xf32>
    %c1 = arith.constant 1 : index
    %c0_118 = arith.constant 0 : index
    %c0_119 = arith.constant 0 : index
    %281 = vector.load %arg4[%c1, %c0_118, %c0_119] : memref<2x1x32xf32, #tpu.memory_space<vmem>>, vector<1x1x32xf32>
    %282 = vector.shape_cast %281 : vector<1x1x32xf32> to vector<1x32xf32>
    %c1_120 = arith.constant 1 : index
    %c0_121 = arith.constant 0 : index
    %c0_122 = arith.constant 0 : index
    %283 = vector.load %arg5[%c1_120, %c0_121, %c0_122] : memref<2x1x32xf32, #tpu.memory_space<vmem>>, vector<1x1x32xf32>
    %284 = vector.shape_cast %283 : vector<1x1x32xf32> to vector<1x32xf32>
    %cst_123 = arith.constant dense<0.000000e+00> : vector<16xf32>
    %285 = vector.multi_reduction <add>, %280, %cst_123 [1] : vector<16x32xf32> to vector<16xf32>
    %286 = vector.shape_cast %285 : vector<16xf32> to vector<16x1xf32>
    %cst_124 = arith.constant 3.200000e+01 : f32
    %287 = vector.broadcast %cst_124 : f32 to vector<16x1xf32>
    %288 = arith.divf %286, %287 : vector<16x1xf32>
    %289 = vector.broadcast %288 : vector<16x1xf32> to vector<16x32xf32>
    %290 = arith.subf %280, %289 : vector<16x32xf32>
    %291 = arith.mulf %290, %290 : vector<16x32xf32>
    %cst_125 = arith.constant dense<0.000000e+00> : vector<16xf32>
    %292 = vector.multi_reduction <add>, %291, %cst_125 [1] : vector<16x32xf32> to vector<16xf32>
    %293 = vector.shape_cast %292 : vector<16xf32> to vector<16x1xf32>
    %cst_126 = arith.constant 3.200000e+01 : f32
    %294 = vector.broadcast %cst_126 : f32 to vector<16x1xf32>
    %295 = arith.divf %293, %294 : vector<16x1xf32>
    %296 = vector.broadcast %288 : vector<16x1xf32> to vector<16x32xf32>
    %297 = arith.subf %280, %296 : vector<16x32xf32>
    %cst_127 = arith.constant 9.99999974E-6 : f32
    %298 = vector.broadcast %cst_127 : f32 to vector<16x1xf32>
    %299 = arith.addf %295, %298 : vector<16x1xf32>
    %300 = math.rsqrt %299 : vector<16x1xf32>
    %301 = vector.broadcast %300 : vector<16x1xf32> to vector<16x32xf32>
    %302 = arith.mulf %297, %301 : vector<16x32xf32>
    %303 = vector.broadcast %282 : vector<1x32xf32> to vector<16x32xf32>
    %304 = arith.mulf %302, %303 : vector<16x32xf32>
    %305 = vector.broadcast %284 : vector<1x32xf32> to vector<16x32xf32>
    %306 = arith.addf %304, %305 : vector<16x32xf32>
    %c1_128 = arith.constant 1 : index
    %c0_129 = arith.constant 0 : index
    %c0_130 = arith.constant 0 : index
    %307 = vector.load %arg6[%c1_128, %c0_129, %c0_130] : memref<2x32x96xf32, #tpu.memory_space<vmem>>, vector<1x32x96xf32>
    %308 = vector.shape_cast %307 : vector<1x32x96xf32> to vector<32x96xf32>
    %cst_131 = arith.constant dense<0.000000e+00> : vector<16x96xf32>
    %309 = tpu.matmul %306, %308, %cst_131 {dimension_numbers = #tpu.dot_dimension_numbers<[1], [0], [0], [1], [0, 0, 1, 1], [], []>} : vector<16x32xf32>, vector<32x96xf32>, vector<16x96xf32> -> vector<16x96xf32>
    %310 = vector.extract_strided_slice %309 {offsets = [0, 0], sizes = [8, 8], strides = [1, 1]} : vector<16x96xf32> to vector<8x8xf32>
    %311 = vector.extract_strided_slice %309 {offsets = [0, 32], sizes = [8, 8], strides = [1, 1]} : vector<16x96xf32> to vector<8x8xf32>
    %312 = vector.extract_strided_slice %309 {offsets = [0, 64], sizes = [8, 8], strides = [1, 1]} : vector<16x96xf32> to vector<8x8xf32>
    %cst_132 = arith.constant dense<0.000000e+00> : vector<8x8xf32>
    %313 = tpu.matmul %310, %311, %cst_132 {dimension_numbers = #tpu.dot_dimension_numbers<[1], [1], [0], [0], [0, 0, 1, 0], [], []>} : vector<8x8xf32>, vector<8x8xf32>, vector<8x8xf32> -> vector<8x8xf32>
    %cst_133 = arith.constant 0.176776692 : f32
    %314 = vector.broadcast %cst_133 : f32 to vector<8x8xf32>
    %315 = arith.mulf %313, %314 : vector<8x8xf32>
    %316 = arith.addf %315, %15 : vector<8x8xf32>
    %cst_134 = arith.constant dense<0xFF800000> : vector<8xf32>
    %317 = vector.multi_reduction <maximumf>, %316, %cst_134 [1] : vector<8x8xf32> to vector<8xf32>
    %318 = vector.shape_cast %317 : vector<8xf32> to vector<8x1xf32>
    %319 = vector.broadcast %318 : vector<8x1xf32> to vector<8x8xf32>
    %320 = arith.subf %316, %319 : vector<8x8xf32>
    %321 = math.exp %320 : vector<8x8xf32>
    %cst_135 = arith.constant dense<0.000000e+00> : vector<8xf32>
    %322 = vector.multi_reduction <add>, %321, %cst_135 [1] : vector<8x8xf32> to vector<8xf32>
    %323 = vector.shape_cast %322 : vector<8xf32> to vector<8x1xf32>
    %324 = tpu.reciprocal %323 {approx = true} : vector<8x1xf32> -> vector<8x1xf32>
    %325 = arith.mulf %323, %324 : vector<8x1xf32>
    %cst_136 = arith.constant 2.000000e+00 : f32
    %326 = vector.broadcast %cst_136 : f32 to vector<8x1xf32>
    %327 = arith.subf %326, %325 : vector<8x1xf32>
    %328 = arith.mulf %324, %327 : vector<8x1xf32>
    %329 = vector.broadcast %328 : vector<8x1xf32> to vector<8x8xf32>
    %330 = arith.mulf %321, %329 : vector<8x8xf32>
    %cst_137 = arith.constant dense<0.000000e+00> : vector<8x8xf32>
    %331 = tpu.matmul %330, %312, %cst_137 {dimension_numbers = #tpu.dot_dimension_numbers<[1], [0], [0], [1], [0, 0, 1, 1], [], []>} : vector<8x8xf32>, vector<8x8xf32>, vector<8x8xf32> -> vector<8x8xf32>
    %c0_138 = arith.constant 0 : index
    %c0_139 = arith.constant 0 : index
    %332 = vector.load %arg20[%c0_138, %c0_139] : memref<16x32xf32, #tpu.memory_space<vmem>>, vector<8x8xf32>
    tpu.vector_store %arg20[%c0_138, %c0_139], %331 {strides = array<i32>} : memref<16x32xf32, #tpu.memory_space<vmem>>, vector<8x8xf32>,
    %333 = vector.extract_strided_slice %309 {offsets = [0, 8], sizes = [8, 8], strides = [1, 1]} : vector<16x96xf32> to vector<8x8xf32>
    %334 = vector.extract_strided_slice %309 {offsets = [0, 40], sizes = [8, 8], strides = [1, 1]} : vector<16x96xf32> to vector<8x8xf32>
    %335 = vector.extract_strided_slice %309 {offsets = [0, 72], sizes = [8, 8], strides = [1, 1]} : vector<16x96xf32> to vector<8x8xf32>
    %cst_140 = arith.constant dense<0.000000e+00> : vector<8x8xf32>
    %336 = tpu.matmul %333, %334, %cst_140 {dimension_numbers = #tpu.dot_dimension_numbers<[1], [1], [0], [0], [0, 0, 1, 0], [], []>} : vector<8x8xf32>, vector<8x8xf32>, vector<8x8xf32> -> vector<8x8xf32>
    %cst_141 = arith.constant 0.176776692 : f32
    %337 = vector.broadcast %cst_141 : f32 to vector<8x8xf32>
    %338 = arith.mulf %336, %337 : vector<8x8xf32>
    %339 = arith.addf %338, %15 : vector<8x8xf32>
    %cst_142 = arith.constant dense<0xFF800000> : vector<8xf32>
    %340 = vector.multi_reduction <maximumf>, %339, %cst_142 [1] : vector<8x8xf32> to vector<8xf32>
    %341 = vector.shape_cast %340 : vector<8xf32> to vector<8x1xf32>
    %342 = vector.broadcast %341 : vector<8x1xf32> to vector<8x8xf32>
    %343 = arith.subf %339, %342 : vector<8x8xf32>
    %344 = math.exp %343 : vector<8x8xf32>
    %cst_143 = arith.constant dense<0.000000e+00> : vector<8xf32>
    %345 = vector.multi_reduction <add>, %344, %cst_143 [1] : vector<8x8xf32> to vector<8xf32>
    %346 = vector.shape_cast %345 : vector<8xf32> to vector<8x1xf32>
    %347 = tpu.reciprocal %346 {approx = true} : vector<8x1xf32> -> vector<8x1xf32>
    %348 = arith.mulf %346, %347 : vector<8x1xf32>
    %cst_144 = arith.constant 2.000000e+00 : f32
    %349 = vector.broadcast %cst_144 : f32 to vector<8x1xf32>
    %350 = arith.subf %349, %348 : vector<8x1xf32>
    %351 = arith.mulf %347, %350 : vector<8x1xf32>
    %352 = vector.broadcast %351 : vector<8x1xf32> to vector<8x8xf32>
    %353 = arith.mulf %344, %352 : vector<8x8xf32>
    %cst_145 = arith.constant dense<0.000000e+00> : vector<8x8xf32>
    %354 = tpu.matmul %353, %335, %cst_145 {dimension_numbers = #tpu.dot_dimension_numbers<[1], [0], [0], [1], [0, 0, 1, 1], [], []>} : vector<8x8xf32>, vector<8x8xf32>, vector<8x8xf32> -> vector<8x8xf32>
    %c0_146 = arith.constant 0 : index
    %c8_147 = arith.constant 8 : index
    %355 = vector.load %arg20[%c0_146, %c8_147] : memref<16x32xf32, #tpu.memory_space<vmem>>, vector<8x8xf32>
    tpu.vector_store %arg20[%c0_146, %c8_147], %354 {strides = array<i32>} : memref<16x32xf32, #tpu.memory_space<vmem>>, vector<8x8xf32>,
    %356 = vector.extract_strided_slice %309 {offsets = [0, 16], sizes = [8, 8], strides = [1, 1]} : vector<16x96xf32> to vector<8x8xf32>
    %357 = vector.extract_strided_slice %309 {offsets = [0, 48], sizes = [8, 8], strides = [1, 1]} : vector<16x96xf32> to vector<8x8xf32>
    %358 = vector.extract_strided_slice %309 {offsets = [0, 80], sizes = [8, 8], strides = [1, 1]} : vector<16x96xf32> to vector<8x8xf32>
    %cst_148 = arith.constant dense<0.000000e+00> : vector<8x8xf32>
    %359 = tpu.matmul %356, %357, %cst_148 {dimension_numbers = #tpu.dot_dimension_numbers<[1], [1], [0], [0], [0, 0, 1, 0], [], []>} : vector<8x8xf32>, vector<8x8xf32>, vector<8x8xf32> -> vector<8x8xf32>
    %cst_149 = arith.constant 0.176776692 : f32
    %360 = vector.broadcast %cst_149 : f32 to vector<8x8xf32>
    %361 = arith.mulf %359, %360 : vector<8x8xf32>
    %362 = arith.addf %361, %15 : vector<8x8xf32>
    %cst_150 = arith.constant dense<0xFF800000> : vector<8xf32>
    %363 = vector.multi_reduction <maximumf>, %362, %cst_150 [1] : vector<8x8xf32> to vector<8xf32>
    %364 = vector.shape_cast %363 : vector<8xf32> to vector<8x1xf32>
    %365 = vector.broadcast %364 : vector<8x1xf32> to vector<8x8xf32>
    %366 = arith.subf %362, %365 : vector<8x8xf32>
    %367 = math.exp %366 : vector<8x8xf32>
    %cst_151 = arith.constant dense<0.000000e+00> : vector<8xf32>
    %368 = vector.multi_reduction <add>, %367, %cst_151 [1] : vector<8x8xf32> to vector<8xf32>
    %369 = vector.shape_cast %368 : vector<8xf32> to vector<8x1xf32>
    %370 = tpu.reciprocal %369 {approx = true} : vector<8x1xf32> -> vector<8x1xf32>
    %371 = arith.mulf %369, %370 : vector<8x1xf32>
    %cst_152 = arith.constant 2.000000e+00 : f32
    %372 = vector.broadcast %cst_152 : f32 to vector<8x1xf32>
    %373 = arith.subf %372, %371 : vector<8x1xf32>
    %374 = arith.mulf %370, %373 : vector<8x1xf32>
    %375 = vector.broadcast %374 : vector<8x1xf32> to vector<8x8xf32>
    %376 = arith.mulf %367, %375 : vector<8x8xf32>
    %cst_153 = arith.constant dense<0.000000e+00> : vector<8x8xf32>
    %377 = tpu.matmul %376, %358, %cst_153 {dimension_numbers = #tpu.dot_dimension_numbers<[1], [0], [0], [1], [0, 0, 1, 1], [], []>} : vector<8x8xf32>, vector<8x8xf32>, vector<8x8xf32> -> vector<8x8xf32>
    %c0_154 = arith.constant 0 : index
    %c16_155 = arith.constant 16 : index
    %378 = vector.load %arg20[%c0_154, %c16_155] : memref<16x32xf32, #tpu.memory_space<vmem>>, vector<8x8xf32>
    tpu.vector_store %arg20[%c0_154, %c16_155], %377 {strides = array<i32>} : memref<16x32xf32, #tpu.memory_space<vmem>>, vector<8x8xf32>,
    %379 = vector.extract_strided_slice %309 {offsets = [0, 24], sizes = [8, 8], strides = [1, 1]} : vector<16x96xf32> to vector<8x8xf32>
    %380 = vector.extract_strided_slice %309 {offsets = [0, 56], sizes = [8, 8], strides = [1, 1]} : vector<16x96xf32> to vector<8x8xf32>
    %381 = vector.extract_strided_slice %309 {offsets = [0, 88], sizes = [8, 8], strides = [1, 1]} : vector<16x96xf32> to vector<8x8xf32>
    %cst_156 = arith.constant dense<0.000000e+00> : vector<8x8xf32>
    %382 = tpu.matmul %379, %380, %cst_156 {dimension_numbers = #tpu.dot_dimension_numbers<[1], [1], [0], [0], [0, 0, 1, 0], [], []>} : vector<8x8xf32>, vector<8x8xf32>, vector<8x8xf32> -> vector<8x8xf32>
    %cst_157 = arith.constant 0.176776692 : f32
    %383 = vector.broadcast %cst_157 : f32 to vector<8x8xf32>
    %384 = arith.mulf %382, %383 : vector<8x8xf32>
    %385 = arith.addf %384, %15 : vector<8x8xf32>
    %cst_158 = arith.constant dense<0xFF800000> : vector<8xf32>
    %386 = vector.multi_reduction <maximumf>, %385, %cst_158 [1] : vector<8x8xf32> to vector<8xf32>
    %387 = vector.shape_cast %386 : vector<8xf32> to vector<8x1xf32>
    %388 = vector.broadcast %387 : vector<8x1xf32> to vector<8x8xf32>
    %389 = arith.subf %385, %388 : vector<8x8xf32>
    %390 = math.exp %389 : vector<8x8xf32>
    %cst_159 = arith.constant dense<0.000000e+00> : vector<8xf32>
    %391 = vector.multi_reduction <add>, %390, %cst_159 [1] : vector<8x8xf32> to vector<8xf32>
    %392 = vector.shape_cast %391 : vector<8xf32> to vector<8x1xf32>
    %393 = tpu.reciprocal %392 {approx = true} : vector<8x1xf32> -> vector<8x1xf32>
    %394 = arith.mulf %392, %393 : vector<8x1xf32>
    %cst_160 = arith.constant 2.000000e+00 : f32
    %395 = vector.broadcast %cst_160 : f32 to vector<8x1xf32>
    %396 = arith.subf %395, %394 : vector<8x1xf32>
    %397 = arith.mulf %393, %396 : vector<8x1xf32>
    %398 = vector.broadcast %397 : vector<8x1xf32> to vector<8x8xf32>
    %399 = arith.mulf %390, %398 : vector<8x8xf32>
    %cst_161 = arith.constant dense<0.000000e+00> : vector<8x8xf32>
    %400 = tpu.matmul %399, %381, %cst_161 {dimension_numbers = #tpu.dot_dimension_numbers<[1], [0], [0], [1], [0, 0, 1, 1], [], []>} : vector<8x8xf32>, vector<8x8xf32>, vector<8x8xf32> -> vector<8x8xf32>
    %c0_162 = arith.constant 0 : index
    %c24_163 = arith.constant 24 : index
    %401 = vector.load %arg20[%c0_162, %c24_163] : memref<16x32xf32, #tpu.memory_space<vmem>>, vector<8x8xf32>
    tpu.vector_store %arg20[%c0_162, %c24_163], %400 {strides = array<i32>} : memref<16x32xf32, #tpu.memory_space<vmem>>, vector<8x8xf32>,
    %402 = vector.extract_strided_slice %309 {offsets = [8, 0], sizes = [8, 8], strides = [1, 1]} : vector<16x96xf32> to vector<8x8xf32>
    %403 = vector.extract_strided_slice %309 {offsets = [8, 32], sizes = [8, 8], strides = [1, 1]} : vector<16x96xf32> to vector<8x8xf32>
    %404 = vector.extract_strided_slice %309 {offsets = [8, 64], sizes = [8, 8], strides = [1, 1]} : vector<16x96xf32> to vector<8x8xf32>
    %cst_164 = arith.constant dense<0.000000e+00> : vector<8x8xf32>
    %405 = tpu.matmul %402, %403, %cst_164 {dimension_numbers = #tpu.dot_dimension_numbers<[1], [1], [0], [0], [0, 0, 1, 0], [], []>} : vector<8x8xf32>, vector<8x8xf32>, vector<8x8xf32> -> vector<8x8xf32>
    %cst_165 = arith.constant 0.176776692 : f32
    %406 = vector.broadcast %cst_165 : f32 to vector<8x8xf32>
    %407 = arith.mulf %405, %406 : vector<8x8xf32>
    %408 = arith.addf %407, %15 : vector<8x8xf32>
    %cst_166 = arith.constant dense<0xFF800000> : vector<8xf32>
    %409 = vector.multi_reduction <maximumf>, %408, %cst_166 [1] : vector<8x8xf32> to vector<8xf32>
    %410 = vector.shape_cast %409 : vector<8xf32> to vector<8x1xf32>
    %411 = vector.broadcast %410 : vector<8x1xf32> to vector<8x8xf32>
    %412 = arith.subf %408, %411 : vector<8x8xf32>
    %413 = math.exp %412 : vector<8x8xf32>
    %cst_167 = arith.constant dense<0.000000e+00> : vector<8xf32>
    %414 = vector.multi_reduction <add>, %413, %cst_167 [1] : vector<8x8xf32> to vector<8xf32>
    %415 = vector.shape_cast %414 : vector<8xf32> to vector<8x1xf32>
    %416 = tpu.reciprocal %415 {approx = true} : vector<8x1xf32> -> vector<8x1xf32>
    %417 = arith.mulf %415, %416 : vector<8x1xf32>
    %cst_168 = arith.constant 2.000000e+00 : f32
    %418 = vector.broadcast %cst_168 : f32 to vector<8x1xf32>
    %419 = arith.subf %418, %417 : vector<8x1xf32>
    %420 = arith.mulf %416, %419 : vector<8x1xf32>
    %421 = vector.broadcast %420 : vector<8x1xf32> to vector<8x8xf32>
    %422 = arith.mulf %413, %421 : vector<8x8xf32>
    %cst_169 = arith.constant dense<0.000000e+00> : vector<8x8xf32>
    %423 = tpu.matmul %422, %404, %cst_169 {dimension_numbers = #tpu.dot_dimension_numbers<[1], [0], [0], [1], [0, 0, 1, 1], [], []>} : vector<8x8xf32>, vector<8x8xf32>, vector<8x8xf32> -> vector<8x8xf32>
    %c8_170 = arith.constant 8 : index
    %c0_171 = arith.constant 0 : index
    %424 = vector.load %arg20[%c8_170, %c0_171] : memref<16x32xf32, #tpu.memory_space<vmem>>, vector<8x8xf32>
    tpu.vector_store %arg20[%c8_170, %c0_171], %423 {strides = array<i32>} : memref<16x32xf32, #tpu.memory_space<vmem>>, vector<8x8xf32>,
    %425 = vector.extract_strided_slice %309 {offsets = [8, 8], sizes = [8, 8], strides = [1, 1]} : vector<16x96xf32> to vector<8x8xf32>
    %426 = vector.extract_strided_slice %309 {offsets = [8, 40], sizes = [8, 8], strides = [1, 1]} : vector<16x96xf32> to vector<8x8xf32>
    %427 = vector.extract_strided_slice %309 {offsets = [8, 72], sizes = [8, 8], strides = [1, 1]} : vector<16x96xf32> to vector<8x8xf32>
    %cst_172 = arith.constant dense<0.000000e+00> : vector<8x8xf32>
    %428 = tpu.matmul %425, %426, %cst_172 {dimension_numbers = #tpu.dot_dimension_numbers<[1], [1], [0], [0], [0, 0, 1, 0], [], []>} : vector<8x8xf32>, vector<8x8xf32>, vector<8x8xf32> -> vector<8x8xf32>
    %cst_173 = arith.constant 0.176776692 : f32
    %429 = vector.broadcast %cst_173 : f32 to vector<8x8xf32>
    %430 = arith.mulf %428, %429 : vector<8x8xf32>
    %431 = arith.addf %430, %15 : vector<8x8xf32>
    %cst_174 = arith.constant dense<0xFF800000> : vector<8xf32>
    %432 = vector.multi_reduction <maximumf>, %431, %cst_174 [1] : vector<8x8xf32> to vector<8xf32>
    %433 = vector.shape_cast %432 : vector<8xf32> to vector<8x1xf32>
    %434 = vector.broadcast %433 : vector<8x1xf32> to vector<8x8xf32>
    %435 = arith.subf %431, %434 : vector<8x8xf32>
    %436 = math.exp %435 : vector<8x8xf32>
    %cst_175 = arith.constant dense<0.000000e+00> : vector<8xf32>
    %437 = vector.multi_reduction <add>, %436, %cst_175 [1] : vector<8x8xf32> to vector<8xf32>
    %438 = vector.shape_cast %437 : vector<8xf32> to vector<8x1xf32>
    %439 = tpu.reciprocal %438 {approx = true} : vector<8x1xf32> -> vector<8x1xf32>
    %440 = arith.mulf %438, %439 : vector<8x1xf32>
    %cst_176 = arith.constant 2.000000e+00 : f32
    %441 = vector.broadcast %cst_176 : f32 to vector<8x1xf32>
    %442 = arith.subf %441, %440 : vector<8x1xf32>
    %443 = arith.mulf %439, %442 : vector<8x1xf32>
    %444 = vector.broadcast %443 : vector<8x1xf32> to vector<8x8xf32>
    %445 = arith.mulf %436, %444 : vector<8x8xf32>
    %cst_177 = arith.constant dense<0.000000e+00> : vector<8x8xf32>
    %446 = tpu.matmul %445, %427, %cst_177 {dimension_numbers = #tpu.dot_dimension_numbers<[1], [0], [0], [1], [0, 0, 1, 1], [], []>} : vector<8x8xf32>, vector<8x8xf32>, vector<8x8xf32> -> vector<8x8xf32>
    %c8_178 = arith.constant 8 : index
    %c8_179 = arith.constant 8 : index
    %447 = vector.load %arg20[%c8_178, %c8_179] : memref<16x32xf32, #tpu.memory_space<vmem>>, vector<8x8xf32>
    tpu.vector_store %arg20[%c8_178, %c8_179], %446 {strides = array<i32>} : memref<16x32xf32, #tpu.memory_space<vmem>>, vector<8x8xf32>,
    %448 = vector.extract_strided_slice %309 {offsets = [8, 16], sizes = [8, 8], strides = [1, 1]} : vector<16x96xf32> to vector<8x8xf32>
    %449 = vector.extract_strided_slice %309 {offsets = [8, 48], sizes = [8, 8], strides = [1, 1]} : vector<16x96xf32> to vector<8x8xf32>
    %450 = vector.extract_strided_slice %309 {offsets = [8, 80], sizes = [8, 8], strides = [1, 1]} : vector<16x96xf32> to vector<8x8xf32>
    %cst_180 = arith.constant dense<0.000000e+00> : vector<8x8xf32>
    %451 = tpu.matmul %448, %449, %cst_180 {dimension_numbers = #tpu.dot_dimension_numbers<[1], [1], [0], [0], [0, 0, 1, 0], [], []>} : vector<8x8xf32>, vector<8x8xf32>, vector<8x8xf32> -> vector<8x8xf32>
    %cst_181 = arith.constant 0.176776692 : f32
    %452 = vector.broadcast %cst_181 : f32 to vector<8x8xf32>
    %453 = arith.mulf %451, %452 : vector<8x8xf32>
    %454 = arith.addf %453, %15 : vector<8x8xf32>
    %cst_182 = arith.constant dense<0xFF800000> : vector<8xf32>
    %455 = vector.multi_reduction <maximumf>, %454, %cst_182 [1] : vector<8x8xf32> to vector<8xf32>
    %456 = vector.shape_cast %455 : vector<8xf32> to vector<8x1xf32>
    %457 = vector.broadcast %456 : vector<8x1xf32> to vector<8x8xf32>
    %458 = arith.subf %454, %457 : vector<8x8xf32>
    %459 = math.exp %458 : vector<8x8xf32>
    %cst_183 = arith.constant dense<0.000000e+00> : vector<8xf32>
    %460 = vector.multi_reduction <add>, %459, %cst_183 [1] : vector<8x8xf32> to vector<8xf32>
    %461 = vector.shape_cast %460 : vector<8xf32> to vector<8x1xf32>
    %462 = tpu.reciprocal %461 {approx = true} : vector<8x1xf32> -> vector<8x1xf32>
    %463 = arith.mulf %461, %462 : vector<8x1xf32>
    %cst_184 = arith.constant 2.000000e+00 : f32
    %464 = vector.broadcast %cst_184 : f32 to vector<8x1xf32>
    %465 = arith.subf %464, %463 : vector<8x1xf32>
    %466 = arith.mulf %462, %465 : vector<8x1xf32>
    %467 = vector.broadcast %466 : vector<8x1xf32> to vector<8x8xf32>
    %468 = arith.mulf %459, %467 : vector<8x8xf32>
    %cst_185 = arith.constant dense<0.000000e+00> : vector<8x8xf32>
    %469 = tpu.matmul %468, %450, %cst_185 {dimension_numbers = #tpu.dot_dimension_numbers<[1], [0], [0], [1], [0, 0, 1, 1], [], []>} : vector<8x8xf32>, vector<8x8xf32>, vector<8x8xf32> -> vector<8x8xf32>
    %c8_186 = arith.constant 8 : index
    %c16_187 = arith.constant 16 : index
    %470 = vector.load %arg20[%c8_186, %c16_187] : memref<16x32xf32, #tpu.memory_space<vmem>>, vector<8x8xf32>
    tpu.vector_store %arg20[%c8_186, %c16_187], %469 {strides = array<i32>} : memref<16x32xf32, #tpu.memory_space<vmem>>, vector<8x8xf32>,
    %471 = vector.extract_strided_slice %309 {offsets = [8, 24], sizes = [8, 8], strides = [1, 1]} : vector<16x96xf32> to vector<8x8xf32>
    %472 = vector.extract_strided_slice %309 {offsets = [8, 56], sizes = [8, 8], strides = [1, 1]} : vector<16x96xf32> to vector<8x8xf32>
    %473 = vector.extract_strided_slice %309 {offsets = [8, 88], sizes = [8, 8], strides = [1, 1]} : vector<16x96xf32> to vector<8x8xf32>
    %cst_188 = arith.constant dense<0.000000e+00> : vector<8x8xf32>
    %474 = tpu.matmul %471, %472, %cst_188 {dimension_numbers = #tpu.dot_dimension_numbers<[1], [1], [0], [0], [0, 0, 1, 0], [], []>} : vector<8x8xf32>, vector<8x8xf32>, vector<8x8xf32> -> vector<8x8xf32>
    %cst_189 = arith.constant 0.176776692 : f32
    %475 = vector.broadcast %cst_189 : f32 to vector<8x8xf32>
    %476 = arith.mulf %474, %475 : vector<8x8xf32>
    %477 = arith.addf %476, %15 : vector<8x8xf32>
    %cst_190 = arith.constant dense<0xFF800000> : vector<8xf32>
    %478 = vector.multi_reduction <maximumf>, %477, %cst_190 [1] : vector<8x8xf32> to vector<8xf32>
    %479 = vector.shape_cast %478 : vector<8xf32> to vector<8x1xf32>
    %480 = vector.broadcast %479 : vector<8x1xf32> to vector<8x8xf32>
    %481 = arith.subf %477, %480 : vector<8x8xf32>
    %482 = math.exp %481 : vector<8x8xf32>
    %cst_191 = arith.constant dense<0.000000e+00> : vector<8xf32>
    %483 = vector.multi_reduction <add>, %482, %cst_191 [1] : vector<8x8xf32> to vector<8xf32>
    %484 = vector.shape_cast %483 : vector<8xf32> to vector<8x1xf32>
    %485 = tpu.reciprocal %484 {approx = true} : vector<8x1xf32> -> vector<8x1xf32>
    %486 = arith.mulf %484, %485 : vector<8x1xf32>
    %cst_192 = arith.constant 2.000000e+00 : f32
    %487 = vector.broadcast %cst_192 : f32 to vector<8x1xf32>
    %488 = arith.subf %487, %486 : vector<8x1xf32>
    %489 = arith.mulf %485, %488 : vector<8x1xf32>
    %490 = vector.broadcast %489 : vector<8x1xf32> to vector<8x8xf32>
    %491 = arith.mulf %482, %490 : vector<8x8xf32>
    %cst_193 = arith.constant dense<0.000000e+00> : vector<8x8xf32>
    %492 = tpu.matmul %491, %473, %cst_193 {dimension_numbers = #tpu.dot_dimension_numbers<[1], [0], [0], [1], [0, 0, 1, 1], [], []>} : vector<8x8xf32>, vector<8x8xf32>, vector<8x8xf32> -> vector<8x8xf32>
    %c8_194 = arith.constant 8 : index
    %c24_195 = arith.constant 24 : index
    %493 = vector.load %arg20[%c8_194, %c24_195] : memref<16x32xf32, #tpu.memory_space<vmem>>, vector<8x8xf32>
    tpu.vector_store %arg20[%c8_194, %c24_195], %492 {strides = array<i32>} : memref<16x32xf32, #tpu.memory_space<vmem>>, vector<8x8xf32>,
    %c0_196 = arith.constant 0 : index
    %c0_197 = arith.constant 0 : index
    %494 = vector.load %arg20[%c0_196, %c0_197] : memref<16x32xf32, #tpu.memory_space<vmem>>, vector<16x32xf32>
    %c1_198 = arith.constant 1 : index
    %c0_199 = arith.constant 0 : index
    %c0_200 = arith.constant 0 : index
    %495 = vector.load %arg7[%c1_198, %c0_199, %c0_200] : memref<2x32x32xf32, #tpu.memory_space<vmem>>, vector<1x32x32xf32>
    %496 = vector.shape_cast %495 : vector<1x32x32xf32> to vector<32x32xf32>
    %cst_201 = arith.constant dense<0.000000e+00> : vector<16x32xf32>
    %497 = tpu.matmul %494, %496, %cst_201 {dimension_numbers = #tpu.dot_dimension_numbers<[1], [0], [0], [1], [0, 0, 1, 1], [], []>} : vector<16x32xf32>, vector<32x32xf32>, vector<16x32xf32> -> vector<16x32xf32>
    %c1_202 = arith.constant 1 : index
    %c0_203 = arith.constant 0 : index
    %c0_204 = arith.constant 0 : index
    %498 = vector.load %arg8[%c1_202, %c0_203, %c0_204] : memref<2x1x32xf32, #tpu.memory_space<vmem>>, vector<1x1x32xf32>
    %499 = vector.shape_cast %498 : vector<1x1x32xf32> to vector<1x32xf32>
    %500 = vector.broadcast %499 : vector<1x32xf32> to vector<16x32xf32>
    %501 = arith.addf %497, %500 : vector<16x32xf32>
    %502 = arith.addf %280, %501 : vector<16x32xf32>
    %c1_205 = arith.constant 1 : index
    %c0_206 = arith.constant 0 : index
    %c0_207 = arith.constant 0 : index
    %503 = vector.load %arg9[%c1_205, %c0_206, %c0_207] : memref<2x1x32xf32, #tpu.memory_space<vmem>>, vector<1x1x32xf32>
    %504 = vector.shape_cast %503 : vector<1x1x32xf32> to vector<1x32xf32>
    %c1_208 = arith.constant 1 : index
    %c0_209 = arith.constant 0 : index
    %c0_210 = arith.constant 0 : index
    %505 = vector.load %arg10[%c1_208, %c0_209, %c0_210] : memref<2x1x32xf32, #tpu.memory_space<vmem>>, vector<1x1x32xf32>
    %506 = vector.shape_cast %505 : vector<1x1x32xf32> to vector<1x32xf32>
    %cst_211 = arith.constant dense<0.000000e+00> : vector<16xf32>
    %507 = vector.multi_reduction <add>, %502, %cst_211 [1] : vector<16x32xf32> to vector<16xf32>
    %508 = vector.shape_cast %507 : vector<16xf32> to vector<16x1xf32>
    %cst_212 = arith.constant 3.200000e+01 : f32
    %509 = vector.broadcast %cst_212 : f32 to vector<16x1xf32>
    %510 = arith.divf %508, %509 : vector<16x1xf32>
    %511 = vector.broadcast %510 : vector<16x1xf32> to vector<16x32xf32>
    %512 = arith.subf %502, %511 : vector<16x32xf32>
    %513 = arith.mulf %512, %512 : vector<16x32xf32>
    %cst_213 = arith.constant dense<0.000000e+00> : vector<16xf32>
    %514 = vector.multi_reduction <add>, %513, %cst_213 [1] : vector<16x32xf32> to vector<16xf32>
    %515 = vector.shape_cast %514 : vector<16xf32> to vector<16x1xf32>
    %cst_214 = arith.constant 3.200000e+01 : f32
    %516 = vector.broadcast %cst_214 : f32 to vector<16x1xf32>
    %517 = arith.divf %515, %516 : vector<16x1xf32>
    %518 = vector.broadcast %510 : vector<16x1xf32> to vector<16x32xf32>
    %519 = arith.subf %502, %518 : vector<16x32xf32>
    %cst_215 = arith.constant 9.99999974E-6 : f32
    %520 = vector.broadcast %cst_215 : f32 to vector<16x1xf32>
    %521 = arith.addf %517, %520 : vector<16x1xf32>
    %522 = math.rsqrt %521 : vector<16x1xf32>
    %523 = vector.broadcast %522 : vector<16x1xf32> to vector<16x32xf32>
    %524 = arith.mulf %519, %523 : vector<16x32xf32>
    %525 = vector.broadcast %504 : vector<1x32xf32> to vector<16x32xf32>
    %526 = arith.mulf %524, %525 : vector<16x32xf32>
    %527 = vector.broadcast %506 : vector<1x32xf32> to vector<16x32xf32>
    %528 = arith.addf %526, %527 : vector<16x32xf32>
    %c1_216 = arith.constant 1 : index
    %c0_217 = arith.constant 0 : index
    %c0_218 = arith.constant 0 : index
    %529 = vector.load %arg11[%c1_216, %c0_217, %c0_218] : memref<2x32x128xf32, #tpu.memory_space<vmem>>, vector<1x32x128xf32>
    %530 = vector.shape_cast %529 : vector<1x32x128xf32> to vector<32x128xf32>
    %cst_219 = arith.constant dense<0.000000e+00> : vector<16x128xf32>
    %531 = tpu.matmul %528, %530, %cst_219 {dimension_numbers = #tpu.dot_dimension_numbers<[1], [0], [0], [1], [0, 0, 1, 1], [], []>} : vector<16x32xf32>, vector<32x128xf32>, vector<16x128xf32> -> vector<16x128xf32>
    %c1_220 = arith.constant 1 : index
    %c0_221 = arith.constant 0 : index
    %c0_222 = arith.constant 0 : index
    %532 = vector.load %arg12[%c1_220, %c0_221, %c0_222] : memref<2x1x128xf32, #tpu.memory_space<vmem>>, vector<1x1x128xf32>
    %533 = vector.shape_cast %532 : vector<1x1x128xf32> to vector<1x128xf32>
    %534 = vector.broadcast %533 : vector<1x128xf32> to vector<16x128xf32>
    %535 = arith.addf %531, %534 : vector<16x128xf32>
    %cst_223 = arith.constant 0.000000e+00 : f32
    %536 = vector.broadcast %cst_223 : f32 to vector<16x128xf32>
    %537 = arith.maximumf %535, %536 : vector<16x128xf32>
    %c1_224 = arith.constant 1 : index
    %c0_225 = arith.constant 0 : index
    %c0_226 = arith.constant 0 : index
    %538 = vector.load %arg13[%c1_224, %c0_225, %c0_226] : memref<2x128x32xf32, #tpu.memory_space<vmem>>, vector<1x128x32xf32>
    %539 = vector.shape_cast %538 : vector<1x128x32xf32> to vector<128x32xf32>
    %cst_227 = arith.constant dense<0.000000e+00> : vector<16x32xf32>
    %540 = tpu.matmul %537, %539, %cst_227 {dimension_numbers = #tpu.dot_dimension_numbers<[1], [0], [0], [1], [0, 0, 1, 1], [], []>} : vector<16x128xf32>, vector<128x32xf32>, vector<16x32xf32> -> vector<16x32xf32>
    %541 = arith.addf %502, %540 : vector<16x32xf32>
    %c1_228 = arith.constant 1 : index
    %c0_229 = arith.constant 0 : index
    %c0_230 = arith.constant 0 : index
    %542 = vector.load %arg14[%c1_228, %c0_229, %c0_230] : memref<2x1x32xf32, #tpu.memory_space<vmem>>, vector<1x1x32xf32>
    %543 = vector.shape_cast %542 : vector<1x1x32xf32> to vector<1x32xf32>
    %544 = vector.broadcast %543 : vector<1x32xf32> to vector<16x32xf32>
    %545 = arith.addf %541, %544 : vector<16x32xf32>
    %c0_231 = arith.constant 0 : index
    %c0_232 = arith.constant 0 : index
    %546 = vector.load %arg15[%c0_231, %c0_232] : memref<1x32xf32, #tpu.memory_space<vmem>>, vector<1x32xf32>
    %c0_233 = arith.constant 0 : index
    %c0_234 = arith.constant 0 : index
    %547 = vector.load %arg16[%c0_233, %c0_234] : memref<1x32xf32, #tpu.memory_space<vmem>>, vector<1x32xf32>
    %cst_235 = arith.constant dense<0.000000e+00> : vector<16xf32>
    %548 = vector.multi_reduction <add>, %545, %cst_235 [1] : vector<16x32xf32> to vector<16xf32>
    %549 = vector.shape_cast %548 : vector<16xf32> to vector<16x1xf32>
    %cst_236 = arith.constant 3.200000e+01 : f32
    %550 = vector.broadcast %cst_236 : f32 to vector<16x1xf32>
    %551 = arith.divf %549, %550 : vector<16x1xf32>
    %552 = vector.broadcast %551 : vector<16x1xf32> to vector<16x32xf32>
    %553 = arith.subf %545, %552 : vector<16x32xf32>
    %554 = arith.mulf %553, %553 : vector<16x32xf32>
    %cst_237 = arith.constant dense<0.000000e+00> : vector<16xf32>
    %555 = vector.multi_reduction <add>, %554, %cst_237 [1] : vector<16x32xf32> to vector<16xf32>
    %556 = vector.shape_cast %555 : vector<16xf32> to vector<16x1xf32>
    %cst_238 = arith.constant 3.200000e+01 : f32
    %557 = vector.broadcast %cst_238 : f32 to vector<16x1xf32>
    %558 = arith.divf %556, %557 : vector<16x1xf32>
    %559 = vector.broadcast %551 : vector<16x1xf32> to vector<16x32xf32>
    %560 = arith.subf %545, %559 : vector<16x32xf32>
    %cst_239 = arith.constant 9.99999974E-6 : f32
    %561 = vector.broadcast %cst_239 : f32 to vector<16x1xf32>
    %562 = arith.addf %558, %561 : vector<16x1xf32>
    %563 = math.rsqrt %562 : vector<16x1xf32>
    %564 = vector.broadcast %563 : vector<16x1xf32> to vector<16x32xf32>
    %565 = arith.mulf %560, %564 : vector<16x32xf32>
    %566 = vector.broadcast %546 : vector<1x32xf32> to vector<16x32xf32>
    %567 = arith.mulf %565, %566 : vector<16x32xf32>
    %568 = vector.broadcast %547 : vector<1x32xf32> to vector<16x32xf32>
    %569 = arith.addf %567, %568 : vector<16x32xf32>
    %c0_240 = arith.constant 0 : index
    %c0_241 = arith.constant 0 : index
    %570 = vector.load %arg17[%c0_240, %c0_241] : memref<32x128xf32, #tpu.memory_space<vmem>>, vector<32x128xf32>
    %cst_242 = arith.constant dense<0.000000e+00> : vector<16x128xf32>
    %571 = tpu.matmul %569, %570, %cst_242 {dimension_numbers = #tpu.dot_dimension_numbers<[1], [0], [0], [1], [0, 0, 1, 1], [], []>} : vector<16x32xf32>, vector<32x128xf32>, vector<16x128xf32> -> vector<16x128xf32>
    %c0_243 = arith.constant 0 : index
    %c0_244 = arith.constant 0 : index
    %572 = vector.load %arg18[%c0_243, %c0_244] : memref<1x128xf32, #tpu.memory_space<vmem>>, vector<1x128xf32>
    %573 = vector.broadcast %572 : vector<1x128xf32> to vector<16x128xf32>
    %574 = arith.addf %571, %573 : vector<16x128xf32>
    %c0_245 = arith.constant 0 : index
    %c0_246 = arith.constant 0 : index
    %575 = vector.load %arg19[%c0_245, %c0_246] : memref<16x128xf32, #tpu.memory_space<vmem>>, vector<16x128xf32>
    tpu.vector_store %arg19[%c0_245, %c0_246], %574 {strides = array<i32>} : memref<16x128xf32, #tpu.memory_space<vmem>>, vector<16x128xf32>,
    return
  }
  func.func @transform_0(%arg0: i32) -> (i32, i32) {
    %c0_i32 = arith.constant 0 : i32
    %c0_i32_0 = arith.constant 0 : i32
    return %arg0, %c0_i32 : i32, i32
  }
  func.func @transform_1(%arg0: i32) -> (i32, i32) {
    %c0_i32 = arith.constant 0 : i32
    %c0_i32_0 = arith.constant 0 : i32
    %c0_i32_1 = arith.constant 0 : i32
    return %c0_i32, %c0_i32_0 : i32, i32
  }
  func.func @transform_2(%arg0: i32) -> (i32, i32) {
    %c0_i32 = arith.constant 0 : i32
    %c0_i32_0 = arith.constant 0 : i32
    return %arg0, %c0_i32 : i32, i32
  }
  func.func @transform_3(%arg0: i32) -> (i32, i32, i32) {
    %c0_i32 = arith.constant 0 : i32
    %c0_i32_0 = arith.constant 0 : i32
    %c0_i32_1 = arith.constant 0 : i32
    %c0_i32_2 = arith.constant 0 : i32
    return %c0_i32, %c0_i32_0, %c0_i32_1 : i32, i32, i32
  }
  func.func @transform_4(%arg0: i32) -> (i32, i32, i32) {
    %c0_i32 = arith.constant 0 : i32
    %c0_i32_0 = arith.constant 0 : i32
    %c0_i32_1 = arith.constant 0 : i32
    %c0_i32_2 = arith.constant 0 : i32
    return %c0_i32, %c0_i32_0, %c0_i32_1 : i32, i32, i32
  }
  func.func @transform_5(%arg0: i32) -> (i32, i32, i32) {
    %c0_i32 = arith.constant 0 : i32
    %c0_i32_0 = arith.constant 0 : i32
    %c0_i32_1 = arith.constant 0 : i32
    %c0_i32_2 = arith.constant 0 : i32
    return %c0_i32, %c0_i32_0, %c0_i32_1 : i32, i32, i32
  }
  func.func @transform_6(%arg0: i32) -> (i32, i32, i32) {
    %c0_i32 = arith.constant 0 : i32
    %c0_i32_0 = arith.constant 0 : i32
    %c0_i32_1 = arith.constant 0 : i32
    %c0_i32_2 = arith.constant 0 : i32
    return %c0_i32, %c0_i32_0, %c0_i32_1 : i32, i32, i32
  }
  func.func @transform_7(%arg0: i32) -> (i32, i32, i32) {
    %c0_i32 = arith.constant 0 : i32
    %c0_i32_0 = arith.constant 0 : i32
    %c0_i32_1 = arith.constant 0 : i32
    %c0_i32_2 = arith.constant 0 : i32
    return %c0_i32, %c0_i32_0, %c0_i32_1 : i32, i32, i32
  }
  func.func @transform_8(%arg0: i32) -> (i32, i32, i32) {
    %c0_i32 = arith.constant 0 : i32
    %c0_i32_0 = arith.constant 0 : i32
    %c0_i32_1 = arith.constant 0 : i32
    %c0_i32_2 = arith.constant 0 : i32
    return %c0_i32, %c0_i32_0, %c0_i32_1 : i32, i32, i32
  }
  func.func @transform_9(%arg0: i32) -> (i32, i32, i32) {
    %c0_i32 = arith.constant 0 : i32
    %c0_i32_0 = arith.constant 0 : i32
    %c0_i32_1 = arith.constant 0 : i32
    %c0_i32_2 = arith.constant 0 : i32
    return %c0_i32, %c0_i32_0, %c0_i32_1 : i32, i32, i32
  }
  func.func @transform_10(%arg0: i32) -> (i32, i32, i32) {
    %c0_i32 = arith.constant 0 : i32
    %c0_i32_0 = arith.constant 0 : i32
    %c0_i32_1 = arith.constant 0 : i32
    %c0_i32_2 = arith.constant 0 : i32
    return %c0_i32, %c0_i32_0, %c0_i32_1 : i32, i32, i32
  }
  func.func @transform_11(%arg0: i32) -> (i32, i32, i32) {
    %c0_i32 = arith.constant 0 : i32
    %c0_i32_0 = arith.constant 0 : i32
    %c0_i32_1 = arith.constant 0 : i32
    %c0_i32_2 = arith.constant 0 : i32
    return %c0_i32, %c0_i32_0, %c0_i32_1 : i32, i32, i32
  }
  func.func @transform_12(%arg0: i32) -> (i32, i32, i32) {
    %c0_i32 = arith.constant 0 : i32
    %c0_i32_0 = arith.constant 0 : i32
    %c0_i32_1 = arith.constant 0 : i32
    %c0_i32_2 = arith.constant 0 : i32
    return %c0_i32, %c0_i32_0, %c0_i32_1 : i32, i32, i32
  }
  func.func @transform_13(%arg0: i32) -> (i32, i32, i32) {
    %c0_i32 = arith.constant 0 : i32
    %c0_i32_0 = arith.constant 0 : i32
    %c0_i32_1 = arith.constant 0 : i32
    %c0_i32_2 = arith.constant 0 : i32
    return %c0_i32, %c0_i32_0, %c0_i32_1 : i32, i32, i32
  }
  func.func @transform_14(%arg0: i32) -> (i32, i32) {
    %c0_i32 = arith.constant 0 : i32
    %c0_i32_0 = arith.constant 0 : i32
    %c0_i32_1 = arith.constant 0 : i32
    return %c0_i32, %c0_i32_0 : i32, i32
  }
  func.func @transform_15(%arg0: i32) -> (i32, i32) {
    %c0_i32 = arith.constant 0 : i32
    %c0_i32_0 = arith.constant 0 : i32
    %c0_i32_1 = arith.constant 0 : i32
    return %c0_i32, %c0_i32_0 : i32, i32
  }
  func.func @transform_16(%arg0: i32) -> (i32, i32) {
    %c0_i32 = arith.constant 0 : i32
    %c0_i32_0 = arith.constant 0 : i32
    %c0_i32_1 = arith.constant 0 : i32
    return %c0_i32, %c0_i32_0 : i32, i32
  }
  func.func @transform_17(%arg0: i32) -> (i32, i32) {
    %c0_i32 = arith.constant 0 : i32
    %c0_i32_0 = arith.constant 0 : i32
    %c0_i32_1 = arith.constant 0 : i32
    return %c0_i32, %c0_i32_0 : i32, i32
  }
  func.func @transform_18(%arg0: i32) -> (i32, i32) {
    %c0_i32 = arith.constant 0 : i32
    %c0_i32_0 = arith.constant 0 : i32
    return %arg0, %c0_i32 : i32, i32
  }
}

</mosaic_0001>

<llo_original>
// kernel: _forward_logits.1
$region0: #{_forward_logits.1}
  #allocation0 [shape = 'u32[]', space=smem, size = 0x4, offset = 0x4, fixed_abs, tag = 'smem constant byte address 0x4 - core index']
  #allocation1 [shape = 'u32[144,128]{1,0:T(1,128)}', space=vmem, size = 0x12000, scoped, tag = 'internal scratch']
  #allocation2 [shape = 'f32[16,32]{1,0:T(8,128)}', space=vmem, size = 0x2000, scoped, tag = 'scratch operand']
  %s0 = inlined_call_operand.vmem [shape: s32[16,1], index: 0, kind: input, shape index: {}]
  %s1 = inlined_call_operand.vmem [shape: f32[128,32], index: 1, kind: input, shape index: {}]
  %s2 = inlined_call_operand.vmem [shape: f32[16,32], index: 2, kind: input, shape index: {}]
  %s3 = inlined_call_operand.vmem [shape: f32[2,1,32], index: 3, kind: input, shape index: {}]
  %s4 = inlined_call_operand.vmem [shape: f32[2,1,32], index: 4, kind: input, shape index: {}]
  %s5 = inlined_call_operand.vmem [shape: f32[2,32,96], index: 5, kind: input, shape index: {}]
  %s6 = inlined_call_operand.vmem [shape: f32[2,32,32], index: 6, kind: input, shape index: {}]
  %s7 = inlined_call_operand.vmem [shape: f32[2,1,32], index: 7, kind: input, shape index: {}]
  %s8 = inlined_call_operand.vmem [shape: f32[2,1,32], index: 8, kind: input, shape index: {}]
  %s9 = inlined_call_operand.vmem [shape: f32[2,1,32], index: 9, kind: input, shape index: {}]
  %s10 = inlined_call_operand.vmem [shape: f32[2,32,128], index: 10, kind: input, shape index: {}]
  %s11 = inlined_call_operand.vmem [shape: f32[2,1,128], index: 11, kind: input, shape index: {}]
  %s12 = inlined_call_operand.vmem [shape: f32[2,128,32], index: 12, kind: input, shape index: {}]
  %s13 = inlined_call_operand.vmem [shape: f32[2,1,32], index: 13, kind: input, shape index: {}]
  %s14 = inlined_call_operand.vmem [shape: f32[1,32], index: 14, kind: input, shape index: {}]
  %s15 = inlined_call_operand.vmem [shape: f32[1,32], index: 15, kind: input, shape index: {}]
  %s16 = inlined_call_operand.vmem [shape: f32[32,128], index: 16, kind: input, shape index: {}]
  %s17 = inlined_call_operand.vmem [shape: f32[1,128], index: 17, kind: input, shape index: {}]
  %s18 = inlined_call_operand.hbm [shape: f32[16,128], index: 18, kind: output, shape index: {}]
  %s19 = sld [smem:[#allocation0]]
  $region82: #{_forward_logits.1} parent=0
    _
  %s21 = ssub.s32 1, %s19
  %s22 = scalar_select 0, %s21, %s19
  $region1: #{_forward_logits.1} parent=0
    #allocation3 [shape = 'u8[8192]{0}', space=vmem, size = 0x2000, scoped, tag = 'output window, operand 0, single buffered']
    #allocation4 [shape = 's32[1]{0}', space=sflag, size = 0x4, scoped, tag = 'scoped memory for _forward_logits.1']
    %23 = vsyncpa [#allocation4], 0
    // Predicated region
    $region2: #{_forward_logits.1} parent=1 // pred_check
      _
    $region3: #{_forward_logits.1} parent=1 // pred_check_branch
      %25 = sbr.rel (0) target = $region5
    $region4: #{_forward_logits.1} parent=1 // pred_region
      _
    $region5: #{_forward_logits.1} parent=1 // pred_fallthru
      _
    // Predicated region
    $region6: #{_forward_logits.1} parent=1 // pred_check
      _
    $region7: #{_forward_logits.1} parent=1 // pred_check_branch
      %27 = sbr.rel (0) target = $region9
    $region8: #{_forward_logits.1} parent=1 // pred_region
      _
    $region9: #{_forward_logits.1} parent=1 // pred_fallthru
      _
    // Predicated region
    $region10: #{_forward_logits.1} parent=1 // pred_check
      _
    $region11: #{_forward_logits.1} parent=1 // pred_check_branch
      %29 = sbr.rel (0) target = $region13
    $region12: #{_forward_logits.1} parent=1 // pred_region
      _
    $region13: #{_forward_logits.1} parent=1 // pred_fallthru
      _
    // Predicated region
    $region14: #{_forward_logits.1} parent=1 // pred_check
      _
    $region15: #{_forward_logits.1} parent=1 // pred_check_branch
      %31 = sbr.rel (0) target = $region17
    $region16: #{_forward_logits.1} parent=1 // pred_region
      _
    $region17: #{_forward_logits.1} parent=1 // pred_fallthru
      _
    // Predicated region
    $region18: #{_forward_logits.1} parent=1 // pred_check
      _
    $region19: #{_forward_logits.1} parent=1 // pred_check_branch
      %33 = sbr.rel (0) target = $region21
    $region20: #{_forward_logits.1} parent=1 // pred_region
      _
    $region21: #{_forward_logits.1} parent=1 // pred_fallthru
      _
    // Predicated region
    $region22: #{_forward_logits.1} parent=1 // pred_check
      _
    $region23: #{_forward_logits.1} parent=1 // pred_check_branch
      %35 = sbr.rel (0) target = $region25
    $region24: #{_forward_logits.1} parent=1 // pred_region
      _
    $region25: #{_forward_logits.1} parent=1 // pred_fallthru
      _
    // Predicated region
    $region26: #{_forward_logits.1} parent=1 // pred_check
      _
    $region27: #{_forward_logits.1} parent=1 // pred_check_branch
      %37 = sbr.rel (0) target = $region29
    $region28: #{_forward_logits.1} parent=1 // pred_region
      _
    $region29: #{_forward_logits.1} parent=1 // pred_fallthru
      _
    // Predicated region
    $region30: #{_forward_logits.1} parent=1 // pred_check
      _
    $region31: #{_forward_logits.1} parent=1 // pred_check_branch
      %39 = sbr.rel (0) target = $region33
    $region32: #{_forward_logits.1} parent=1 // pred_region
      _
    $region33: #{_forward_logits.1} parent=1 // pred_fallthru
      _
    // Predicated region
    $region34: #{_forward_logits.1} parent=1 // pred_check
      _
    $region35: #{_forward_logits.1} parent=1 // pred_check_branch
      %41 = sbr.rel (0) target = $region37
    $region36: #{_forward_logits.1} parent=1 // pred_region
      _
    $region37: #{_forward_logits.1} parent=1 // pred_fallthru
      _
    // Predicated region
    $region38: #{_forward_logits.1} parent=1 // pred_check
      _
    $region39: #{_forward_logits.1} parent=1 // pred_check_branch
      %43 = sbr.rel (0) target = $region41
    $region40: #{_forward_logits.1} parent=1 // pred_region
      _
    $region41: #{_forward_logits.1} parent=1 // pred_fallthru
      _
    // Predicated region
    $region42: #{_forward_logits.1} parent=1 // pred_check
      _
    $region43: #{_forward_logits.1} parent=1 // pred_check_branch
      %45 = sbr.rel (0) target = $region45
    $region44: #{_forward_logits.1} parent=1 // pred_region
      _
    $region45: #{_forward_logits.1} parent=1 // pred_fallthru
      _
    // Predicated region
    $region46: #{_forward_logits.1} parent=1 // pred_check
      _
    $region47: #{_forward_logits.1} parent=1 // pred_check_branch
      %47 = sbr.rel (0) target = $region49
    $region48: #{_forward_logits.1} parent=1 // pred_region
      _
    $region49: #{_forward_logits.1} parent=1 // pred_fallthru
      _
    // Predicated region
    $region50: #{_forward_logits.1} parent=1 // pred_check
      _
    $region51: #{_forward_logits.1} parent=1 // pred_check_branch
      %49 = sbr.rel (0) target = $region53
    $region52: #{_forward_logits.1} parent=1 // pred_region
      _
    $region53: #{_forward_logits.1} parent=1 // pred_fallthru
      _
    // Predicated region
    $region54: #{_forward_logits.1} parent=1 // pred_check
      _
    $region55: #{_forward_logits.1} parent=1 // pred_check_branch
      %51 = sbr.rel (0) target = $region57
    $region56: #{_forward_logits.1} parent=1 // pred_region
      _
    $region57: #{_forward_logits.1} parent=1 // pred_fallthru
      _
    // Predicated region
    $region58: #{_forward_logits.1} parent=1 // pred_check
      _
    $region59: #{_forward_logits.1} parent=1 // pred_check_branch
      %53 = sbr.rel (0) target = $region61
    $region60: #{_forward_logits.1} parent=1 // pred_region
      _
    $region61: #{_forward_logits.1} parent=1 // pred_fallthru
      _
    // Predicated region
    $region62: #{_forward_logits.1} parent=1 // pred_check
      _
    $region63: #{_forward_logits.1} parent=1 // pred_check_branch
      %55 = sbr.rel (0) target = $region65
    $region64: #{_forward_logits.1} parent=1 // pred_region
      _
    $region65: #{_forward_logits.1} parent=1 // pred_fallthru
      _
    // Predicated region
    $region66: #{_forward_logits.1} parent=1 // pred_check
      _
    $region67: #{_forward_logits.1} parent=1 // pred_check_branch
      %57 = sbr.rel (0) target = $region69
    $region68: #{_forward_logits.1} parent=1 // pred_region
      _
    $region69: #{_forward_logits.1} parent=1 // pred_fallthru
      _
    // Predicated region
    $region70: #{_forward_logits.1} parent=1 // pred_check
      _
    $region71: #{_forward_logits.1} parent=1 // pred_check_branch
      %59 = sbr.rel (0) target = $region73
    $region72: #{_forward_logits.1} parent=1 // pred_region
      _
    $region73: #{_forward_logits.1} parent=1 // pred_fallthru
      _
    %v60 = vld [vmem:[%s0] sm:$0xff]
    %v61 = vld [vmem:[%s0 + $0x8] sm:$0xff]
    %v62 = vlaneseq
    %v63 = vand.u32 %v62, 127
    %64 = vset.pattern.permute.xlu0 0
    %65 = vperm.xlu0 %64, %v60
    %v66 = vpop.permute.xlu0 %65
    %67 = vset.pattern.permute.xlu0 0
    %68 = vperm.xlu0 %67, %v61
    %v69 = vpop.permute.xlu0 %68
    %vm70 = vcmp.eq.s32.totalorder %v66, %v63
    %vm71 = vcmp.eq.s32.totalorder %v69, %v63
    %v72 = vsel %vm70, 1, 0
    %v73 = vsel %vm71, 1, 0
    %v74 = vcvt.s32.f32 %v72
    %v75 = vcvt.s32.f32 %v73
    %v76 = vld [vmem:[%s1] sm:$0xff]
    %v77 = vld [vmem:[%s1 + $0x8] sm:$0xff]
    %v78 = vld [vmem:[%s1 + $0x10] sm:$0xff]
    %v79 = vld [vmem:[%s1 + $0x18] sm:$0xff]
    %v80 = vld [vmem:[%s1 + $0x20] sm:$0xff]
    %v81 = vld [vmem:[%s1 + $0x28] sm:$0xff]
    %v82 = vld [vmem:[%s1 + $0x30] sm:$0xff]
    %v83 = vld [vmem:[%s1 + $0x38] sm:$0xff]
    %v84 = vld [vmem:[%s1 + $0x40] sm:$0xff]
    %v85 = vld [vmem:[%s1 + $0x48] sm:$0xff]
    %v86 = vld [vmem:[%s1 + $0x50] sm:$0xff]
    %v87 = vld [vmem:[%s1 + $0x58] sm:$0xff]
    %v88 = vld [vmem:[%s1 + $0x60] sm:$0xff]
    %v89 = vld [vmem:[%s1 + $0x68] sm:$0xff]
    %v90 = vld [vmem:[%s1 + $0x70] sm:$0xff]
    %v91 = vld [vmem:[%s1 + $0x78] sm:$0xff]
    %v92 = vld [vmem:[%s2] sm:$0xff]
    %v93 = vld [vmem:[%s2 + $0x8] sm:$0xff]
    %94 = vmatprep.subr.mxu0 0.0
    %95 = vmatpush1.msra.mxu0 %v91
    %96 = vmatprep.subr.mxu0 0.0
    %97 = vmatpush1.msra.mxu0 %v90
    %98 = vmatprep.subr.mxu0 0.0
    %99 = vmatpush1.msra.mxu0 %v89
    %100 = vmatprep.subr.mxu0 0.0
    %101 = vmatpush1.msra.mxu0 %v88
    %102 = vmatprep.subr.mxu0 0.0
    %103 = vmatpush1.msra.mxu0 %v87
    %104 = vmatprep.subr.mxu0 0.0
    %105 = vmatpush1.msra.mxu0 %v86
    %106 = vmatprep.subr.mxu0 0.0
    %107 = vmatpush1.msra.mxu0 %v85
    %108 = vmatprep.subr.mxu0 0.0
    %109 = vmatpush1.msra.mxu0 %v84
    %110 = vmatprep.subr.mxu0 0.0
    %111 = vmatpush1.msra.mxu0 %v83
    %112 = vmatprep.subr.mxu0 0.0
    %113 = vmatpush1.msra.mxu0 %v82
    %114 = vmatprep.subr.mxu0 0.0
    %115 = vmatpush1.msra.mxu0 %v81
    %116 = vmatprep.subr.mxu0 0.0
    %117 = vmatpush1.msra.mxu0 %v80
    %118 = vmatprep.subr.mxu0 0.0
    %119 = vmatpush1.msra.mxu0 %v79
    %120 = vmatprep.subr.mxu0 0.0
    %121 = vmatpush1.msra.mxu0 %v78
    %122 = vmatprep.subr.mxu0 0.0
    %123 = vmatpush1.msra.mxu0 %v77
    %124 = vmatprep.subr.mxu0 0.0
    %125 = vmatpush1.msra.mxu0 %v76
    %126 = vmatprep.subr.mxu0 0.0
    %127 = vmatpush2.msra.mxu0 0.0
    %128 = vmatprep.subr.mxu0 0.0
    %129 = vmatpush2.msra.mxu0 0.0
    %130 = vmatprep.subr.mxu0 0.0
    %131 = vmatpush2.msra.mxu0 0.0
    %132 = vmatprep.subr.mxu0 0.0
    %133 = vmatpush2.msra.mxu0 0.0
    %134 = vmatprep.subr.mxu0 0.0
    %135 = vmatpush2.msra.mxu0 0.0
    %136 = vmatprep.subr.mxu0 0.0
    %137 = vmatpush2.msra.mxu0 0.0
    %138 = vmatprep.subr.mxu0 0.0
    %139 = vmatpush2.msra.mxu0 0.0
    %140 = vmatprep.subr.mxu0 0.0
    %141 = vmatpush2.msra.mxu0 0.0
    %142 = vmatprep.subr.mxu0 0.0
    %143 = vmatpush2.msra.mxu0 0.0
    %144 = vmatprep.subr.mxu0 0.0
    %145 = vmatpush2.msra.mxu0 0.0
    %146 = vmatprep.subr.mxu0 0.0
    %147 = vmatpush2.msra.mxu0 0.0
    %148 = vmatprep.subr.mxu0 0.0
    %149 = vmatpush2.msra.mxu0 0.0
    %150 = vmatprep.subr.mxu0 0.0
    %151 = vmatpush2.msra.mxu0 0.0
    %152 = vmatprep.subr.mxu0 0.0
    %153 = vmatpush2.msra.mxu0 0.0
    %154 = vmatprep.subr.mxu0 0.0
    %155 = vmatpush2.msra.mxu0 0.0
    %156 = vmatprep.subr.mxu0 0.0
    %157 = vmatpush2.msra.mxu0 0.0
    %158 = vmatprep.mubr.f32.mxu0 0.0
    %159 = vmatmul.mubr.f32.gmra.mxu0 %v74
    %v160 = vpop.f32.mrf.mxu0
    %v161 = vadd.f32 %v92, %v160
    %v162 = vpop.f32.mrf.mxu0
    %163 = vmatprep.mubr.f32.mxu0 0.0
    %164 = vmatmul.mubr.f32.gmra.mxu0 %v75
    %v165 = vpop.f32.mrf.mxu0
    %v166 = vadd.f32 %v93, %v165
    %v167 = vpop.f32.mrf.mxu0
    %168 = vdwg.mxu0
    %v169 = vlaneseq
    %v170 = vshrl.u32 %v169, 7
    %vm171 = vcmp.le.s32.totalorder %v63, %v170
    %v172 = vsel %vm171, 0.0, -1e+30
    %v173 = vld [vmem:[%s3] sm:$0x1]
    %v174 = vld [vmem:[%s4] sm:$0x1]
    %vm175 = vcmask 261120
    %v176 = vsel %vm175, %v161, 0.0
    %177 = vadd.xlane.f32.xlu0 %v176
    %v178 = vpop.xlane.xlu0 %177
    %v179 = vsel %vm175, %v166, 0.0
    %180 = vadd.xlane.f32.xlu0 %v179
    %v181 = vpop.xlane.xlu0 %180
    %v182 = vrcp.pop 32.0
    %v183 = vmul.f32 %v178, %v182
    %v184 = vmul.f32 %v181, %v182
    %v185 = vsub.f32 %v161, %v183
    %v186 = vsub.f32 %v166, %v184
    %v187 = vmul.f32 %v185, %v185
    %v188 = vmul.f32 %v186, %v186
    %v189 = vsel %vm175, %v187, 0.0
    %190 = vadd.xlane.f32.xlu0 %v189
    %v191 = vpop.xlane.xlu0 %190
    %v192 = vsel %vm175, %v188, 0.0
    %193 = vadd.xlane.f32.xlu0 %v192
    %v194 = vpop.xlane.xlu0 %193
    %v195 = vmul.f32 %v191, %v182
    %v196 = vmul.f32 %v194, %v182
    %v197 = vadd.f32 %v195, 1e-05
    %v198 = vadd.f32 %v196, 1e-05
    %v199 = vrsqrt.pop %v197
    %v200 = vrsqrt.pop %v198
    %v201 = vmul.f32 %v185, %v199
    %v202 = vmul.f32 %v186, %v200
    %v204 = vlaneseq
    %v205 = vshrl.u32 %v204, 7
    %v206 = vsub.s32 0, %v205
    %v207 = vrot.slane %v173, %v206
    %v209 = vmul.f32 %v201, %v207
    %v210 = vmul.f32 %v202, %v207
    %v212 = vlaneseq
    %v213 = vshrl.u32 %v212, 7
    %v214 = vsub.s32 0, %v213
    %v215 = vrot.slane %v174, %v214
    %v217 = vadd.f32 %v209, %v215
    %v218 = vadd.f32 %v210, %v215
    %v219 = vld [vmem:[%s5] sm:$0xff]
    %v220 = vld [vmem:[%s5 + $0x8] sm:$0xff]
    %v221 = vld [vmem:[%s5 + $0x10] sm:$0xff]
    %v222 = vld [vmem:[%s5 + $0x18] sm:$0xff]
    %v224 = vsel %vm175, %v217, 0
    %v227 = vsel %vm175, %v218, 0
    %229 = vmatprep.subr.mxu0 0.0
    %230 = vmatpush1.msra.mxu0 0.0
    %231 = vmatprep.subr.mxu0 0.0
    %232 = vmatpush1.msra.mxu0 0.0
    %233 = vmatprep.subr.mxu0 0.0
    %234 = vmatpush1.msra.mxu0 0.0
    %235 = vmatprep.subr.mxu0 0.0
    %236 = vmatpush1.msra.mxu0 0.0
    %237 = vmatprep.subr.mxu0 0.0
    %238 = vmatpush1.msra.mxu0 0.0
    %239 = vmatprep.subr.mxu0 0.0
    %240 = vmatpush1.msra.mxu0 0.0
    %241 = vmatprep.subr.mxu0 0.0
    %242 = vmatpush1.msra.mxu0 0.0
    %243 = vmatprep.subr.mxu0 0.0
    %244 = vmatpush1.msra.mxu0 0.0
    %245 = vmatprep.subr.mxu0 0.0
    %246 = vmatpush1.msra.mxu0 0.0
    %247 = vmatprep.subr.mxu0 0.0
    %248 = vmatpush1.msra.mxu0 0.0
    %249 = vmatprep.subr.mxu0 0.0
    %250 = vmatpush1.msra.mxu0 0.0
    %251 = vmatprep.subr.mxu0 0.0
    %252 = vmatpush1.msra.mxu0 0.0
    %253 = vmatprep.subr.mxu0 0.0
    %254 = vmatpush1.msra.mxu0 %v222
    %255 = vmatprep.subr.mxu0 0.0
    %256 = vmatpush1.msra.mxu0 %v221
    %257 = vmatprep.subr.mxu0 0.0
    %258 = vmatpush1.msra.mxu0 %v220
    %259 = vmatprep.subr.mxu0 0.0
    %260 = vmatpush1.msra.mxu0 %v219
    %261 = vmatprep.subr.mxu0 0.0
    %262 = vmatpush2.msra.mxu0 0.0
    %263 = vmatprep.subr.mxu0 0.0
    %264 = vmatpush2.msra.mxu0 0.0
    %265 = vmatprep.subr.mxu0 0.0
    %266 = vmatpush2.msra.mxu0 0.0
    %267 = vmatprep.subr.mxu0 0.0
    %268 = vmatpush2.msra.mxu0 0.0
    %269 = vmatprep.subr.mxu0 0.0
    %270 = vmatpush2.msra.mxu0 0.0
    %271 = vmatprep.subr.mxu0 0.0
    %272 = vmatpush2.msra.mxu0 0.0
    %273 = vmatprep.subr.mxu0 0.0
    %274 = vmatpush2.msra.mxu0 0.0
    %275 = vmatprep.subr.mxu0 0.0
    %276 = vmatpush2.msra.mxu0 0.0
    %277 = vmatprep.subr.mxu0 0.0
    %278 = vmatpush2.msra.mxu0 0.0
    %279 = vmatprep.subr.mxu0 0.0
    %280 = vmatpush2.msra.mxu0 0.0
    %281 = vmatprep.subr.mxu0 0.0
    %282 = vmatpush2.msra.mxu0 0.0
    %283 = vmatprep.subr.mxu0 0.0
    %284 = vmatpush2.msra.mxu0 0.0
    %285 = vmatprep.subr.mxu0 0.0
    %286 = vmatpush2.msra.mxu0 0.0
    %287 = vmatprep.subr.mxu0 0.0
    %288 = vmatpush2.msra.mxu0 0.0
    %289 = vmatprep.subr.mxu0 0.0
    %290 = vmatpush2.msra.mxu0 0.0
    %291 = vmatprep.subr.mxu0 0.0
    %292 = vmatpush2.msra.mxu0 0.0
    %293 = vmatprep.mubr.f32.mxu0 0.0
    %294 = vmatmul.mubr.f32.gmra.mxu0 %v224
    %v295 = vpop.f32.mrf.mxu0
    %v296 = vadd.f32 0.0, %v295
    %v297 = vpop.f32.mrf.mxu0
    %298 = vmatprep.mubr.f32.mxu0 0.0
    %299 = vmatmul.mubr.f32.gmra.mxu0 %v227
    %v300 = vpop.f32.mrf.mxu0
    %v301 = vadd.f32 0.0, %v300
    %v302 = vpop.f32.mrf.mxu0
    %303 = vdwg.mxu0
    %305 = vrot.lane.b32.xlu0 %v296, 96
    %v306 = vpop.permute.xlu0 %305
    %vm307 = vcmask 64512
    %v308 = vsel %vm307, %v296, 0
    %v310 = vsel %vm307, %v306, 0
    %312 = vmatprep.subr.mxu0 0.0
    %313 = vmatpush1.xpose.msra.mxu0 0.0
    %314 = vmatprep.subr.mxu0 0.0
    %315 = vmatpush1.xpose.msra.mxu0 0.0
    %316 = vmatprep.subr.mxu0 0.0
    %317 = vmatpush1.xpose.msra.mxu0 0.0
    %318 = vmatprep.subr.mxu0 0.0
    %319 = vmatpush1.xpose.msra.mxu0 0.0
    %320 = vmatprep.subr.mxu0 0.0
    %321 = vmatpush1.xpose.msra.mxu0 0.0
    %322 = vmatprep.subr.mxu0 0.0
    %323 = vmatpush1.xpose.msra.mxu0 0.0
    %324 = vmatprep.subr.mxu0 0.0
    %325 = vmatpush1.xpose.msra.mxu0 0.0
    %326 = vmatprep.subr.mxu0 0.0
    %327 = vmatpush1.xpose.msra.mxu0 0.0
    %328 = vmatprep.subr.mxu0 0.0
    %329 = vmatpush1.xpose.msra.mxu0 0.0
    %330 = vmatprep.subr.mxu0 0.0
    %331 = vmatpush1.xpose.msra.mxu0 0.0
    %332 = vmatprep.subr.mxu0 0.0
    %333 = vmatpush1.xpose.msra.mxu0 0.0
    %334 = vmatprep.subr.mxu0 0.0
    %335 = vmatpush1.xpose.msra.mxu0 0.0
    %336 = vmatprep.subr.mxu0 0.0
    %337 = vmatpush1.xpose.msra.mxu0 0.0
    %338 = vmatprep.subr.mxu0 0.0
    %339 = vmatpush1.xpose.msra.mxu0 0.0
    %340 = vmatprep.subr.mxu0 0.0
    %341 = vmatpush1.xpose.msra.mxu0 0.0
    %342 = vmatprep.subr.mxu0 0.0
    %343 = vmatpush1.xpose.msra.mxu0 %v310
    %344 = vmatprep.subr.mxu0 0.0
    %345 = vmatpush2.xpose.msra.mxu0 0.0
    %346 = vmatprep.subr.mxu0 0.0
    %347 = vmatpush2.xpose.msra.mxu0 0.0
    %348 = vmatprep.subr.mxu0 0.0
    %349 = vmatpush2.xpose.msra.mxu0 0.0
    %350 = vmatprep.subr.mxu0 0.0
    %351 = vmatpush2.xpose.msra.mxu0 0.0
    %352 = vmatprep.subr.mxu0 0.0
    %353 = vmatpush2.xpose.msra.mxu0 0.0
    %354 = vmatprep.subr.mxu0 0.0
    %355 = vmatpush2.xpose.msra.mxu0 0.0
    %356 = vmatprep.subr.mxu0 0.0
    %357 = vmatpush2.xpose.msra.mxu0 0.0
    %358 = vmatprep.subr.mxu0 0.0
    %359 = vmatpush2.xpose.msra.mxu0 0.0
    %360 = vmatprep.subr.mxu0 0.0
    %361 = vmatpush2.xpose.msra.mxu0 0.0
    %362 = vmatprep.subr.mxu0 0.0
    %363 = vmatpush2.xpose.msra.mxu0 0.0
    %364 = vmatprep.subr.mxu0 0.0
    %365 = vmatpush2.xpose.msra.mxu0 0.0
    %366 = vmatprep.subr.mxu0 0.0
    %367 = vmatpush2.xpose.msra.mxu0 0.0
    %368 = vmatprep.subr.mxu0 0.0
    %369 = vmatpush2.xpose.msra.mxu0 0.0
    %370 = vmatprep.subr.mxu0 0.0
    %371 = vmatpush2.xpose.msra.mxu0 0.0
    %372 = vmatprep.subr.mxu0 0.0
    %373 = vmatpush2.xpose.msra.mxu0 0.0
    %374 = vmatprep.subr.mxu0 0.0
    %375 = vmatpush2.xpose.msra.mxu0 0.0
    %376 = vmatprep.mubr.f32.mxu0 0.0
    %377 = vmatmul.mubr.f32.gmra.mxu0 %v308
    %v378 = vpop.f32.mrf.mxu0
    %v379 = vadd.f32 0.0, %v378
    %v380 = vpop.f32.mrf.mxu0
    %381 = vdwg.mxu0
    %v382 = vmul.f32 %v379, 0.17677669
    %v383 = vadd.f32 %v382, %v172
    %v384 = vsel %vm307, %v383, -inf
    %385 = vmax.xlane.f32.xlu0 %v384
    %v386 = vpop.xlane.xlu0 %385
    %v387 = vsub.f32 %v383, %v386
    %v388 = vmul.f32 %v387, 1.442695
    %v389 = vpow.pop %v388
    %v390 = vsel %vm307, %v389, 0.0
    %391 = vadd.xlane.f32.xlu0 %v390
    %v392 = vpop.xlane.xlu0 %391
    %v393 = vrcp.pop %v392
    %v394 = vmul.f32 %v392, %v393
    %v395 = vsub.f32 2.0, %v394
    %v396 = vmul.f32 %v393, %v395
    %v397 = vmul.f32 %v389, %v396
    %398 = vrot.lane.b32.xlu0 %v296, 64
    %v399 = vpop.permute.xlu0 %398
    %v402 = vsel %vm307, %v397, 0
    %404 = vmatprep.subr.mxu0 0.0
    %405 = vmatpush1.msra.mxu0 0.0
    %406 = vmatprep.subr.mxu0 0.0
    %407 = vmatpush1.msra.mxu0 0.0
    %408 = vmatprep.subr.mxu0 0.0
    %409 = vmatpush1.msra.mxu0 0.0
    %410 = vmatprep.subr.mxu0 0.0
    %411 = vmatpush1.msra.mxu0 0.0
    %412 = vmatprep.subr.mxu0 0.0
    %413 = vmatpush1.msra.mxu0 0.0
    %414 = vmatprep.subr.mxu0 0.0
    %415 = vmatpush1.msra.mxu0 0.0
    %416 = vmatprep.subr.mxu0 0.0
    %417 = vmatpush1.msra.mxu0 0.0
    %418 = vmatprep.subr.mxu0 0.0
    %419 = vmatpush1.msra.mxu0 0.0
    %420 = vmatprep.subr.mxu0 0.0
    %421 = vmatpush1.msra.mxu0 0.0
    %422 = vmatprep.subr.mxu0 0.0
    %423 = vmatpush1.msra.mxu0 0.0
    %424 = vmatprep.subr.mxu0 0.0
    %425 = vmatpush1.msra.mxu0 0.0
    %426 = vmatprep.subr.mxu0 0.0
    %427 = vmatpush1.msra.mxu0 0.0
    %428 = vmatprep.subr.mxu0 0.0
    %429 = vmatpush1.msra.mxu0 0.0
    %430 = vmatprep.subr.mxu0 0.0
    %431 = vmatpush1.msra.mxu0 0.0
    %432 = vmatprep.subr.mxu0 0.0
    %433 = vmatpush1.msra.mxu0 0.0
    %434 = vmatprep.subr.mxu0 0.0
    %435 = vmatpush1.msra.mxu0 %v399
    %436 = vmatprep.subr.mxu0 0.0
    %437 = vmatpush2.msra.mxu0 0.0
    %438 = vmatprep.subr.mxu0 0.0
    %439 = vmatpush2.msra.mxu0 0.0
    %440 = vmatprep.subr.mxu0 0.0
    %441 = vmatpush2.msra.mxu0 0.0
    %442 = vmatprep.subr.mxu0 0.0
    %443 = vmatpush2.msra.mxu0 0.0
    %444 = vmatprep.subr.mxu0 0.0
    %445 = vmatpush2.msra.mxu0 0.0
    %446 = vmatprep.subr.mxu0 0.0
    %447 = vmatpush2.msra.mxu0 0.0
    %448 = vmatprep.subr.mxu0 0.0
    %449 = vmatpush2.msra.mxu0 0.0
    %450 = vmatprep.subr.mxu0 0.0
    %451 = vmatpush2.msra.mxu0 0.0
    %452 = vmatprep.subr.mxu0 0.0
    %453 = vmatpush2.msra.mxu0 0.0
    %454 = vmatprep.subr.mxu0 0.0
    %455 = vmatpush2.msra.mxu0 0.0
    %456 = vmatprep.subr.mxu0 0.0
    %457 = vmatpush2.msra.mxu0 0.0
    %458 = vmatprep.subr.mxu0 0.0
    %459 = vmatpush2.msra.mxu0 0.0
    %460 = vmatprep.subr.mxu0 0.0
    %461 = vmatpush2.msra.mxu0 0.0
    %462 = vmatprep.subr.mxu0 0.0
    %463 = vmatpush2.msra.mxu0 0.0
    %464 = vmatprep.subr.mxu0 0.0
    %465 = vmatpush2.msra.mxu0 0.0
    %466 = vmatprep.subr.mxu0 0.0
    %467 = vmatpush2.msra.mxu0 0.0
    %468 = vmatprep.mubr.f32.mxu0 0.0
    %469 = vmatmul.mubr.f32.gmra.mxu0 %v402
    %v470 = vpop.f32.mrf.mxu0
    %v471 = vadd.f32 0.0, %v470
    %v472 = vpop.f32.mrf.mxu0
    %473 = vdwg.mxu0
    %474 = vst.msk [vmem:[#allocation2] sm:$0xff] %vm307, %v471
    %475 = vrot.lane.b32.xlu0 %v296, 120
    %v476 = vpop.permute.xlu0 %475
    %477 = vrot.lane.b32.xlu0 %v296, 88
    %v478 = vpop.permute.xlu0 %477
    %v479 = vsel %vm307, %v476, 0
    %v481 = vsel %vm307, %v478, 0
    %483 = vmatprep.subr.mxu0 0.0
    %484 = vmatpush1.xpose.msra.mxu0 0.0
    %485 = vmatprep.subr.mxu0 0.0
    %486 = vmatpush1.xpose.msra.mxu0 0.0
    %487 = vmatprep.subr.mxu0 0.0
    %488 = vmatpush1.xpose.msra.mxu0 0.0
    %489 = vmatprep.subr.mxu0 0.0
    %490 = vmatpush1.xpose.msra.mxu0 0.0
    %491 = vmatprep.subr.mxu0 0.0
    %492 = vmatpush1.xpose.msra.mxu0 0.0
    %493 = vmatprep.subr.mxu0 0.0
    %494 = vmatpush1.xpose.msra.mxu0 0.0
    %495 = vmatprep.subr.mxu0 0.0
    %496 = vmatpush1.xpose.msra.mxu0 0.0
    %497 = vmatprep.subr.mxu0 0.0
    %498 = vmatpush1.xpose.msra.mxu0 0.0
    %499 = vmatprep.subr.mxu0 0.0
    %500 = vmatpush1.xpose.msra.mxu0 0.0
    %501 = vmatprep.subr.mxu0 0.0
    %502 = vmatpush1.xpose.msra.mxu0 0.0
    %503 = vmatprep.subr.mxu0 0.0
    %504 = vmatpush1.xpose.msra.mxu0 0.0
    %505 = vmatprep.subr.mxu0 0.0
    %506 = vmatpush1.xpose.msra.mxu0 0.0
    %507 = vmatprep.subr.mxu0 0.0
    %508 = vmatpush1.xpose.msra.mxu0 0.0
    %509 = vmatprep.subr.mxu0 0.0
    %510 = vmatpush1.xpose.msra.mxu0 0.0
    %511 = vmatprep.subr.mxu0 0.0
    %512 = vmatpush1.xpose.msra.mxu0 0.0
    %513 = vmatprep.subr.mxu0 0.0
    %514 = vmatpush1.xpose.msra.mxu0 %v481
    %515 = vmatprep.subr.mxu0 0.0
    %516 = vmatpush2.xpose.msra.mxu0 0.0
    %517 = vmatprep.subr.mxu0 0.0
    %518 = vmatpush2.xpose.msra.mxu0 0.0
    %519 = vmatprep.subr.mxu0 0.0
    %520 = vmatpush2.xpose.msra.mxu0 0.0
    %521 = vmatprep.subr.mxu0 0.0
    %522 = vmatpush2.xpose.msra.mxu0 0.0
    %523 = vmatprep.subr.mxu0 0.0
    %524 = vmatpush2.xpose.msra.mxu0 0.0
    %525 = vmatprep.subr.mxu0 0.0
    %526 = vmatpush2.xpose.msra.mxu0 0.0
    %527 = vmatprep.subr.mxu0 0.0
    %528 = vmatpush2.xpose.msra.mxu0 0.0
    %529 = vmatprep.subr.mxu0 0.0
    %530 = vmatpush2.xpose.msra.mxu0 0.0
    %531 = vmatprep.subr.mxu0 0.0
    %532 = vmatpush2.xpose.msra.mxu0 0.0
    %533 = vmatprep.subr.mxu0 0.0
    %534 = vmatpush2.xpose.msra.mxu0 0.0
    %535 = vmatprep.subr.mxu0 0.0
    %536 = vmatpush2.xpose.msra.mxu0 0.0
    %537 = vmatprep.subr.mxu0 0.0
    %538 = vmatpush2.xpose.msra.mxu0 0.0
    %539 = vmatprep.subr.mxu0 0.0
    %540 = vmatpush2.xpose.msra.mxu0 0.0
    %541 = vmatprep.subr.mxu0 0.0
    %542 = vmatpush2.xpose.msra.mxu0 0.0
    %543 = vmatprep.subr.mxu0 0.0
    %544 = vmatpush2.xpose.msra.mxu0 0.0
    %545 = vmatprep.subr.mxu0 0.0
    %546 = vmatpush2.xpose.msra.mxu0 0.0
    %547 = vmatprep.mubr.f32.mxu0 0.0
    %548 = vmatmul.mubr.f32.gmra.mxu0 %v479
    %v549 = vpop.f32.mrf.mxu0
    %v550 = vadd.f32 0.0, %v549
    %v551 = vpop.f32.mrf.mxu0
    %552 = vdwg.mxu0
    %v553 = vmul.f32 %v550, 0.17677669
    %v554 = vadd.f32 %v553, %v172
    %v555 = vsel %vm307, %v554, -inf
    %556 = vmax.xlane.f32.xlu0 %v555
    %v557 = vpop.xlane.xlu0 %556
    %v558 = vsub.f32 %v554, %v557
    %v559 = vmul.f32 %v558, 1.442695
    %v560 = vpow.pop %v559
    %v561 = vsel %vm307, %v560, 0.0
    %562 = vadd.xlane.f32.xlu0 %v561
    %v563 = vpop.xlane.xlu0 %562
    %v564 = vrcp.pop %v563
    %v565 = vmul.f32 %v563, %v564
    %v566 = vsub.f32 2.0, %v565
    %v567 = vmul.f32 %v564, %v566
    %v568 = vmul.f32 %v560, %v567
    %569 = vrot.lane.b32.xlu0 %v296, 56
    %v570 = vpop.permute.xlu0 %569
    %v573 = vsel %vm307, %v568, 0
    %575 = vmatprep.subr.mxu0 0.0
    %576 = vmatpush1.msra.mxu0 0.0
    %577 = vmatprep.subr.mxu0 0.0
    %578 = vmatpush1.msra.mxu0 0.0
    %579 = vmatprep.subr.mxu0 0.0
    %580 = vmatpush1.msra.mxu0 0.0
    %581 = vmatprep.subr.mxu0 0.0
    %582 = vmatpush1.msra.mxu0 0.0
    %583 = vmatprep.subr.mxu0 0.0
    %584 = vmatpush1.msra.mxu0 0.0
    %585 = vmatprep.subr.mxu0 0.0
    %586 = vmatpush1.msra.mxu0 0.0
    %587 = vmatprep.subr.mxu0 0.0
    %588 = vmatpush1.msra.mxu0 0.0
    %589 = vmatprep.subr.mxu0 0.0
    %590 = vmatpush1.msra.mxu0 0.0
    %591 = vmatprep.subr.mxu0 0.0
    %592 = vmatpush1.msra.mxu0 0.0
    %593 = vmatprep.subr.mxu0 0.0
    %594 = vmatpush1.msra.mxu0 0.0
    %595 = vmatprep.subr.mxu0 0.0
    %596 = vmatpush1.msra.mxu0 0.0
    %597 = vmatprep.subr.mxu0 0.0
    %598 = vmatpush1.msra.mxu0 0.0
    %599 = vmatprep.subr.mxu0 0.0
    %600 = vmatpush1.msra.mxu0 0.0
    %601 = vmatprep.subr.mxu0 0.0
    %602 = vmatpush1.msra.mxu0 0.0
    %603 = vmatprep.subr.mxu0 0.0
    %604 = vmatpush1.msra.mxu0 0.0
    %605 = vmatprep.subr.mxu0 0.0
    %606 = vmatpush1.msra.mxu0 %v570
    %607 = vmatprep.subr.mxu0 0.0
    %608 = vmatpush2.msra.mxu0 0.0
    %609 = vmatprep.subr.mxu0 0.0
    %610 = vmatpush2.msra.mxu0 0.0
    %611 = vmatprep.subr.mxu0 0.0
    %612 = vmatpush2.msra.mxu0 0.0
    %613 = vmatprep.subr.mxu0 0.0
    %614 = vmatpush2.msra.mxu0 0.0
    %615 = vmatprep.subr.mxu0 0.0
    %616 = vmatpush2.msra.mxu0 0.0
    %617 = vmatprep.subr.mxu0 0.0
    %618 = vmatpush2.msra.mxu0 0.0
    %619 = vmatprep.subr.mxu0 0.0
    %620 = vmatpush2.msra.mxu0 0.0
    %621 = vmatprep.subr.mxu0 0.0
    %622 = vmatpush2.msra.mxu0 0.0
    %623 = vmatprep.subr.mxu0 0.0
    %624 = vmatpush2.msra.mxu0 0.0
    %625 = vmatprep.subr.mxu0 0.0
    %626 = vmatpush2.msra.mxu0 0.0
    %627 = vmatprep.subr.mxu0 0.0
    %628 = vmatpush2.msra.mxu0 0.0
    %629 = vmatprep.subr.mxu0 0.0
    %630 = vmatpush2.msra.mxu0 0.0
    %631 = vmatprep.subr.mxu0 0.0
    %632 = vmatpush2.msra.mxu0 0.0
    %633 = vmatprep.subr.mxu0 0.0
    %634 = vmatpush2.msra.mxu0 0.0
    %635 = vmatprep.subr.mxu0 0.0
    %636 = vmatpush2.msra.mxu0 0.0
    %637 = vmatprep.subr.mxu0 0.0
    %638 = vmatpush2.msra.mxu0 0.0
    %639 = vmatprep.mubr.f32.mxu0 0.0
    %640 = vmatmul.mubr.f32.gmra.mxu0 %v573
    %v641 = vpop.f32.mrf.mxu0
    %v642 = vadd.f32 0.0, %v641
    %v643 = vpop.f32.mrf.mxu0
    %644 = vdwg.mxu0
    %646 = vrot.lane.b32.xlu0 %v642, 8
    %v647 = vpop.permute.xlu0 %646
    %vm649 = vcmask 130112
    %650 = vst.msk [vmem:[#allocation2] sm:$0xff] %vm649, %v647
    %651 = vrot.lane.b32.xlu0 %v296, 112
    %v652 = vpop.permute.xlu0 %651
    %653 = vrot.lane.b32.xlu0 %v296, 80
    %v654 = vpop.permute.xlu0 %653
    %v655 = vsel %vm307, %v652, 0
    %v657 = vsel %vm307, %v654, 0
    %659 = vmatprep.subr.mxu0 0.0
    %660 = vmatpush1.xpose.msra.mxu0 0.0
    %661 = vmatprep.subr.mxu0 0.0
    %662 = vmatpush1.xpose.msra.mxu0 0.0
    %663 = vmatprep.subr.mxu0 0.0
    %664 = vmatpush1.xpose.msra.mxu0 0.0
    %665 = vmatprep.subr.mxu0 0.0
    %666 = vmatpush1.xpose.msra.mxu0 0.0
    %667 = vmatprep.subr.mxu0 0.0
    %668 = vmatpush1.xpose.msra.mxu0 0.0
    %669 = vmatprep.subr.mxu0 0.0
    %670 = vmatpush1.xpose.msra.mxu0 0.0
    %671 = vmatprep.subr.mxu0 0.0
    %672 = vmatpush1.xpose.msra.mxu0 0.0
    %673 = vmatprep.subr.mxu0 0.0
    %674 = vmatpush1.xpose.msra.mxu0 0.0
    %675 = vmatprep.subr.mxu0 0.0
    %676 = vmatpush1.xpose.msra.mxu0 0.0
    %677 = vmatprep.subr.mxu0 0.0
    %678 = vmatpush1.xpose.msra.mxu0 0.0
    %679 = vmatprep.subr.mxu0 0.0
    %680 = vmatpush1.xpose.msra.mxu0 0.0
    %681 = vmatprep.subr.mxu0 0.0
    %682 = vmatpush1.xpose.msra.mxu0 0.0
    %683 = vmatprep.subr.mxu0 0.0
    %684 = vmatpush1.xpose.msra.mxu0 0.0
    %685 = vmatprep.subr.mxu0 0.0
    %686 = vmatpush1.xpose.msra.mxu0 0.0
    %687 = vmatprep.subr.mxu0 0.0
    %688 = vmatpush1.xpose.msra.mxu0 0.0
    %689 = vmatprep.subr.mxu0 0.0
    %690 = vmatpush1.xpose.msra.mxu0 %v657
    %691 = vmatprep.subr.mxu0 0.0
    %692 = vmatpush2.xpose.msra.mxu0 0.0
    %693 = vmatprep.subr.mxu0 0.0
    %694 = vmatpush2.xpose.msra.mxu0 0.0
    %695 = vmatprep.subr.mxu0 0.0
    %696 = vmatpush2.xpose.msra.mxu0 0.0
    %697 = vmatprep.subr.mxu0 0.0
    %698 = vmatpush2.xpose.msra.mxu0 0.0
    %699 = vmatprep.subr.mxu0 0.0
    %700 = vmatpush2.xpose.msra.mxu0 0.0
    %701 = vmatprep.subr.mxu0 0.0
    %702 = vmatpush2.xpose.msra.mxu0 0.0
    %703 = vmatprep.subr.mxu0 0.0
    %704 = vmatpush2.xpose.msra.mxu0 0.0
    %705 = vmatprep.subr.mxu0 0.0
    %706 = vmatpush2.xpose.msra.mxu0 0.0
    %707 = vmatprep.subr.mxu0 0.0
    %708 = vmatpush2.xpose.msra.mxu0 0.0
    %709 = vmatprep.subr.mxu0 0.0
    %710 = vmatpush2.xpose.msra.mxu0 0.0
    %711 = vmatprep.subr.mxu0 0.0
    %712 = vmatpush2.xpose.msra.mxu0 0.0
    %713 = vmatprep.subr.mxu0 0.0
    %714 = vmatpush2.xpose.msra.mxu0 0.0
    %715 = vmatprep.subr.mxu0 0.0
    %716 = vmatpush2.xpose.msra.mxu0 0.0
    %717 = vmatprep.subr.mxu0 0.0
    %718 = vmatpush2.xpose.msra.mxu0 0.0
    %719 = vmatprep.subr.mxu0 0.0
    %720 = vmatpush2.xpose.msra.mxu0 0.0
    %721 = vmatprep.subr.mxu0 0.0
    %722 = vmatpush2.xpose.msra.mxu0 0.0
    %723 = vmatprep.mubr.f32.mxu0 0.0
    %724 = vmatmul.mubr.f32.gmra.mxu0 %v655
    %v725 = vpop.f32.mrf.mxu0
    %v726 = vadd.f32 0.0, %v725
    %v727 = vpop.f32.mrf.mxu0
    %728 = vdwg.mxu0
    %v729 = vmul.f32 %v726, 0.17677669
    %v730 = vadd.f32 %v729, %v172
    %v731 = vsel %vm307, %v730, -inf
    %732 = vmax.xlane.f32.xlu0 %v731
    %v733 = vpop.xlane.xlu0 %732
    %v734 = vsub.f32 %v730, %v733
    %v735 = vmul.f32 %v734, 1.442695
    %v736 = vpow.pop %v735
    %v737 = vsel %vm307, %v736, 0.0
    %738 = vadd.xlane.f32.xlu0 %v737
    %v739 = vpop.xlane.xlu0 %738
    %v740 = vrcp.pop %v739
    %v741 = vmul.f32 %v739, %v740
    %v742 = vsub.f32 2.0, %v741
    %v743 = vmul.f32 %v740, %v742
    %v744 = vmul.f32 %v736, %v743
    %745 = vrot.lane.b32.xlu0 %v296, 48
    %v746 = vpop.permute.xlu0 %745
    %v749 = vsel %vm307, %v744, 0
    %751 = vmatprep.subr.mxu0 0.0
    %752 = vmatpush1.msra.mxu0 0.0
    %753 = vmatprep.subr.mxu0 0.0
    %754 = vmatpush1.msra.mxu0 0.0
    %755 = vmatprep.subr.mxu0 0.0
    %756 = vmatpush1.msra.mxu0 0.0
    %757 = vmatprep.subr.mxu0 0.0
    %758 = vmatpush1.msra.mxu0 0.0
    %759 = vmatprep.subr.mxu0 0.0
    %760 = vmatpush1.msra.mxu0 0.0
    %761 = vmatprep.subr.mxu0 0.0
    %762 = vmatpush1.msra.mxu0 0.0
    %763 = vmatprep.subr.mxu0 0.0
    %764 = vmatpush1.msra.mxu0 0.0
    %765 = vmatprep.subr.mxu0 0.0
    %766 = vmatpush1.msra.mxu0 0.0
    %767 = vmatprep.subr.mxu0 0.0
    %768 = vmatpush1.msra.mxu0 0.0
    %769 = vmatprep.subr.mxu0 0.0
    %770 = vmatpush1.msra.mxu0 0.0
    %771 = vmatprep.subr.mxu0 0.0
    %772 = vmatpush1.msra.mxu0 0.0
    %773 = vmatprep.subr.mxu0 0.0
    %774 = vmatpush1.msra.mxu0 0.0
    %775 = vmatprep.subr.mxu0 0.0
    %776 = vmatpush1.msra.mxu0 0.0
    %777 = vmatprep.subr.mxu0 0.0
    %778 = vmatpush1.msra.mxu0 0.0
    %779 = vmatprep.subr.mxu0 0.0
    %780 = vmatpush1.msra.mxu0 0.0
    %781 = vmatprep.subr.mxu0 0.0
    %782 = vmatpush1.msra.mxu0 %v746
    %783 = vmatprep.subr.mxu0 0.0
    %784 = vmatpush2.msra.mxu0 0.0
    %785 = vmatprep.subr.mxu0 0.0
    %786 = vmatpush2.msra.mxu0 0.0
    %787 = vmatprep.subr.mxu0 0.0
    %788 = vmatpush2.msra.mxu0 0.0
    %789 = vmatprep.subr.mxu0 0.0
    %790 = vmatpush2.msra.mxu0 0.0
    %791 = vmatprep.subr.mxu0 0.0
    %792 = vmatpush2.msra.mxu0 0.0
    %793 = vmatprep.subr.mxu0 0.0
    %794 = vmatpush2.msra.mxu0 0.0
    %795 = vmatprep.subr.mxu0 0.0
    %796 = vmatpush2.msra.mxu0 0.0
    %797 = vmatprep.subr.mxu0 0.0
    %798 = vmatpush2.msra.mxu0 0.0
    %799 = vmatprep.subr.mxu0 0.0
    %800 = vmatpush2.msra.mxu0 0.0
    %801 = vmatprep.subr.mxu0 0.0
    %802 = vmatpush2.msra.mxu0 0.0
    %803 = vmatprep.subr.mxu0 0.0
    %804 = vmatpush2.msra.mxu0 0.0
    %805 = vmatprep.subr.mxu0 0.0
    %806 = vmatpush2.msra.mxu0 0.0
    %807 = vmatprep.subr.mxu0 0.0
    %808 = vmatpush2.msra.mxu0 0.0
    %809 = vmatprep.subr.mxu0 0.0
    %810 = vmatpush2.msra.mxu0 0.0
    %811 = vmatprep.subr.mxu0 0.0
    %812 = vmatpush2.msra.mxu0 0.0
    %813 = vmatprep.subr.mxu0 0.0
    %814 = vmatpush2.msra.mxu0 0.0
    %815 = vmatprep.mubr.f32.mxu0 0.0
    %816 = vmatmul.mubr.f32.gmra.mxu0 %v749
    %v817 = vpop.f32.mrf.mxu0
    %v818 = vadd.f32 0.0, %v817
    %v819 = vpop.f32.mrf.mxu0
    %820 = vdwg.mxu0
    %822 = vrot.lane.b32.xlu0 %v818, 16
    %v823 = vpop.permute.xlu0 %822
    %vm825 = vcmask 195712
    %826 = vst.msk [vmem:[#allocation2] sm:$0xff] %vm825, %v823
    %827 = vrot.lane.b32.xlu0 %v296, 104
    %v828 = vpop.permute.xlu0 %827
    %829 = vrot.lane.b32.xlu0 %v296, 72
    %v830 = vpop.permute.xlu0 %829
    %v831 = vsel %vm307, %v828, 0
    %v833 = vsel %vm307, %v830, 0
    %835 = vmatprep.subr.mxu0 0.0
    %836 = vmatpush1.xpose.msra.mxu0 0.0
    %837 = vmatprep.subr.mxu0 0.0
    %838 = vmatpush1.xpose.msra.mxu0 0.0
    %839 = vmatprep.subr.mxu0 0.0
    %840 = vmatpush1.xpose.msra.mxu0 0.0
    %841 = vmatprep.subr.mxu0 0.0
    %842 = vmatpush1.xpose.msra.mxu0 0.0
    %843 = vmatprep.subr.mxu0 0.0
    %844 = vmatpush1.xpose.msra.mxu0 0.0
    %845 = vmatprep.subr.mxu0 0.0
    %846 = vmatpush1.xpose.msra.mxu0 0.0
    %847 = vmatprep.subr.mxu0 0.0
    %848 = vmatpush1.xpose.msra.mxu0 0.0
    %849 = vmatprep.subr.mxu0 0.0
    %850 = vmatpush1.xpose.msra.mxu0 0.0
    %851 = vmatprep.subr.mxu0 0.0
    %852 = vmatpush1.xpose.msra.mxu0 0.0
    %853 = vmatprep.subr.mxu0 0.0
    %854 = vmatpush1.xpose.msra.mxu0 0.0
    %855 = vmatprep.subr.mxu0 0.0
    %856 = vmatpush1.xpose.msra.mxu0 0.0
    %857 = vmatprep.subr.mxu0 0.0
    %858 = vmatpush1.xpose.msra.mxu0 0.0
    %859 = vmatprep.subr.mxu0 0.0
    %860 = vmatpush1.xpose.msra.mxu0 0.0
    %861 = vmatprep.subr.mxu0 0.0
    %862 = vmatpush1.xpose.msra.mxu0 0.0
    %863 = vmatprep.subr.mxu0 0.0
    %864 = vmatpush1.xpose.msra.mxu0 0.0
    %865 = vmatprep.subr.mxu0 0.0
    %866 = vmatpush1.xpose.msra.mxu0 %v833
    %867 = vmatprep.subr.mxu0 0.0
    %868 = vmatpush2.xpose.msra.mxu0 0.0
    %869 = vmatprep.subr.mxu0 0.0
    %870 = vmatpush2.xpose.msra.mxu0 0.0
    %871 = vmatprep.subr.mxu0 0.0
    %872 = vmatpush2.xpose.msra.mxu0 0.0
    %873 = vmatprep.subr.mxu0 0.0
    %874 = vmatpush2.xpose.msra.mxu0 0.0
    %875 = vmatprep.subr.mxu0 0.0
    %876 = vmatpush2.xpose.msra.mxu0 0.0
    %877 = vmatprep.subr.mxu0 0.0
    %878 = vmatpush2.xpose.msra.mxu0 0.0
    %879 = vmatprep.subr.mxu0 0.0
    %880 = vmatpush2.xpose.msra.mxu0 0.0
    %881 = vmatprep.subr.mxu0 0.0
    %882 = vmatpush2.xpose.msra.mxu0 0.0
    %883 = vmatprep.subr.mxu0 0.0
    %884 = vmatpush2.xpose.msra.mxu0 0.0
    %885 = vmatprep.subr.mxu0 0.0
    %886 = vmatpush2.xpose.msra.mxu0 0.0
    %887 = vmatprep.subr.mxu0 0.0
    %888 = vmatpush2.xpose.msra.mxu0 0.0
    %889 = vmatprep.subr.mxu0 0.0
    %890 = vmatpush2.xpose.msra.mxu0 0.0
    %891 = vmatprep.subr.mxu0 0.0
    %892 = vmatpush2.xpose.msra.mxu0 0.0
    %893 = vmatprep.subr.mxu0 0.0
    %894 = vmatpush2.xpose.msra.mxu0 0.0
    %895 = vmatprep.subr.mxu0 0.0
    %896 = vmatpush2.xpose.msra.mxu0 0.0
    %897 = vmatprep.subr.mxu0 0.0
    %898 = vmatpush2.xpose.msra.mxu0 0.0
    %899 = vmatprep.mubr.f32.mxu0 0.0
    %900 = vmatmul.mubr.f32.gmra.mxu0 %v831
    %v901 = vpop.f32.mrf.mxu0
    %v902 = vadd.f32 0.0, %v901
    %v903 = vpop.f32.mrf.mxu0
    %904 = vdwg.mxu0
    %v905 = vmul.f32 %v902, 0.17677669
    %v906 = vadd.f32 %v905, %v172
    %v907 = vsel %vm307, %v906, -inf
    %908 = vmax.xlane.f32.xlu0 %v907
    %v909 = vpop.xlane.xlu0 %908
    %v910 = vsub.f32 %v906, %v909
    %v911 = vmul.f32 %v910, 1.442695
    %v912 = vpow.pop %v911
    %v913 = vsel %vm307, %v912, 0.0
    %914 = vadd.xlane.f32.xlu0 %v913
    %v915 = vpop.xlane.xlu0 %914
    %v916 = vrcp.pop %v915
    %v917 = vmul.f32 %v915, %v916
    %v918 = vsub.f32 2.0, %v917
    %v919 = vmul.f32 %v916, %v918
    %v920 = vmul.f32 %v912, %v919
    %921 = vrot.lane.b32.xlu0 %v296, 40
    %v922 = vpop.permute.xlu0 %921
    %v925 = vsel %vm307, %v920, 0
    %927 = vmatprep.subr.mxu0 0.0
    %928 = vmatpush1.msra.mxu0 0.0
    %929 = vmatprep.subr.mxu0 0.0
    %930 = vmatpush1.msra.mxu0 0.0
    %931 = vmatprep.subr.mxu0 0.0
    %932 = vmatpush1.msra.mxu0 0.0
    %933 = vmatprep.subr.mxu0 0.0
    %934 = vmatpush1.msra.mxu0 0.0
    %935 = vmatprep.subr.mxu0 0.0
    %936 = vmatpush1.msra.mxu0 0.0
    %937 = vmatprep.subr.mxu0 0.0
    %938 = vmatpush1.msra.mxu0 0.0
    %939 = vmatprep.subr.mxu0 0.0
    %940 = vmatpush1.msra.mxu0 0.0
    %941 = vmatprep.subr.mxu0 0.0
    %942 = vmatpush1.msra.mxu0 0.0
    %943 = vmatprep.subr.mxu0 0.0
    %944 = vmatpush1.msra.mxu0 0.0
    %945 = vmatprep.subr.mxu0 0.0
    %946 = vmatpush1.msra.mxu0 0.0
    %947 = vmatprep.subr.mxu0 0.0
    %948 = vmatpush1.msra.mxu0 0.0
    %949 = vmatprep.subr.mxu0 0.0
    %950 = vmatpush1.msra.mxu0 0.0
    %951 = vmatprep.subr.mxu0 0.0
    %952 = vmatpush1.msra.mxu0 0.0
    %953 = vmatprep.subr.mxu0 0.0
    %954 = vmatpush1.msra.mxu0 0.0
    %955 = vmatprep.subr.mxu0 0.0
    %956 = vmatpush1.msra.mxu0 0.0
    %957 = vmatprep.subr.mxu0 0.0
    %958 = vmatpush1.msra.mxu0 %v922
    %959 = vmatprep.subr.mxu0 0.0
    %960 = vmatpush2.msra.mxu0 0.0
    %961 = vmatprep.subr.mxu0 0.0
    %962 = vmatpush2.msra.mxu0 0.0
    %963 = vmatprep.subr.mxu0 0.0
    %964 = vmatpush2.msra.mxu0 0.0
    %965 = vmatprep.subr.mxu0 0.0
    %966 = vmatpush2.msra.mxu0 0.0
    %967 = vmatprep.subr.mxu0 0.0
    %968 = vmatpush2.msra.mxu0 0.0
    %969 = vmatprep.subr.mxu0 0.0
    %970 = vmatpush2.msra.mxu0 0.0
    %971 = vmatprep.subr.mxu0 0.0
    %972 = vmatpush2.msra.mxu0 0.0
    %973 = vmatprep.subr.mxu0 0.0
    %974 = vmatpush2.msra.mxu0 0.0
    %975 = vmatprep.subr.mxu0 0.0
    %976 = vmatpush2.msra.mxu0 0.0
    %977 = vmatprep.subr.mxu0 0.0
    %978 = vmatpush2.msra.mxu0 0.0
    %979 = vmatprep.subr.mxu0 0.0
    %980 = vmatpush2.msra.mxu0 0.0
    %981 = vmatprep.subr.mxu0 0.0
    %982 = vmatpush2.msra.mxu0 0.0
    %983 = vmatprep.subr.mxu0 0.0
    %984 = vmatpush2.msra.mxu0 0.0
    %985 = vmatprep.subr.mxu0 0.0
    %986 = vmatpush2.msra.mxu0 0.0
    %987 = vmatprep.subr.mxu0 0.0
    %988 = vmatpush2.msra.mxu0 0.0
    %989 = vmatprep.subr.mxu0 0.0
    %990 = vmatpush2.msra.mxu0 0.0
    %991 = vmatprep.mubr.f32.mxu0 0.0
    %992 = vmatmul.mubr.f32.gmra.mxu0 %v925
    %v993 = vpop.f32.mrf.mxu0
    %v994 = vadd.f32 0.0, %v993
    %v995 = vpop.f32.mrf.mxu0
    %996 = vdwg.mxu0
    %998 = vrot.lane.b32.xlu0 %v994, 24
    %v999 = vpop.permute.xlu0 %998
    %vm1001 = vcmask 261312
    %1002 = vst.msk [vmem:[#allocation2] sm:$0xff] %vm1001, %v999
    %1004 = vrot.lane.b32.xlu0 %v301, 96
    %v1005 = vpop.permute.xlu0 %1004
    %v1006 = vsel %vm307, %v301, 0
    %v1008 = vsel %vm307, %v1005, 0
    %1010 = vmatprep.subr.mxu0 0.0
    %1011 = vmatpush1.xpose.msra.mxu0 0.0
    %1012 = vmatprep.subr.mxu0 0.0
    %1013 = vmatpush1.xpose.msra.mxu0 0.0
    %1014 = vmatprep.subr.mxu0 0.0
    %1015 = vmatpush1.xpose.msra.mxu0 0.0
    %1016 = vmatprep.subr.mxu0 0.0
    %1017 = vmatpush1.xpose.msra.mxu0 0.0
    %1018 = vmatprep.subr.mxu0 0.0
    %1019 = vmatpush1.xpose.msra.mxu0 0.0
    %1020 = vmatprep.subr.mxu0 0.0
    %1021 = vmatpush1.xpose.msra.mxu0 0.0
    %1022 = vmatprep.subr.mxu0 0.0
    %1023 = vmatpush1.xpose.msra.mxu0 0.0
    %1024 = vmatprep.subr.mxu0 0.0
    %1025 = vmatpush1.xpose.msra.mxu0 0.0
    %1026 = vmatprep.subr.mxu0 0.0
    %1027 = vmatpush1.xpose.msra.mxu0 0.0
    %1028 = vmatprep.subr.mxu0 0.0
    %1029 = vmatpush1.xpose.msra.mxu0 0.0
    %1030 = vmatprep.subr.mxu0 0.0
    %1031 = vmatpush1.xpose.msra.mxu0 0.0
    %1032 = vmatprep.subr.mxu0 0.0
    %1033 = vmatpush1.xpose.msra.mxu0 0.0
    %1034 = vmatprep.subr.mxu0 0.0
    %1035 = vmatpush1.xpose.msra.mxu0 0.0
    %1036 = vmatprep.subr.mxu0 0.0
    %1037 = vmatpush1.xpose.msra.mxu0 0.0
    %1038 = vmatprep.subr.mxu0 0.0
    %1039 = vmatpush1.xpose.msra.mxu0 0.0
    %1040 = vmatprep.subr.mxu0 0.0
    %1041 = vmatpush1.xpose.msra.mxu0 %v1008
    %1042 = vmatprep.subr.mxu0 0.0
    %1043 = vmatpush2.xpose.msra.mxu0 0.0
    %1044 = vmatprep.subr.mxu0 0.0
    %1045 = vmatpush2.xpose.msra.mxu0 0.0
    %1046 = vmatprep.subr.mxu0 0.0
    %1047 = vmatpush2.xpose.msra.mxu0 0.0
    %1048 = vmatprep.subr.mxu0 0.0
    %1049 = vmatpush2.xpose.msra.mxu0 0.0
    %1050 = vmatprep.subr.mxu0 0.0
    %1051 = vmatpush2.xpose.msra.mxu0 0.0
    %1052 = vmatprep.subr.mxu0 0.0
    %1053 = vmatpush2.xpose.msra.mxu0 0.0
    %1054 = vmatprep.subr.mxu0 0.0
    %1055 = vmatpush2.xpose.msra.mxu0 0.0
    %1056 = vmatprep.subr.mxu0 0.0
    %1057 = vmatpush2.xpose.msra.mxu0 0.0
    %1058 = vmatprep.subr.mxu0 0.0
    %1059 = vmatpush2.xpose.msra.mxu0 0.0
    %1060 = vmatprep.subr.mxu0 0.0
    %1061 = vmatpush2.xpose.msra.mxu0 0.0
    %1062 = vmatprep.subr.mxu0 0.0
    %1063 = vmatpush2.xpose.msra.mxu0 0.0
    %1064 = vmatprep.subr.mxu0 0.0
    %1065 = vmatpush2.xpose.msra.mxu0 0.0
    %1066 = vmatprep.subr.mxu0 0.0
    %1067 = vmatpush2.xpose.msra.mxu0 0.0
    %1068 = vmatprep.subr.mxu0 0.0
    %1069 = vmatpush2.xpose.msra.mxu0 0.0
    %1070 = vmatprep.subr.mxu0 0.0
    %1071 = vmatpush2.xpose.msra.mxu0 0.0
    %1072 = vmatprep.subr.mxu0 0.0
    %1073 = vmatpush2.xpose.msra.mxu0 0.0
    %1074 = vmatprep.mubr.f32.mxu0 0.0
    %1075 = vmatmul.mubr.f32.gmra.mxu0 %v1006
    %v1076 = vpop.f32.mrf.mxu0
    %v1077 = vadd.f32 0.0, %v1076
    %v1078 = vpop.f32.mrf.mxu0
    %1079 = vdwg.mxu0
    %v1080 = vmul.f32 %v1077, 0.17677669
    %v1081 = vadd.f32 %v1080, %v172
    %v1082 = vsel %vm307, %v1081, -inf
    %1083 = vmax.xlane.f32.xlu0 %v1082
    %v1084 = vpop.xlane.xlu0 %1083
    %v1085 = vsub.f32 %v1081, %v1084
    %v1086 = vmul.f32 %v1085, 1.442695
    %v1087 = vpow.pop %v1086
    %v1088 = vsel %vm307, %v1087, 0.0
    %1089 = vadd.xlane.f32.xlu0 %v1088
    %v1090 = vpop.xlane.xlu0 %1089
    %v1091 = vrcp.pop %v1090
    %v1092 = vmul.f32 %v1090, %v1091
    %v1093 = vsub.f32 2.0, %v1092
    %v1094 = vmul.f32 %v1091, %v1093
    %v1095 = vmul.f32 %v1087, %v1094
    %1096 = vrot.lane.b32.xlu0 %v301, 64
    %v1097 = vpop.permute.xlu0 %1096
    %v1100 = vsel %vm307, %v1095, 0
    %1102 = vmatprep.subr.mxu0 0.0
    %1103 = vmatpush1.msra.mxu0 0.0
    %1104 = vmatprep.subr.mxu0 0.0
    %1105 = vmatpush1.msra.mxu0 0.0
    %1106 = vmatprep.subr.mxu0 0.0
    %1107 = vmatpush1.msra.mxu0 0.0
    %1108 = vmatprep.subr.mxu0 0.0
    %1109 = vmatpush1.msra.mxu0 0.0
    %1110 = vmatprep.subr.mxu0 0.0
    %1111 = vmatpush1.msra.mxu0 0.0
    %1112 = vmatprep.subr.mxu0 0.0
    %1113 = vmatpush1.msra.mxu0 0.0
    %1114 = vmatprep.subr.mxu0 0.0
    %1115 = vmatpush1.msra.mxu0 0.0
    %1116 = vmatprep.subr.mxu0 0.0
    %1117 = vmatpush1.msra.mxu0 0.0
    %1118 = vmatprep.subr.mxu0 0.0
    %1119 = vmatpush1.msra.mxu0 0.0
    %1120 = vmatprep.subr.mxu0 0.0
    %1121 = vmatpush1.msra.mxu0 0.0
    %1122 = vmatprep.subr.mxu0 0.0
    %1123 = vmatpush1.msra.mxu0 0.0
    %1124 = vmatprep.subr.mxu0 0.0
    %1125 = vmatpush1.msra.mxu0 0.0
    %1126 = vmatprep.subr.mxu0 0.0
    %1127 = vmatpush1.msra.mxu0 0.0
    %1128 = vmatprep.subr.mxu0 0.0
    %1129 = vmatpush1.msra.mxu0 0.0
    %1130 = vmatprep.subr.mxu0 0.0
    %1131 = vmatpush1.msra.mxu0 0.0
    %1132 = vmatprep.subr.mxu0 0.0
    %1133 = vmatpush1.msra.mxu0 %v1097
    %1134 = vmatprep.subr.mxu0 0.0
    %1135 = vmatpush2.msra.mxu0 0.0
    %1136 = vmatprep.subr.mxu0 0.0
    %1137 = vmatpush2.msra.mxu0 0.0
    %1138 = vmatprep.subr.mxu0 0.0
    %1139 = vmatpush2.msra.mxu0 0.0
    %1140 = vmatprep.subr.mxu0 0.0
    %1141 = vmatpush2.msra.mxu0 0.0
    %1142 = vmatprep.subr.mxu0 0.0
    %1143 = vmatpush2.msra.mxu0 0.0
    %1144 = vmatprep.subr.mxu0 0.0
    %1145 = vmatpush2.msra.mxu0 0.0
    %1146 = vmatprep.subr.mxu0 0.0
    %1147 = vmatpush2.msra.mxu0 0.0
    %1148 = vmatprep.subr.mxu0 0.0
    %1149 = vmatpush2.msra.mxu0 0.0
    %1150 = vmatprep.subr.mxu0 0.0
    %1151 = vmatpush2.msra.mxu0 0.0
    %1152 = vmatprep.subr.mxu0 0.0
    %1153 = vmatpush2.msra.mxu0 0.0
    %1154 = vmatprep.subr.mxu0 0.0
    %1155 = vmatpush2.msra.mxu0 0.0
    %1156 = vmatprep.subr.mxu0 0.0
    %1157 = vmatpush2.msra.mxu0 0.0
    %1158 = vmatprep.subr.mxu0 0.0
    %1159 = vmatpush2.msra.mxu0 0.0
    %1160 = vmatprep.subr.mxu0 0.0
    %1161 = vmatpush2.msra.mxu0 0.0
    %1162 = vmatprep.subr.mxu0 0.0
    %1163 = vmatpush2.msra.mxu0 0.0
    %1164 = vmatprep.subr.mxu0 0.0
    %1165 = vmatpush2.msra.mxu0 0.0
    %1166 = vmatprep.mubr.f32.mxu0 0.0
    %1167 = vmatmul.mubr.f32.gmra.mxu0 %v1100
    %v1168 = vpop.f32.mrf.mxu0
    %v1169 = vadd.f32 0.0, %v1168
    %v1170 = vpop.f32.mrf.mxu0
    %1171 = vdwg.mxu0
    %1172 = vst.msk [vmem:[#allocation2 + $0x8] sm:$0xff] %vm307, %v1169
    %1173 = vrot.lane.b32.xlu0 %v301, 120
    %v1174 = vpop.permute.xlu0 %1173
    %1175 = vrot.lane.b32.xlu0 %v301, 88
    %v1176 = vpop.permute.xlu0 %1175
    %v1177 = vsel %vm307, %v1174, 0
    %v1179 = vsel %vm307, %v1176, 0
    %1181 = vmatprep.subr.mxu0 0.0
    %1182 = vmatpush1.xpose.msra.mxu0 0.0
    %1183 = vmatprep.subr.mxu0 0.0
    %1184 = vmatpush1.xpose.msra.mxu0 0.0
    %1185 = vmatprep.subr.mxu0 0.0
    %1186 = vmatpush1.xpose.msra.mxu0 0.0
    %1187 = vmatprep.subr.mxu0 0.0
    %1188 = vmatpush1.xpose.msra.mxu0 0.0
    %1189 = vmatprep.subr.mxu0 0.0
    %1190 = vmatpush1.xpose.msra.mxu0 0.0
    %1191 = vmatprep.subr.mxu0 0.0
    %1192 = vmatpush1.xpose.msra.mxu0 0.0
    %1193 = vmatprep.subr.mxu0 0.0
    %1194 = vmatpush1.xpose.msra.mxu0 0.0
    %1195 = vmatprep.subr.mxu0 0.0
    %1196 = vmatpush1.xpose.msra.mxu0 0.0
    %1197 = vmatprep.subr.mxu0 0.0
    %1198 = vmatpush1.xpose.msra.mxu0 0.0
    %1199 = vmatprep.subr.mxu0 0.0
    %1200 = vmatpush1.xpose.msra.mxu0 0.0
    %1201 = vmatprep.subr.mxu0 0.0
    %1202 = vmatpush1.xpose.msra.mxu0 0.0
    %1203 = vmatprep.subr.mxu0 0.0
    %1204 = vmatpush1.xpose.msra.mxu0 0.0
    %1205 = vmatprep.subr.mxu0 0.0
    %1206 = vmatpush1.xpose.msra.mxu0 0.0
    %1207 = vmatprep.subr.mxu0 0.0
    %1208 = vmatpush1.xpose.msra.mxu0 0.0
    %1209 = vmatprep.subr.mxu0 0.0
    %1210 = vmatpush1.xpose.msra.mxu0 0.0
    %1211 = vmatprep.subr.mxu0 0.0
    %1212 = vmatpush1.xpose.msra.mxu0 %v1179
    %1213 = vmatprep.subr.mxu0 0.0
    %1214 = vmatpush2.xpose.msra.mxu0 0.0
    %1215 = vmatprep.subr.mxu0 0.0
    %1216 = vmatpush2.xpose.msra.mxu0 0.0
    %1217 = vmatprep.subr.mxu0 0.0
    %1218 = vmatpush2.xpose.msra.mxu0 0.0
    %1219 = vmatprep.subr.mxu0 0.0
    %1220 = vmatpush2.xpose.msra.mxu0 0.0
    %1221 = vmatprep.subr.mxu0 0.0
    %1222 = vmatpush2.xpose.msra.mxu0 0.0
    %1223 = vmatprep.subr.mxu0 0.0
    %1224 = vmatpush2.xpose.msra.mxu0 0.0
    %1225 = vmatprep.subr.mxu0 0.0
    %1226 = vmatpush2.xpose.msra.mxu0 0.0
    %1227 = vmatprep.subr.mxu0 0.0
    %1228 = vmatpush2.xpose.msra.mxu0 0.0
    %1229 = vmatprep.subr.mxu0 0.0
    %1230 = vmatpush2.xpose.msra.mxu0 0.0
    %1231 = vmatprep.subr.mxu0 0.0
    %1232 = vmatpush2.xpose.msra.mxu0 0.0
    %1233 = vmatprep.subr.mxu0 0.0
    %1234 = vmatpush2.xpose.msra.mxu0 0.0
    %1235 = vmatprep.subr.mxu0 0.0
    %1236 = vmatpush2.xpose.msra.mxu0 0.0
    %1237 = vmatprep.subr.mxu0 0.0
    %1238 = vmatpush2.xpose.msra.mxu0 0.0
    %1239 = vmatprep.subr.mxu0 0.0
    %1240 = vmatpush2.xpose.msra.mxu0 0.0
    %1241 = vmatprep.subr.mxu0 0.0
    %1242 = vmatpush2.xpose.msra.mxu0 0.0
    %1243 = vmatprep.subr.mxu0 0.0
    %1244 = vmatpush2.xpose.msra.mxu0 0.0
    %1245 = vmatprep.mubr.f32.mxu0 0.0
    %1246 = vmatmul.mubr.f32.gmra.mxu0 %v1177
    %v1247 = vpop.f32.mrf.mxu0
    %v1248 = vadd.f32 0.0, %v1247
    %v1249 = vpop.f32.mrf.mxu0
    %1250 = vdwg.mxu0
    %v1251 = vmul.f32 %v1248, 0.17677669
    %v1252 = vadd.f32 %v1251, %v172
    %v1253 = vsel %vm307, %v1252, -inf
    %1254 = vmax.xlane.f32.xlu0 %v1253
    %v1255 = vpop.xlane.xlu0 %1254
    %v1256 = vsub.f32 %v1252, %v1255
    %v1257 = vmul.f32 %v1256, 1.442695
    %v1258 = vpow.pop %v1257
    %v1259 = vsel %vm307, %v1258, 0.0
    %1260 = vadd.xlane.f32.xlu0 %v1259
    %v1261 = vpop.xlane.xlu0 %1260
    %v1262 = vrcp.pop %v1261
    %v1263 = vmul.f32 %v1261, %v1262
    %v1264 = vsub.f32 2.0, %v1263
    %v1265 = vmul.f32 %v1262, %v1264
    %v1266 = vmul.f32 %v1258, %v1265
    %1267 = vrot.lane.b32.xlu0 %v301, 56
    %v1268 = vpop.permute.xlu0 %1267
    %v1271 = vsel %vm307, %v1266, 0
    %1273 = vmatprep.subr.mxu0 0.0
    %1274 = vmatpush1.msra.mxu0 0.0
    %1275 = vmatprep.subr.mxu0 0.0
    %1276 = vmatpush1.msra.mxu0 0.0
    %1277 = vmatprep.subr.mxu0 0.0
    %1278 = vmatpush1.msra.mxu0 0.0
    %1279 = vmatprep.subr.mxu0 0.0
    %1280 = vmatpush1.msra.mxu0 0.0
    %1281 = vmatprep.subr.mxu0 0.0
    %1282 = vmatpush1.msra.mxu0 0.0
    %1283 = vmatprep.subr.mxu0 0.0
    %1284 = vmatpush1.msra.mxu0 0.0
    %1285 = vmatprep.subr.mxu0 0.0
    %1286 = vmatpush1.msra.mxu0 0.0
    %1287 = vmatprep.subr.mxu0 0.0
    %1288 = vmatpush1.msra.mxu0 0.0
    %1289 = vmatprep.subr.mxu0 0.0
    %1290 = vmatpush1.msra.mxu0 0.0
    %1291 = vmatprep.subr.mxu0 0.0
    %1292 = vmatpush1.msra.mxu0 0.0
    %1293 = vmatprep.subr.mxu0 0.0
    %1294 = vmatpush1.msra.mxu0 0.0
    %1295 = vmatprep.subr.mxu0 0.0
    %1296 = vmatpush1.msra.mxu0 0.0
    %1297 = vmatprep.subr.mxu0 0.0
    %1298 = vmatpush1.msra.mxu0 0.0
    %1299 = vmatprep.subr.mxu0 0.0
    %1300 = vmatpush1.msra.mxu0 0.0
    %1301 = vmatprep.subr.mxu0 0.0
    %1302 = vmatpush1.msra.mxu0 0.0
    %1303 = vmatprep.subr.mxu0 0.0
    %1304 = vmatpush1.msra.mxu0 %v1268
    %1305 = vmatprep.subr.mxu0 0.0
    %1306 = vmatpush2.msra.mxu0 0.0
    %1307 = vmatprep.subr.mxu0 0.0
    %1308 = vmatpush2.msra.mxu0 0.0
    %1309 = vmatprep.subr.mxu0 0.0
    %1310 = vmatpush2.msra.mxu0 0.0
    %1311 = vmatprep.subr.mxu0 0.0
    %1312 = vmatpush2.msra.mxu0 0.0
    %1313 = vmatprep.subr.mxu0 0.0
    %1314 = vmatpush2.msra.mxu0 0.0
    %1315 = vmatprep.subr.mxu0 0.0
    %1316 = vmatpush2.msra.mxu0 0.0
    %1317 = vmatprep.subr.mxu0 0.0
    %1318 = vmatpush2.msra.mxu0 0.0
    %1319 = vmatprep.subr.mxu0 0.0
    %1320 = vmatpush2.msra.mxu0 0.0
    %1321 = vmatprep.subr.mxu0 0.0
    %1322 = vmatpush2.msra.mxu0 0.0
    %1323 = vmatprep.subr.mxu0 0.0
    %1324 = vmatpush2.msra.mxu0 0.0
    %1325 = vmatprep.subr.mxu0 0.0
    %1326 = vmatpush2.msra.mxu0 0.0
    %1327 = vmatprep.subr.mxu0 0.0
    %1328 = vmatpush2.msra.mxu0 0.0
    %1329 = vmatprep.subr.mxu0 0.0
    %1330 = vmatpush2.msra.mxu0 0.0
    %1331 = vmatprep.subr.mxu0 0.0
    %1332 = vmatpush2.msra.mxu0 0.0
    %1333 = vmatprep.subr.mxu0 0.0
    %1334 = vmatpush2.msra.mxu0 0.0
    %1335 = vmatprep.subr.mxu0 0.0
    %1336 = vmatpush2.msra.mxu0 0.0
    %1337 = vmatprep.mubr.f32.mxu0 0.0
    %1338 = vmatmul.mubr.f32.gmra.mxu0 %v1271
    %v1339 = vpop.f32.mrf.mxu0
    %v1340 = vadd.f32 0.0, %v1339
    %v1341 = vpop.f32.mrf.mxu0
    %1342 = vdwg.mxu0
    %1344 = vrot.lane.b32.xlu0 %v1340, 8
    %v1345 = vpop.permute.xlu0 %1344
    %1347 = vst.msk [vmem:[#allocation2 + $0x8] sm:$0xff] %vm649, %v1345
    %1348 = vrot.lane.b32.xlu0 %v301, 112
    %v1349 = vpop.permute.xlu0 %1348
    %1350 = vrot.lane.b32.xlu0 %v301, 80
    %v1351 = vpop.permute.xlu0 %1350
    %v1352 = vsel %vm307, %v1349, 0
    %v1354 = vsel %vm307, %v1351, 0
    %1356 = vmatprep.subr.mxu0 0.0
    %1357 = vmatpush1.xpose.msra.mxu0 0.0
    %1358 = vmatprep.subr.mxu0 0.0
    %1359 = vmatpush1.xpose.msra.mxu0 0.0
    %1360 = vmatprep.subr.mxu0 0.0
    %1361 = vmatpush1.xpose.msra.mxu0 0.0
    %1362 = vmatprep.subr.mxu0 0.0
    %1363 = vmatpush1.xpose.msra.mxu0 0.0
    %1364 = vmatprep.subr.mxu0 0.0
    %1365 = vmatpush1.xpose.msra.mxu0 0.0
    %1366 = vmatprep.subr.mxu0 0.0
    %1367 = vmatpush1.xpose.msra.mxu0 0.0
    %1368 = vmatprep.subr.mxu0 0.0
    %1369 = vmatpush1.xpose.msra.mxu0 0.0
    %1370 = vmatprep.subr.mxu0 0.0
    %1371 = vmatpush1.xpose.msra.mxu0 0.0
    %1372 = vmatprep.subr.mxu0 0.0
    %1373 = vmatpush1.xpose.msra.mxu0 0.0
    %1374 = vmatprep.subr.mxu0 0.0
    %1375 = vmatpush1.xpose.msra.mxu0 0.0
    %1376 = vmatprep.subr.mxu0 0.0
    %1377 = vmatpush1.xpose.msra.mxu0 0.0
    %1378 = vmatprep.subr.mxu0 0.0
    %1379 = vmatpush1.xpose.msra.mxu0 0.0
    %1380 = vmatprep.subr.mxu0 0.0
    %1381 = vmatpush1.xpose.msra.mxu0 0.0
    %1382 = vmatprep.subr.mxu0 0.0
    %1383 = vmatpush1.xpose.msra.mxu0 0.0
    %1384 = vmatprep.subr.mxu0 0.0
    %1385 = vmatpush1.xpose.msra.mxu0 0.0
    %1386 = vmatprep.subr.mxu0 0.0
    %1387 = vmatpush1.xpose.msra.mxu0 %v1354
    %1388 = vmatprep.subr.mxu0 0.0
    %1389 = vmatpush2.xpose.msra.mxu0 0.0
    %1390 = vmatprep.subr.mxu0 0.0
    %1391 = vmatpush2.xpose.msra.mxu0 0.0
    %1392 = vmatprep.subr.mxu0 0.0
    %1393 = vmatpush2.xpose.msra.mxu0 0.0
    %1394 = vmatprep.subr.mxu0 0.0
    %1395 = vmatpush2.xpose.msra.mxu0 0.0
    %1396 = vmatprep.subr.mxu0 0.0
    %1397 = vmatpush2.xpose.msra.mxu0 0.0
    %1398 = vmatprep.subr.mxu0 0.0
    %1399 = vmatpush2.xpose.msra.mxu0 0.0
    %1400 = vmatprep.subr.mxu0 0.0
    %1401 = vmatpush2.xpose.msra.mxu0 0.0
    %1402 = vmatprep.subr.mxu0 0.0
    %1403 = vmatpush2.xpose.msra.mxu0 0.0
    %1404 = vmatprep.subr.mxu0 0.0
    %1405 = vmatpush2.xpose.msra.mxu0 0.0
    %1406 = vmatprep.subr.mxu0 0.0
    %1407 = vmatpush2.xpose.msra.mxu0 0.0
    %1408 = vmatprep.subr.mxu0 0.0
    %1409 = vmatpush2.xpose.msra.mxu0 0.0
    %1410 = vmatprep.subr.mxu0 0.0
    %1411 = vmatpush2.xpose.msra.mxu0 0.0
    %1412 = vmatprep.subr.mxu0 0.0
    %1413 = vmatpush2.xpose.msra.mxu0 0.0
    %1414 = vmatprep.subr.mxu0 0.0
    %1415 = vmatpush2.xpose.msra.mxu0 0.0
    %1416 = vmatprep.subr.mxu0 0.0
    %1417 = vmatpush2.xpose.msra.mxu0 0.0
    %1418 = vmatprep.subr.mxu0 0.0
    %1419 = vmatpush2.xpose.msra.mxu0 0.0
    %1420 = vmatprep.mubr.f32.mxu0 0.0
    %1421 = vmatmul.mubr.f32.gmra.mxu0 %v1352
    %v1422 = vpop.f32.mrf.mxu0
    %v1423 = vadd.f32 0.0, %v1422
    %v1424 = vpop.f32.mrf.mxu0
    %1425 = vdwg.mxu0
    %v1426 = vmul.f32 %v1423, 0.17677669
    %v1427 = vadd.f32 %v1426, %v172
    %v1428 = vsel %vm307, %v1427, -inf
    %1429 = vmax.xlane.f32.xlu0 %v1428
    %v1430 = vpop.xlane.xlu0 %1429
    %v1431 = vsub.f32 %v1427, %v1430
    %v1432 = vmul.f32 %v1431, 1.442695
    %v1433 = vpow.pop %v1432
    %v1434 = vsel %vm307, %v1433, 0.0
    %1435 = vadd.xlane.f32.xlu0 %v1434
    %v1436 = vpop.xlane.xlu0 %1435
    %v1437 = vrcp.pop %v1436
    %v1438 = vmul.f32 %v1436, %v1437
    %v1439 = vsub.f32 2.0, %v1438
    %v1440 = vmul.f32 %v1437, %v1439
    %v1441 = vmul.f32 %v1433, %v1440
    %1442 = vrot.lane.b32.xlu0 %v301, 48
    %v1443 = vpop.permute.xlu0 %1442
    %v1446 = vsel %vm307, %v1441, 0
    %1448 = vmatprep.subr.mxu0 0.0
    %1449 = vmatpush1.msra.mxu0 0.0
    %1450 = vmatprep.subr.mxu0 0.0
    %1451 = vmatpush1.msra.mxu0 0.0
    %1452 = vmatprep.subr.mxu0 0.0
    %1453 = vmatpush1.msra.mxu0 0.0
    %1454 = vmatprep.subr.mxu0 0.0
    %1455 = vmatpush1.msra.mxu0 0.0
    %1456 = vmatprep.subr.mxu0 0.0
    %1457 = vmatpush1.msra.mxu0 0.0
    %1458 = vmatprep.subr.mxu0 0.0
    %1459 = vmatpush1.msra.mxu0 0.0
    %1460 = vmatprep.subr.mxu0 0.0
    %1461 = vmatpush1.msra.mxu0 0.0
    %1462 = vmatprep.subr.mxu0 0.0
    %1463 = vmatpush1.msra.mxu0 0.0
    %1464 = vmatprep.subr.mxu0 0.0
    %1465 = vmatpush1.msra.mxu0 0.0
    %1466 = vmatprep.subr.mxu0 0.0
    %1467 = vmatpush1.msra.mxu0 0.0
    %1468 = vmatprep.subr.mxu0 0.0
    %1469 = vmatpush1.msra.mxu0 0.0
    %1470 = vmatprep.subr.mxu0 0.0
    %1471 = vmatpush1.msra.mxu0 0.0
    %1472 = vmatprep.subr.mxu0 0.0
    %1473 = vmatpush1.msra.mxu0 0.0
    %1474 = vmatprep.subr.mxu0 0.0
    %1475 = vmatpush1.msra.mxu0 0.0
    %1476 = vmatprep.subr.mxu0 0.0
    %1477 = vmatpush1.msra.mxu0 0.0
    %1478 = vmatprep.subr.mxu0 0.0
    %1479 = vmatpush1.msra.mxu0 %v1443
    %1480 = vmatprep.subr.mxu0 0.0
    %1481 = vmatpush2.msra.mxu0 0.0
    %1482 = vmatprep.subr.mxu0 0.0
    %1483 = vmatpush2.msra.mxu0 0.0
    %1484 = vmatprep.subr.mxu0 0.0
    %1485 = vmatpush2.msra.mxu0 0.0
    %1486 = vmatprep.subr.mxu0 0.0
    %1487 = vmatpush2.msra.mxu0 0.0
    %1488 = vmatprep.subr.mxu0 0.0
    %1489 = vmatpush2.msra.mxu0 0.0
    %1490 = vmatprep.subr.mxu0 0.0
    %1491 = vmatpush2.msra.mxu0 0.0
    %1492 = vmatprep.subr.mxu0 0.0
    %1493 = vmatpush2.msra.mxu0 0.0
    %1494 = vmatprep.subr.mxu0 0.0
    %1495 = vmatpush2.msra.mxu0 0.0
    %1496 = vmatprep.subr.mxu0 0.0
    %1497 = vmatpush2.msra.mxu0 0.0
    %1498 = vmatprep.subr.mxu0 0.0
    %1499 = vmatpush2.msra.mxu0 0.0
    %1500 = vmatprep.subr.mxu0 0.0
    %1501 = vmatpush2.msra.mxu0 0.0
    %1502 = vmatprep.subr.mxu0 0.0
    %1503 = vmatpush2.msra.mxu0 0.0
    %1504 = vmatprep.subr.mxu0 0.0
    %1505 = vmatpush2.msra.mxu0 0.0
    %1506 = vmatprep.subr.mxu0 0.0
    %1507 = vmatpush2.msra.mxu0 0.0
    %1508 = vmatprep.subr.mxu0 0.0
    %1509 = vmatpush2.msra.mxu0 0.0
    %1510 = vmatprep.subr.mxu0 0.0
    %1511 = vmatpush2.msra.mxu0 0.0
    %1512 = vmatprep.mubr.f32.mxu0 0.0
    %1513 = vmatmul.mubr.f32.gmra.mxu0 %v1446
    %v1514 = vpop.f32.mrf.mxu0
    %v1515 = vadd.f32 0.0, %v1514
    %v1516 = vpop.f32.mrf.mxu0
    %1517 = vdwg.mxu0
    %1519 = vrot.lane.b32.xlu0 %v1515, 16
    %v1520 = vpop.permute.xlu0 %1519
    %1522 = vst.msk [vmem:[#allocation2 + $0x8] sm:$0xff] %vm825, %v1520
    %1523 = vrot.lane.b32.xlu0 %v301, 104
    %v1524 = vpop.permute.xlu0 %1523
    %1525 = vrot.lane.b32.xlu0 %v301, 72
    %v1526 = vpop.permute.xlu0 %1525
    %v1527 = vsel %vm307, %v1524, 0
    %v1529 = vsel %vm307, %v1526, 0
    %1531 = vmatprep.subr.mxu0 0.0
    %1532 = vmatpush1.xpose.msra.mxu0 0.0
    %1533 = vmatprep.subr.mxu0 0.0
    %1534 = vmatpush1.xpose.msra.mxu0 0.0
    %1535 = vmatprep.subr.mxu0 0.0
    %1536 = vmatpush1.xpose.msra.mxu0 0.0
    %1537 = vmatprep.subr.mxu0 0.0
    %1538 = vmatpush1.xpose.msra.mxu0 0.0
    %1539 = vmatprep.subr.mxu0 0.0
    %1540 = vmatpush1.xpose.msra.mxu0 0.0
    %1541 = vmatprep.subr.mxu0 0.0
    %1542 = vmatpush1.xpose.msra.mxu0 0.0
    %1543 = vmatprep.subr.mxu0 0.0
    %1544 = vmatpush1.xpose.msra.mxu0 0.0
    %1545 = vmatprep.subr.mxu0 0.0
    %1546 = vmatpush1.xpose.msra.mxu0 0.0
    %1547 = vmatprep.subr.mxu0 0.0
    %1548 = vmatpush1.xpose.msra.mxu0 0.0
    %1549 = vmatprep.subr.mxu0 0.0
    %1550 = vmatpush1.xpose.msra.mxu0 0.0
    %1551 = vmatprep.subr.mxu0 0.0
    %1552 = vmatpush1.xpose.msra.mxu0 0.0
    %1553 = vmatprep.subr.mxu0 0.0
    %1554 = vmatpush1.xpose.msra.mxu0 0.0
    %1555 = vmatprep.subr.mxu0 0.0
    %1556 = vmatpush1.xpose.msra.mxu0 0.0
    %1557 = vmatprep.subr.mxu0 0.0
    %1558 = vmatpush1.xpose.msra.mxu0 0.0
    %1559 = vmatprep.subr.mxu0 0.0
    %1560 = vmatpush1.xpose.msra.mxu0 0.0
    %1561 = vmatprep.subr.mxu0 0.0
    %1562 = vmatpush1.xpose.msra.mxu0 %v1529
    %1563 = vmatprep.subr.mxu0 0.0
    %1564 = vmatpush2.xpose.msra.mxu0 0.0
    %1565 = vmatprep.subr.mxu0 0.0
    %1566 = vmatpush2.xpose.msra.mxu0 0.0
    %1567 = vmatprep.subr.mxu0 0.0
    %1568 = vmatpush2.xpose.msra.mxu0 0.0
    %1569 = vmatprep.subr.mxu0 0.0
    %1570 = vmatpush2.xpose.msra.mxu0 0.0
    %1571 = vmatprep.subr.mxu0 0.0
    %1572 = vmatpush2.xpose.msra.mxu0 0.0
    %1573 = vmatprep.subr.mxu0 0.0
    %1574 = vmatpush2.xpose.msra.mxu0 0.0
    %1575 = vmatprep.subr.mxu0 0.0
    %1576 = vmatpush2.xpose.msra.mxu0 0.0
    %1577 = vmatprep.subr.mxu0 0.0
    %1578 = vmatpush2.xpose.msra.mxu0 0.0
    %1579 = vmatprep.subr.mxu0 0.0
    %1580 = vmatpush2.xpose.msra.mxu0 0.0
    %1581 = vmatprep.subr.mxu0 0.0
    %1582 = vmatpush2.xpose.msra.mxu0 0.0
    %1583 = vmatprep.subr.mxu0 0.0
    %1584 = vmatpush2.xpose.msra.mxu0 0.0
    %1585 = vmatprep.subr.mxu0 0.0
    %1586 = vmatpush2.xpose.msra.mxu0 0.0
    %1587 = vmatprep.subr.mxu0 0.0
    %1588 = vmatpush2.xpose.msra.mxu0 0.0
    %1589 = vmatprep.subr.mxu0 0.0
    %1590 = vmatpush2.xpose.msra.mxu0 0.0
    %1591 = vmatprep.subr.mxu0 0.0
    %1592 = vmatpush2.xpose.msra.mxu0 0.0
    %1593 = vmatprep.subr.mxu0 0.0
    %1594 = vmatpush2.xpose.msra.mxu0 0.0
    %1595 = vmatprep.mubr.f32.mxu0 0.0
    %1596 = vmatmul.mubr.f32.gmra.mxu0 %v1527
    %v1597 = vpop.f32.mrf.mxu0
    %v1598 = vadd.f32 0.0, %v1597
    %v1599 = vpop.f32.mrf.mxu0
    %1600 = vdwg.mxu0
    %v1601 = vmul.f32 %v1598, 0.17677669
    %v1602 = vadd.f32 %v1601, %v172
    %v1603 = vsel %vm307, %v1602, -inf
    %1604 = vmax.xlane.f32.xlu0 %v1603
    %v1605 = vpop.xlane.xlu0 %1604
    %v1606 = vsub.f32 %v1602, %v1605
    %v1607 = vmul.f32 %v1606, 1.442695
    %v1608 = vpow.pop %v1607
    %v1609 = vsel %vm307, %v1608, 0.0
    %1610 = vadd.xlane.f32.xlu0 %v1609
    %v1611 = vpop.xlane.xlu0 %1610
    %v1612 = vrcp.pop %v1611
    %v1613 = vmul.f32 %v1611, %v1612
    %v1614 = vsub.f32 2.0, %v1613
    %v1615 = vmul.f32 %v1612, %v1614
    %v1616 = vmul.f32 %v1608, %v1615
    %1617 = vrot.lane.b32.xlu0 %v301, 40
    %v1618 = vpop.permute.xlu0 %1617
    %v1621 = vsel %vm307, %v1616, 0
    %1623 = vmatprep.subr.mxu0 0.0
    %1624 = vmatpush1.msra.mxu0 0.0
    %1625 = vmatprep.subr.mxu0 0.0
    %1626 = vmatpush1.msra.mxu0 0.0
    %1627 = vmatprep.subr.mxu0 0.0
    %1628 = vmatpush1.msra.mxu0 0.0
    %1629 = vmatprep.subr.mxu0 0.0
    %1630 = vmatpush1.msra.mxu0 0.0
    %1631 = vmatprep.subr.mxu0 0.0
    %1632 = vmatpush1.msra.mxu0 0.0
    %1633 = vmatprep.subr.mxu0 0.0
    %1634 = vmatpush1.msra.mxu0 0.0
    %1635 = vmatprep.subr.mxu0 0.0
    %1636 = vmatpush1.msra.mxu0 0.0
    %1637 = vmatprep.subr.mxu0 0.0
    %1638 = vmatpush1.msra.mxu0 0.0
    %1639 = vmatprep.subr.mxu0 0.0
    %1640 = vmatpush1.msra.mxu0 0.0
    %1641 = vmatprep.subr.mxu0 0.0
    %1642 = vmatpush1.msra.mxu0 0.0
    %1643 = vmatprep.subr.mxu0 0.0
    %1644 = vmatpush1.msra.mxu0 0.0
    %1645 = vmatprep.subr.mxu0 0.0
    %1646 = vmatpush1.msra.mxu0 0.0
    %1647 = vmatprep.subr.mxu0 0.0
    %1648 = vmatpush1.msra.mxu0 0.0
    %1649 = vmatprep.subr.mxu0 0.0
    %1650 = vmatpush1.msra.mxu0 0.0
    %1651 = vmatprep.subr.mxu0 0.0
    %1652 = vmatpush1.msra.mxu0 0.0
    %1653 = vmatprep.subr.mxu0 0.0
    %1654 = vmatpush1.msra.mxu0 %v1618
    %1655 = vmatprep.subr.mxu0 0.0
    %1656 = vmatpush2.msra.mxu0 0.0
    %1657 = vmatprep.subr.mxu0 0.0
    %1658 = vmatpush2.msra.mxu0 0.0
    %1659 = vmatprep.subr.mxu0 0.0
    %1660 = vmatpush2.msra.mxu0 0.0
    %1661 = vmatprep.subr.mxu0 0.0
    %1662 = vmatpush2.msra.mxu0 0.0
    %1663 = vmatprep.subr.mxu0 0.0
    %1664 = vmatpush2.msra.mxu0 0.0
    %1665 = vmatprep.subr.mxu0 0.0
    %1666 = vmatpush2.msra.mxu0 0.0
    %1667 = vmatprep.subr.mxu0 0.0
    %1668 = vmatpush2.msra.mxu0 0.0
    %1669 = vmatprep.subr.mxu0 0.0
    %1670 = vmatpush2.msra.mxu0 0.0
    %1671 = vmatprep.subr.mxu0 0.0
    %1672 = vmatpush2.msra.mxu0 0.0
    %1673 = vmatprep.subr.mxu0 0.0
    %1674 = vmatpush2.msra.mxu0 0.0
    %1675 = vmatprep.subr.mxu0 0.0
    %1676 = vmatpush2.msra.mxu0 0.0
    %1677 = vmatprep.subr.mxu0 0.0
    %1678 = vmatpush2.msra.mxu0 0.0
    %1679 = vmatprep.subr.mxu0 0.0
    %1680 = vmatpush2.msra.mxu0 0.0
    %1681 = vmatprep.subr.mxu0 0.0
    %1682 = vmatpush2.msra.mxu0 0.0
    %1683 = vmatprep.subr.mxu0 0.0
    %1684 = vmatpush2.msra.mxu0 0.0
    %1685 = vmatprep.subr.mxu0 0.0
    %1686 = vmatpush2.msra.mxu0 0.0
    %1687 = vmatprep.mubr.f32.mxu0 0.0
    %1688 = vmatmul.mubr.f32.gmra.mxu0 %v1621
    %v1689 = vpop.f32.mrf.mxu0
    %v1690 = vadd.f32 0.0, %v1689
    %v1691 = vpop.f32.mrf.mxu0
    %1692 = vdwg.mxu0
    %1694 = vrot.lane.b32.xlu0 %v1690, 24
    %v1695 = vpop.permute.xlu0 %1694
    %1697 = vst.msk [vmem:[#allocation2 + $0x8] sm:$0xff] %vm1001, %v1695
    %v1698 = vld [vmem:[#allocation2] sm:$0xff]
    %v1699 = vld [vmem:[#allocation2 + $0x8] sm:$0xff]
    %v1700 = vld [vmem:[%s6] sm:$0xff]
    %v1701 = vld [vmem:[%s6 + $0x8] sm:$0xff]
    %v1702 = vld [vmem:[%s6 + $0x10] sm:$0xff]
    %v1703 = vld [vmem:[%s6 + $0x18] sm:$0xff]
    %v1704 = vld [vmem:[%s7] sm:$0x1]
    %v1706 = vlaneseq
    %v1707 = vshrl.u32 %v1706, 7
    %v1708 = vsub.s32 0, %v1707
    %v1709 = vrot.slane %v1704, %v1708
    %v1712 = vsel %vm175, %v1698, 0
    %v1715 = vsel %vm175, %v1699, 0
    %1717 = vmatprep.subr.mxu0 0.0
    %1718 = vmatpush1.msra.mxu0 0.0
    %1719 = vmatprep.subr.mxu0 0.0
    %1720 = vmatpush1.msra.mxu0 0.0
    %1721 = vmatprep.subr.mxu0 0.0
    %1722 = vmatpush1.msra.mxu0 0.0
    %1723 = vmatprep.subr.mxu0 0.0
    %1724 = vmatpush1.msra.mxu0 0.0
    %1725 = vmatprep.subr.mxu0 0.0
    %1726 = vmatpush1.msra.mxu0 0.0
    %1727 = vmatprep.subr.mxu0 0.0
    %1728 = vmatpush1.msra.mxu0 0.0
    %1729 = vmatprep.subr.mxu0 0.0
    %1730 = vmatpush1.msra.mxu0 0.0
    %1731 = vmatprep.subr.mxu0 0.0
    %1732 = vmatpush1.msra.mxu0 0.0
    %1733 = vmatprep.subr.mxu0 0.0
    %1734 = vmatpush1.msra.mxu0 0.0
    %1735 = vmatprep.subr.mxu0 0.0
    %1736 = vmatpush1.msra.mxu0 0.0
    %1737 = vmatprep.subr.mxu0 0.0
    %1738 = vmatpush1.msra.mxu0 0.0
    %1739 = vmatprep.subr.mxu0 0.0
    %1740 = vmatpush1.msra.mxu0 0.0
    %1741 = vmatprep.subr.mxu0 0.0
    %1742 = vmatpush1.msra.mxu0 %v1703
    %1743 = vmatprep.subr.mxu0 0.0
    %1744 = vmatpush1.msra.mxu0 %v1702
    %1745 = vmatprep.subr.mxu0 0.0
    %1746 = vmatpush1.msra.mxu0 %v1701
    %1747 = vmatprep.subr.mxu0 0.0
    %1748 = vmatpush1.msra.mxu0 %v1700
    %1749 = vmatprep.subr.mxu0 0.0
    %1750 = vmatpush2.msra.mxu0 0.0
    %1751 = vmatprep.subr.mxu0 0.0
    %1752 = vmatpush2.msra.mxu0 0.0
    %1753 = vmatprep.subr.mxu0 0.0
    %1754 = vmatpush2.msra.mxu0 0.0
    %1755 = vmatprep.subr.mxu0 0.0
    %1756 = vmatpush2.msra.mxu0 0.0
    %1757 = vmatprep.subr.mxu0 0.0
    %1758 = vmatpush2.msra.mxu0 0.0
    %1759 = vmatprep.subr.mxu0 0.0
    %1760 = vmatpush2.msra.mxu0 0.0
    %1761 = vmatprep.subr.mxu0 0.0
    %1762 = vmatpush2.msra.mxu0 0.0
    %1763 = vmatprep.subr.mxu0 0.0
    %1764 = vmatpush2.msra.mxu0 0.0
    %1765 = vmatprep.subr.mxu0 0.0
    %1766 = vmatpush2.msra.mxu0 0.0
    %1767 = vmatprep.subr.mxu0 0.0
    %1768 = vmatpush2.msra.mxu0 0.0
    %1769 = vmatprep.subr.mxu0 0.0
    %1770 = vmatpush2.msra.mxu0 0.0
    %1771 = vmatprep.subr.mxu0 0.0
    %1772 = vmatpush2.msra.mxu0 0.0
    %1773 = vmatprep.subr.mxu0 0.0
    %1774 = vmatpush2.msra.mxu0 0.0
    %1775 = vmatprep.subr.mxu0 0.0
    %1776 = vmatpush2.msra.mxu0 0.0
    %1777 = vmatprep.subr.mxu0 0.0
    %1778 = vmatpush2.msra.mxu0 0.0
    %1779 = vmatprep.subr.mxu0 0.0
    %1780 = vmatpush2.msra.mxu0 0.0
    %1781 = vmatprep.mubr.f32.mxu0 0.0
    %1782 = vmatmul.mubr.f32.gmra.mxu0 %v1712
    %v1783 = vpop.f32.mrf.mxu0
    %v1784 = vadd.f32 %v1709, %v1783
    %v1785 = vpop.f32.mrf.mxu0
    %1786 = vmatprep.mubr.f32.mxu0 0.0
    %1787 = vmatmul.mubr.f32.gmra.mxu0 %v1715
    %v1788 = vpop.f32.mrf.mxu0
    %v1789 = vadd.f32 %v1709, %v1788
    %v1790 = vpop.f32.mrf.mxu0
    %1791 = vdwg.mxu0
    %v1792 = vadd.f32 %v161, %v1784
    %v1793 = vadd.f32 %v166, %v1789
    %v1794 = vld [vmem:[%s8] sm:$0x1]
    %v1795 = vld [vmem:[%s9] sm:$0x1]
    %v1796 = vsel %vm175, %v1792, 0.0
    %1797 = vadd.xlane.f32.xlu0 %v1796
    %v1798 = vpop.xlane.xlu0 %1797
    %v1799 = vsel %vm175, %v1793, 0.0
    %1800 = vadd.xlane.f32.xlu0 %v1799
    %v1801 = vpop.xlane.xlu0 %1800
    %v1802 = vmul.f32 %v1798, %v182
    %v1803 = vmul.f32 %v1801, %v182
    %v1804 = vsub.f32 %v1792, %v1802
    %v1805 = vsub.f32 %v1793, %v1803
    %v1806 = vmul.f32 %v1804, %v1804
    %v1807 = vmul.f32 %v1805, %v1805
    %v1808 = vsel %vm175, %v1806, 0.0
    %1809 = vadd.xlane.f32.xlu0 %v1808
    %v1810 = vpop.xlane.xlu0 %1809
    %v1811 = vsel %vm175, %v1807, 0.0
    %1812 = vadd.xlane.f32.xlu0 %v1811
    %v1813 = vpop.xlane.xlu0 %1812
    %v1814 = vmul.f32 %v1810, %v182
    %v1815 = vmul.f32 %v1813, %v182
    %v1816 = vadd.f32 %v1814, 1e-05
    %v1817 = vadd.f32 %v1815, 1e-05
    %v1818 = vrsqrt.pop %v1816
    %v1819 = vrsqrt.pop %v1817
    %v1820 = vmul.f32 %v1804, %v1818
    %v1821 = vmul.f32 %v1805, %v1819
    %v1823 = vlaneseq
    %v1824 = vshrl.u32 %v1823, 7
    %v1825 = vsub.s32 0, %v1824
    %v1826 = vrot.slane %v1794, %v1825
    %v1828 = vmul.f32 %v1820, %v1826
    %v1829 = vmul.f32 %v1821, %v1826
    %v1831 = vlaneseq
    %v1832 = vshrl.u32 %v1831, 7
    %v1833 = vsub.s32 0, %v1832
    %v1834 = vrot.slane %v1795, %v1833
    %v1836 = vadd.f32 %v1828, %v1834
    %v1837 = vadd.f32 %v1829, %v1834
    %v1838 = vld [vmem:[%s10] sm:$0xff]
    %v1839 = vld [vmem:[%s10 + $0x8] sm:$0xff]
    %v1840 = vld [vmem:[%s10 + $0x10] sm:$0xff]
    %v1841 = vld [vmem:[%s10 + $0x18] sm:$0xff]
    %v1842 = vld [vmem:[%s11] sm:$0x1]
    %v1844 = vlaneseq
    %v1845 = vshrl.u32 %v1844, 7
    %v1846 = vsub.s32 0, %v1845
    %v1847 = vrot.slane %v1842, %v1846
    %v1850 = vsel %vm175, %v1836, 0
    %v1853 = vsel %vm175, %v1837, 0
    %1855 = vmatprep.subr.mxu0 0.0
    %1856 = vmatpush1.msra.mxu0 0.0
    %1857 = vmatprep.subr.mxu0 0.0
    %1858 = vmatpush1.msra.mxu0 0.0
    %1859 = vmatprep.subr.mxu0 0.0
    %1860 = vmatpush1.msra.mxu0 0.0
    %1861 = vmatprep.subr.mxu0 0.0
    %1862 = vmatpush1.msra.mxu0 0.0
    %1863 = vmatprep.subr.mxu0 0.0
    %1864 = vmatpush1.msra.mxu0 0.0
    %1865 = vmatprep.subr.mxu0 0.0
    %1866 = vmatpush1.msra.mxu0 0.0
    %1867 = vmatprep.subr.mxu0 0.0
    %1868 = vmatpush1.msra.mxu0 0.0
    %1869 = vmatprep.subr.mxu0 0.0
    %1870 = vmatpush1.msra.mxu0 0.0
    %1871 = vmatprep.subr.mxu0 0.0
    %1872 = vmatpush1.msra.mxu0 0.0
    %1873 = vmatprep.subr.mxu0 0.0
    %1874 = vmatpush1.msra.mxu0 0.0
    %1875 = vmatprep.subr.mxu0 0.0
    %1876 = vmatpush1.msra.mxu0 0.0
    %1877 = vmatprep.subr.mxu0 0.0
    %1878 = vmatpush1.msra.mxu0 0.0
    %1879 = vmatprep.subr.mxu0 0.0
    %1880 = vmatpush1.msra.mxu0 %v1841
    %1881 = vmatprep.subr.mxu0 0.0
    %1882 = vmatpush1.msra.mxu0 %v1840
    %1883 = vmatprep.subr.mxu0 0.0
    %1884 = vmatpush1.msra.mxu0 %v1839
    %1885 = vmatprep.subr.mxu0 0.0
    %1886 = vmatpush1.msra.mxu0 %v1838
    %1887 = vmatprep.subr.mxu0 0.0
    %1888 = vmatpush2.msra.mxu0 0.0
    %1889 = vmatprep.subr.mxu0 0.0
    %1890 = vmatpush2.msra.mxu0 0.0
    %1891 = vmatprep.subr.mxu0 0.0
    %1892 = vmatpush2.msra.mxu0 0.0
    %1893 = vmatprep.subr.mxu0 0.0
    %1894 = vmatpush2.msra.mxu0 0.0
    %1895 = vmatprep.subr.mxu0 0.0
    %1896 = vmatpush2.msra.mxu0 0.0
    %1897 = vmatprep.subr.mxu0 0.0
    %1898 = vmatpush2.msra.mxu0 0.0
    %1899 = vmatprep.subr.mxu0 0.0
    %1900 = vmatpush2.msra.mxu0 0.0
    %1901 = vmatprep.subr.mxu0 0.0
    %1902 = vmatpush2.msra.mxu0 0.0
    %1903 = vmatprep.subr.mxu0 0.0
    %1904 = vmatpush2.msra.mxu0 0.0
    %1905 = vmatprep.subr.mxu0 0.0
    %1906 = vmatpush2.msra.mxu0 0.0
    %1907 = vmatprep.subr.mxu0 0.0
    %1908 = vmatpush2.msra.mxu0 0.0
    %1909 = vmatprep.subr.mxu0 0.0
    %1910 = vmatpush2.msra.mxu0 0.0
    %1911 = vmatprep.subr.mxu0 0.0
    %1912 = vmatpush2.msra.mxu0 0.0
    %1913 = vmatprep.subr.mxu0 0.0
    %1914 = vmatpush2.msra.mxu0 0.0
    %1915 = vmatprep.subr.mxu0 0.0
    %1916 = vmatpush2.msra.mxu0 0.0
    %1917 = vmatprep.subr.mxu0 0.0
    %1918 = vmatpush2.msra.mxu0 0.0
    %1919 = vmatprep.mubr.f32.mxu0 0.0
    %1920 = vmatmul.mubr.f32.gmra.mxu0 %v1850
    %v1921 = vpop.f32.mrf.mxu0
    %v1922 = vadd.f32 %v1847, %v1921
    %v1923 = vpop.f32.mrf.mxu0
    %1924 = vmatprep.mubr.f32.mxu0 0.0
    %1925 = vmatmul.mubr.f32.gmra.mxu0 %v1853
    %v1926 = vpop.f32.mrf.mxu0
    %v1927 = vadd.f32 %v1847, %v1926
    %v1928 = vpop.f32.mrf.mxu0
    %1929 = vdwg.mxu0
    %v1930 = vmax.f32 %v1922, 0.0
    %v1931 = vmax.f32 %v1927, 0.0
    %v1932 = vld [vmem:[%s12] sm:$0xff]
    %v1933 = vld [vmem:[%s12 + $0x8] sm:$0xff]
    %v1934 = vld [vmem:[%s12 + $0x10] sm:$0xff]
    %v1935 = vld [vmem:[%s12 + $0x18] sm:$0xff]
    %v1936 = vld [vmem:[%s12 + $0x20] sm:$0xff]
    %v1937 = vld [vmem:[%s12 + $0x28] sm:$0xff]
    %v1938 = vld [vmem:[%s12 + $0x30] sm:$0xff]
    %v1939 = vld [vmem:[%s12 + $0x38] sm:$0xff]
    %v1940 = vld [vmem:[%s12 + $0x40] sm:$0xff]
    %v1941 = vld [vmem:[%s12 + $0x48] sm:$0xff]
    %v1942 = vld [vmem:[%s12 + $0x50] sm:$0xff]
    %v1943 = vld [vmem:[%s12 + $0x58] sm:$0xff]
    %v1944 = vld [vmem:[%s12 + $0x60] sm:$0xff]
    %v1945 = vld [vmem:[%s12 + $0x68] sm:$0xff]
    %v1946 = vld [vmem:[%s12 + $0x70] sm:$0xff]
    %v1947 = vld [vmem:[%s12 + $0x78] sm:$0xff]
    %1948 = vmatprep.subr.mxu0 0.0
    %1949 = vmatpush1.msra.mxu0 %v1947
    %1950 = vmatprep.subr.mxu0 0.0
    %1951 = vmatpush1.msra.mxu0 %v1946
    %1952 = vmatprep.subr.mxu0 0.0
    %1953 = vmatpush1.msra.mxu0 %v1945
    %1954 = vmatprep.subr.mxu0 0.0
    %1955 = vmatpush1.msra.mxu0 %v1944
    %1956 = vmatprep.subr.mxu0 0.0
    %1957 = vmatpush1.msra.mxu0 %v1943
    %1958 = vmatprep.subr.mxu0 0.0
    %1959 = vmatpush1.msra.mxu0 %v1942
    %1960 = vmatprep.subr.mxu0 0.0
    %1961 = vmatpush1.msra.mxu0 %v1941
    %1962 = vmatprep.subr.mxu0 0.0
    %1963 = vmatpush1.msra.mxu0 %v1940
    %1964 = vmatprep.subr.mxu0 0.0
    %1965 = vmatpush1.msra.mxu0 %v1939
    %1966 = vmatprep.subr.mxu0 0.0
    %1967 = vmatpush1.msra.mxu0 %v1938
    %1968 = vmatprep.subr.mxu0 0.0
    %1969 = vmatpush1.msra.mxu0 %v1937
    %1970 = vmatprep.subr.mxu0 0.0
    %1971 = vmatpush1.msra.mxu0 %v1936
    %1972 = vmatprep.subr.mxu0 0.0
    %1973 = vmatpush1.msra.mxu0 %v1935
    %1974 = vmatprep.subr.mxu0 0.0
    %1975 = vmatpush1.msra.mxu0 %v1934
    %1976 = vmatprep.subr.mxu0 0.0
    %1977 = vmatpush1.msra.mxu0 %v1933
    %1978 = vmatprep.subr.mxu0 0.0
    %1979 = vmatpush1.msra.mxu0 %v1932
    %1980 = vmatprep.subr.mxu0 0.0
    %1981 = vmatpush2.msra.mxu0 0.0
    %1982 = vmatprep.subr.mxu0 0.0
    %1983 = vmatpush2.msra.mxu0 0.0
    %1984 = vmatprep.subr.mxu0 0.0
    %1985 = vmatpush2.msra.mxu0 0.0
    %1986 = vmatprep.subr.mxu0 0.0
    %1987 = vmatpush2.msra.mxu0 0.0
    %1988 = vmatprep.subr.mxu0 0.0
    %1989 = vmatpush2.msra.mxu0 0.0
    %1990 = vmatprep.subr.mxu0 0.0
    %1991 = vmatpush2.msra.mxu0 0.0
    %1992 = vmatprep.subr.mxu0 0.0
    %1993 = vmatpush2.msra.mxu0 0.0
    %1994 = vmatprep.subr.mxu0 0.0
    %1995 = vmatpush2.msra.mxu0 0.0
    %1996 = vmatprep.subr.mxu0 0.0
    %1997 = vmatpush2.msra.mxu0 0.0
    %1998 = vmatprep.subr.mxu0 0.0
    %1999 = vmatpush2.msra.mxu0 0.0
    %2000 = vmatprep.subr.mxu0 0.0
    %2001 = vmatpush2.msra.mxu0 0.0
    %2002 = vmatprep.subr.mxu0 0.0
    %2003 = vmatpush2.msra.mxu0 0.0
    %2004 = vmatprep.subr.mxu0 0.0
    %2005 = vmatpush2.msra.mxu0 0.0
    %2006 = vmatprep.subr.mxu0 0.0
    %2007 = vmatpush2.msra.mxu0 0.0
    %2008 = vmatprep.subr.mxu0 0.0
    %2009 = vmatpush2.msra.mxu0 0.0
    %2010 = vmatprep.subr.mxu0 0.0
    %2011 = vmatpush2.msra.mxu0 0.0
    %2012 = vmatprep.mubr.f32.mxu0 0.0
    %2013 = vmatmul.mubr.f32.gmra.mxu0 %v1930
    %v2014 = vpop.f32.mrf.mxu0
    %v2015 = vadd.f32 0.0, %v2014
    %v2016 = vpop.f32.mrf.mxu0
    %2017 = vmatprep.mubr.f32.mxu0 0.0
    %2018 = vmatmul.mubr.f32.gmra.mxu0 %v1931
    %v2019 = vpop.f32.mrf.mxu0
    %v2020 = vadd.f32 0.0, %v2019
    %v2021 = vpop.f32.mrf.mxu0
    %2022 = vdwg.mxu0
    %v2023 = vadd.f32 %v1792, %v2015
    %v2024 = vadd.f32 %v1793, %v2020
    %v2025 = vld [vmem:[%s13] sm:$0x1]
    %v2027 = vlaneseq
    %v2028 = vshrl.u32 %v2027, 7
    %v2029 = vsub.s32 0, %v2028
    %v2030 = vrot.slane %v2025, %v2029
    %v2032 = vadd.f32 %v2023, %v2030
    %v2033 = vadd.f32 %v2024, %v2030
    %s2034 = scalar_lea.vmem %s3, 1
    %v2035 = vld [vmem:[%s2034] sm:$0x1]
    %s2036 = scalar_lea.vmem %s4, 1
    %v2037 = vld [vmem:[%s2036] sm:$0x1]
    %v2038 = vsel %vm175, %v2032, 0.0
    %2039 = vadd.xlane.f32.xlu0 %v2038
    %v2040 = vpop.xlane.xlu0 %2039
    %v2041 = vsel %vm175, %v2033, 0.0
    %2042 = vadd.xlane.f32.xlu0 %v2041
    %v2043 = vpop.xlane.xlu0 %2042
    %v2044 = vmul.f32 %v2040, %v182
    %v2045 = vmul.f32 %v2043, %v182
    %v2046 = vsub.f32 %v2032, %v2044
    %v2047 = vsub.f32 %v2033, %v2045
    %v2048 = vmul.f32 %v2046, %v2046
    %v2049 = vmul.f32 %v2047, %v2047
    %v2050 = vsel %vm175, %v2048, 0.0
    %2051 = vadd.xlane.f32.xlu0 %v2050
    %v2052 = vpop.xlane.xlu0 %2051
    %v2053 = vsel %vm175, %v2049, 0.0
    %2054 = vadd.xlane.f32.xlu0 %v2053
    %v2055 = vpop.xlane.xlu0 %2054
    %v2056 = vmul.f32 %v2052, %v182
    %v2057 = vmul.f32 %v2055, %v182
    %v2058 = vadd.f32 %v2056, 1e-05
    %v2059 = vadd.f32 %v2057, 1e-05
    %v2060 = vrsqrt.pop %v2058
    %v2061 = vrsqrt.pop %v2059
    %v2062 = vmul.f32 %v2046, %v2060
    %v2063 = vmul.f32 %v2047, %v2061
    %v2065 = vlaneseq
    %v2066 = vshrl.u32 %v2065, 7
    %v2067 = vsub.s32 0, %v2066
    %v2068 = vrot.slane %v2035, %v2067
    %v2070 = vmul.f32 %v2062, %v2068
    %v2071 = vmul.f32 %v2063, %v2068
    %v2073 = vlaneseq
    %v2074 = vshrl.u32 %v2073, 7
    %v2075 = vsub.s32 0, %v2074
    %v2076 = vrot.slane %v2037, %v2075
    %v2078 = vadd.f32 %v2070, %v2076
    %v2079 = vadd.f32 %v2071, %v2076
    %s2080 = scalar_lea.vmem %s5, 32
    %v2081 = vld [vmem:[%s2080] sm:$0xff]
    %v2082 = vld [vmem:[%s2080 + $0x8] sm:$0xff]
    %v2083 = vld [vmem:[%s2080 + $0x10] sm:$0xff]
    %v2084 = vld [vmem:[%s2080 + $0x18] sm:$0xff]
    %v2086 = vsel %vm175, %v2078, 0
    %v2089 = vsel %vm175, %v2079, 0
    %2091 = vmatprep.subr.mxu0 0.0
    %2092 = vmatpush1.msra.mxu0 0.0
    %2093 = vmatprep.subr.mxu0 0.0
    %2094 = vmatpush1.msra.mxu0 0.0
    %2095 = vmatprep.subr.mxu0 0.0
    %2096 = vmatpush1.msra.mxu0 0.0
    %2097 = vmatprep.subr.mxu0 0.0
    %2098 = vmatpush1.msra.mxu0 0.0
    %2099 = vmatprep.subr.mxu0 0.0
    %2100 = vmatpush1.msra.mxu0 0.0
    %2101 = vmatprep.subr.mxu0 0.0
    %2102 = vmatpush1.msra.mxu0 0.0
    %2103 = vmatprep.subr.mxu0 0.0
    %2104 = vmatpush1.msra.mxu0 0.0
    %2105 = vmatprep.subr.mxu0 0.0
    %2106 = vmatpush1.msra.mxu0 0.0
    %2107 = vmatprep.subr.mxu0 0.0
    %2108 = vmatpush1.msra.mxu0 0.0
    %2109 = vmatprep.subr.mxu0 0.0
    %2110 = vmatpush1.msra.mxu0 0.0
    %2111 = vmatprep.subr.mxu0 0.0
    %2112 = vmatpush1.msra.mxu0 0.0
    %2113 = vmatprep.subr.mxu0 0.0
    %2114 = vmatpush1.msra.mxu0 0.0
    %2115 = vmatprep.subr.mxu0 0.0
    %2116 = vmatpush1.msra.mxu0 %v2084
    %2117 = vmatprep.subr.mxu0 0.0
    %2118 = vmatpush1.msra.mxu0 %v2083
    %2119 = vmatprep.subr.mxu0 0.0
    %2120 = vmatpush1.msra.mxu0 %v2082
    %2121 = vmatprep.subr.mxu0 0.0
    %2122 = vmatpush1.msra.mxu0 %v2081
    %2123 = vmatprep.subr.mxu0 0.0
    %2124 = vmatpush2.msra.mxu0 0.0
    %2125 = vmatprep.subr.mxu0 0.0
    %2126 = vmatpush2.msra.mxu0 0.0
    %2127 = vmatprep.subr.mxu0 0.0
    %2128 = vmatpush2.msra.mxu0 0.0
    %2129 = vmatprep.subr.mxu0 0.0
    %2130 = vmatpush2.msra.mxu0 0.0
    %2131 = vmatprep.subr.mxu0 0.0
    %2132 = vmatpush2.msra.mxu0 0.0
    %2133 = vmatprep.subr.mxu0 0.0
    %2134 = vmatpush2.msra.mxu0 0.0
    %2135 = vmatprep.subr.mxu0 0.0
    %2136 = vmatpush2.msra.mxu0 0.0
    %2137 = vmatprep.subr.mxu0 0.0
    %2138 = vmatpush2.msra.mxu0 0.0
    %2139 = vmatprep.subr.mxu0 0.0
    %2140 = vmatpush2.msra.mxu0 0.0
    %2141 = vmatprep.subr.mxu0 0.0
    %2142 = vmatpush2.msra.mxu0 0.0
    %2143 = vmatprep.subr.mxu0 0.0
    %2144 = vmatpush2.msra.mxu0 0.0
    %2145 = vmatprep.subr.mxu0 0.0
    %2146 = vmatpush2.msra.mxu0 0.0
    %2147 = vmatprep.subr.mxu0 0.0
    %2148 = vmatpush2.msra.mxu0 0.0
    %2149 = vmatprep.subr.mxu0 0.0
    %2150 = vmatpush2.msra.mxu0 0.0
    %2151 = vmatprep.subr.mxu0 0.0
    %2152 = vmatpush2.msra.mxu0 0.0
    %2153 = vmatprep.subr.mxu0 0.0
    %2154 = vmatpush2.msra.mxu0 0.0
    %2155 = vmatprep.mubr.f32.mxu0 0.0
    %2156 = vmatmul.mubr.f32.gmra.mxu0 %v2086
    %v2157 = vpop.f32.mrf.mxu0
    %v2158 = vadd.f32 0.0, %v2157
    %v2159 = vpop.f32.mrf.mxu0
    %2160 = vmatprep.mubr.f32.mxu0 0.0
    %2161 = vmatmul.mubr.f32.gmra.mxu0 %v2089
    %v2162 = vpop.f32.mrf.mxu0
    %v2163 = vadd.f32 0.0, %v2162
    %v2164 = vpop.f32.mrf.mxu0
    %2165 = vdwg.mxu0
    %2167 = vrot.lane.b32.xlu0 %v2158, 96
    %v2168 = vpop.permute.xlu0 %2167
    %v2169 = vsel %vm307, %v2158, 0
    %v2171 = vsel %vm307, %v2168, 0
    %2173 = vmatprep.subr.mxu0 0.0
    %2174 = vmatpush1.xpose.msra.mxu0 0.0
    %2175 = vmatprep.subr.mxu0 0.0
    %2176 = vmatpush1.xpose.msra.mxu0 0.0
    %2177 = vmatprep.subr.mxu0 0.0
    %2178 = vmatpush1.xpose.msra.mxu0 0.0
    %2179 = vmatprep.subr.mxu0 0.0
    %2180 = vmatpush1.xpose.msra.mxu0 0.0
    %2181 = vmatprep.subr.mxu0 0.0
    %2182 = vmatpush1.xpose.msra.mxu0 0.0
    %2183 = vmatprep.subr.mxu0 0.0
    %2184 = vmatpush1.xpose.msra.mxu0 0.0
    %2185 = vmatprep.subr.mxu0 0.0
    %2186 = vmatpush1.xpose.msra.mxu0 0.0
    %2187 = vmatprep.subr.mxu0 0.0
    %2188 = vmatpush1.xpose.msra.mxu0 0.0
    %2189 = vmatprep.subr.mxu0 0.0
    %2190 = vmatpush1.xpose.msra.mxu0 0.0
    %2191 = vmatprep.subr.mxu0 0.0
    %2192 = vmatpush1.xpose.msra.mxu0 0.0
    %2193 = vmatprep.subr.mxu0 0.0
    %2194 = vmatpush1.xpose.msra.mxu0 0.0
    %2195 = vmatprep.subr.mxu0 0.0
    %2196 = vmatpush1.xpose.msra.mxu0 0.0
    %2197 = vmatprep.subr.mxu0 0.0
    %2198 = vmatpush1.xpose.msra.mxu0 0.0
    %2199 = vmatprep.subr.mxu0 0.0
    %2200 = vmatpush1.xpose.msra.mxu0 0.0
    %2201 = vmatprep.subr.mxu0 0.0
    %2202 = vmatpush1.xpose.msra.mxu0 0.0
    %2203 = vmatprep.subr.mxu0 0.0
    %2204 = vmatpush1.xpose.msra.mxu0 %v2171
    %2205 = vmatprep.subr.mxu0 0.0
    %2206 = vmatpush2.xpose.msra.mxu0 0.0
    %2207 = vmatprep.subr.mxu0 0.0
    %2208 = vmatpush2.xpose.msra.mxu0 0.0
    %2209 = vmatprep.subr.mxu0 0.0
    %2210 = vmatpush2.xpose.msra.mxu0 0.0
    %2211 = vmatprep.subr.mxu0 0.0
    %2212 = vmatpush2.xpose.msra.mxu0 0.0
    %2213 = vmatprep.subr.mxu0 0.0
    %2214 = vmatpush2.xpose.msra.mxu0 0.0
    %2215 = vmatprep.subr.mxu0 0.0
    %2216 = vmatpush2.xpose.msra.mxu0 0.0
    %2217 = vmatprep.subr.mxu0 0.0
    %2218 = vmatpush2.xpose.msra.mxu0 0.0
    %2219 = vmatprep.subr.mxu0 0.0
    %2220 = vmatpush2.xpose.msra.mxu0 0.0
    %2221 = vmatprep.subr.mxu0 0.0
    %2222 = vmatpush2.xpose.msra.mxu0 0.0
    %2223 = vmatprep.subr.mxu0 0.0
    %2224 = vmatpush2.xpose.msra.mxu0 0.0
    %2225 = vmatprep.subr.mxu0 0.0
    %2226 = vmatpush2.xpose.msra.mxu0 0.0
    %2227 = vmatprep.subr.mxu0 0.0
    %2228 = vmatpush2.xpose.msra.mxu0 0.0
    %2229 = vmatprep.subr.mxu0 0.0
    %2230 = vmatpush2.xpose.msra.mxu0 0.0
    %2231 = vmatprep.subr.mxu0 0.0
    %2232 = vmatpush2.xpose.msra.mxu0 0.0
    %2233 = vmatprep.subr.mxu0 0.0
    %2234 = vmatpush2.xpose.msra.mxu0 0.0
    %2235 = vmatprep.subr.mxu0 0.0
    %2236 = vmatpush2.xpose.msra.mxu0 0.0
    %2237 = vmatprep.mubr.f32.mxu0 0.0
    %2238 = vmatmul.mubr.f32.gmra.mxu0 %v2169
    %v2239 = vpop.f32.mrf.mxu0
    %v2240 = vadd.f32 0.0, %v2239
    %v2241 = vpop.f32.mrf.mxu0
    %2242 = vdwg.mxu0
    %v2243 = vmul.f32 %v2240, 0.17677669
    %v2244 = vadd.f32 %v2243, %v172
    %v2245 = vsel %vm307, %v2244, -inf
    %2246 = vmax.xlane.f32.xlu0 %v2245
    %v2247 = vpop.xlane.xlu0 %2246
    %v2248 = vsub.f32 %v2244, %v2247
    %v2249 = vmul.f32 %v2248, 1.442695
    %v2250 = vpow.pop %v2249
    %v2251 = vsel %vm307, %v2250, 0.0
    %2252 = vadd.xlane.f32.xlu0 %v2251
    %v2253 = vpop.xlane.xlu0 %2252
    %v2254 = vrcp.pop %v2253
    %v2255 = vmul.f32 %v2253, %v2254
    %v2256 = vsub.f32 2.0, %v2255
    %v2257 = vmul.f32 %v2254, %v2256
    %v2258 = vmul.f32 %v2250, %v2257
    %2259 = vrot.lane.b32.xlu0 %v2158, 64
    %v2260 = vpop.permute.xlu0 %2259
    %v2263 = vsel %vm307, %v2258, 0
    %2265 = vmatprep.subr.mxu0 0.0
    %2266 = vmatpush1.msra.mxu0 0.0
    %2267 = vmatprep.subr.mxu0 0.0
    %2268 = vmatpush1.msra.mxu0 0.0
    %2269 = vmatprep.subr.mxu0 0.0
    %2270 = vmatpush1.msra.mxu0 0.0
    %2271 = vmatprep.subr.mxu0 0.0
    %2272 = vmatpush1.msra.mxu0 0.0
    %2273 = vmatprep.subr.mxu0 0.0
    %2274 = vmatpush1.msra.mxu0 0.0
    %2275 = vmatprep.subr.mxu0 0.0
    %2276 = vmatpush1.msra.mxu0 0.0
    %2277 = vmatprep.subr.mxu0 0.0
    %2278 = vmatpush1.msra.mxu0 0.0
    %2279 = vmatprep.subr.mxu0 0.0
    %2280 = vmatpush1.msra.mxu0 0.0
    %2281 = vmatprep.subr.mxu0 0.0
    %2282 = vmatpush1.msra.mxu0 0.0
    %2283 = vmatprep.subr.mxu0 0.0
    %2284 = vmatpush1.msra.mxu0 0.0
    %2285 = vmatprep.subr.mxu0 0.0
    %2286 = vmatpush1.msra.mxu0 0.0
    %2287 = vmatprep.subr.mxu0 0.0
    %2288 = vmatpush1.msra.mxu0 0.0
    %2289 = vmatprep.subr.mxu0 0.0
    %2290 = vmatpush1.msra.mxu0 0.0
    %2291 = vmatprep.subr.mxu0 0.0
    %2292 = vmatpush1.msra.mxu0 0.0
    %2293 = vmatprep.subr.mxu0 0.0
    %2294 = vmatpush1.msra.mxu0 0.0
    %2295 = vmatprep.subr.mxu0 0.0
    %2296 = vmatpush1.msra.mxu0 %v2260
    %2297 = vmatprep.subr.mxu0 0.0
    %2298 = vmatpush2.msra.mxu0 0.0
    %2299 = vmatprep.subr.mxu0 0.0
    %2300 = vmatpush2.msra.mxu0 0.0
    %2301 = vmatprep.subr.mxu0 0.0
    %2302 = vmatpush2.msra.mxu0 0.0
    %2303 = vmatprep.subr.mxu0 0.0
    %2304 = vmatpush2.msra.mxu0 0.0
    %2305 = vmatprep.subr.mxu0 0.0
    %2306 = vmatpush2.msra.mxu0 0.0
    %2307 = vmatprep.subr.mxu0 0.0
    %2308 = vmatpush2.msra.mxu0 0.0
    %2309 = vmatprep.subr.mxu0 0.0
    %2310 = vmatpush2.msra.mxu0 0.0
    %2311 = vmatprep.subr.mxu0 0.0
    %2312 = vmatpush2.msra.mxu0 0.0
    %2313 = vmatprep.subr.mxu0 0.0
    %2314 = vmatpush2.msra.mxu0 0.0
    %2315 = vmatprep.subr.mxu0 0.0
    %2316 = vmatpush2.msra.mxu0 0.0
    %2317 = vmatprep.subr.mxu0 0.0
    %2318 = vmatpush2.msra.mxu0 0.0
    %2319 = vmatprep.subr.mxu0 0.0
    %2320 = vmatpush2.msra.mxu0 0.0
    %2321 = vmatprep.subr.mxu0 0.0
    %2322 = vmatpush2.msra.mxu0 0.0
    %2323 = vmatprep.subr.mxu0 0.0
    %2324 = vmatpush2.msra.mxu0 0.0
    %2325 = vmatprep.subr.mxu0 0.0
    %2326 = vmatpush2.msra.mxu0 0.0
    %2327 = vmatprep.subr.mxu0 0.0
    %2328 = vmatpush2.msra.mxu0 0.0
    %2329 = vmatprep.mubr.f32.mxu0 0.0
    %2330 = vmatmul.mubr.f32.gmra.mxu0 %v2263
    %v2331 = vpop.f32.mrf.mxu0
    %v2332 = vadd.f32 0.0, %v2331
    %v2333 = vpop.f32.mrf.mxu0
    %2334 = vdwg.mxu0
    %2335 = vst.msk [vmem:[#allocation2] sm:$0xff] %vm307, %v2332
    %2336 = vrot.lane.b32.xlu0 %v2158, 120
    %v2337 = vpop.permute.xlu0 %2336
    %2338 = vrot.lane.b32.xlu0 %v2158, 88
    %v2339 = vpop.permute.xlu0 %2338
    %v2340 = vsel %vm307, %v2337, 0
    %v2342 = vsel %vm307, %v2339, 0
    %2344 = vmatprep.subr.mxu0 0.0
    %2345 = vmatpush1.xpose.msra.mxu0 0.0
    %2346 = vmatprep.subr.mxu0 0.0
    %2347 = vmatpush1.xpose.msra.mxu0 0.0
    %2348 = vmatprep.subr.mxu0 0.0
    %2349 = vmatpush1.xpose.msra.mxu0 0.0
    %2350 = vmatprep.subr.mxu0 0.0
    %2351 = vmatpush1.xpose.msra.mxu0 0.0
    %2352 = vmatprep.subr.mxu0 0.0
    %2353 = vmatpush1.xpose.msra.mxu0 0.0
    %2354 = vmatprep.subr.mxu0 0.0
    %2355 = vmatpush1.xpose.msra.mxu0 0.0
    %2356 = vmatprep.subr.mxu0 0.0
    %2357 = vmatpush1.xpose.msra.mxu0 0.0
    %2358 = vmatprep.subr.mxu0 0.0
    %2359 = vmatpush1.xpose.msra.mxu0 0.0
    %2360 = vmatprep.subr.mxu0 0.0
    %2361 = vmatpush1.xpose.msra.mxu0 0.0
    %2362 = vmatprep.subr.mxu0 0.0
    %2363 = vmatpush1.xpose.msra.mxu0 0.0
    %2364 = vmatprep.subr.mxu0 0.0
    %2365 = vmatpush1.xpose.msra.mxu0 0.0
    %2366 = vmatprep.subr.mxu0 0.0
    %2367 = vmatpush1.xpose.msra.mxu0 0.0
    %2368 = vmatprep.subr.mxu0 0.0
    %2369 = vmatpush1.xpose.msra.mxu0 0.0
    %2370 = vmatprep.subr.mxu0 0.0
    %2371 = vmatpush1.xpose.msra.mxu0 0.0
    %2372 = vmatprep.subr.mxu0 0.0
    %2373 = vmatpush1.xpose.msra.mxu0 0.0
    %2374 = vmatprep.subr.mxu0 0.0
    %2375 = vmatpush1.xpose.msra.mxu0 %v2342
    %2376 = vmatprep.subr.mxu0 0.0
    %2377 = vmatpush2.xpose.msra.mxu0 0.0
    %2378 = vmatprep.subr.mxu0 0.0
    %2379 = vmatpush2.xpose.msra.mxu0 0.0
    %2380 = vmatprep.subr.mxu0 0.0
    %2381 = vmatpush2.xpose.msra.mxu0 0.0
    %2382 = vmatprep.subr.mxu0 0.0
    %2383 = vmatpush2.xpose.msra.mxu0 0.0
    %2384 = vmatprep.subr.mxu0 0.0
    %2385 = vmatpush2.xpose.msra.mxu0 0.0
    %2386 = vmatprep.subr.mxu0 0.0
    %2387 = vmatpush2.xpose.msra.mxu0 0.0
    %2388 = vmatprep.subr.mxu0 0.0
    %2389 = vmatpush2.xpose.msra.mxu0 0.0
    %2390 = vmatprep.subr.mxu0 0.0
    %2391 = vmatpush2.xpose.msra.mxu0 0.0
    %2392 = vmatprep.subr.mxu0 0.0
    %2393 = vmatpush2.xpose.msra.mxu0 0.0
    %2394 = vmatprep.subr.mxu0 0.0
    %2395 = vmatpush2.xpose.msra.mxu0 0.0
    %2396 = vmatprep.subr.mxu0 0.0
    %2397 = vmatpush2.xpose.msra.mxu0 0.0
    %2398 = vmatprep.subr.mxu0 0.0
    %2399 = vmatpush2.xpose.msra.mxu0 0.0
    %2400 = vmatprep.subr.mxu0 0.0
    %2401 = vmatpush2.xpose.msra.mxu0 0.0
    %2402 = vmatprep.subr.mxu0 0.0
    %2403 = vmatpush2.xpose.msra.mxu0 0.0
    %2404 = vmatprep.subr.mxu0 0.0
    %2405 = vmatpush2.xpose.msra.mxu0 0.0
    %2406 = vmatprep.subr.mxu0 0.0
    %2407 = vmatpush2.xpose.msra.mxu0 0.0
    %2408 = vmatprep.mubr.f32.mxu0 0.0
    %2409 = vmatmul.mubr.f32.gmra.mxu0 %v2340
    %v2410 = vpop.f32.mrf.mxu0
    %v2411 = vadd.f32 0.0, %v2410
    %v2412 = vpop.f32.mrf.mxu0
    %2413 = vdwg.mxu0
    %v2414 = vmul.f32 %v2411, 0.17677669
    %v2415 = vadd.f32 %v2414, %v172
    %v2416 = vsel %vm307, %v2415, -inf
    %2417 = vmax.xlane.f32.xlu0 %v2416
    %v2418 = vpop.xlane.xlu0 %2417
    %v2419 = vsub.f32 %v2415, %v2418
    %v2420 = vmul.f32 %v2419, 1.442695
    %v2421 = vpow.pop %v2420
    %v2422 = vsel %vm307, %v2421, 0.0
    %2423 = vadd.xlane.f32.xlu0 %v2422
    %v2424 = vpop.xlane.xlu0 %2423
    %v2425 = vrcp.pop %v2424
    %v2426 = vmul.f32 %v2424, %v2425
    %v2427 = vsub.f32 2.0, %v2426
    %v2428 = vmul.f32 %v2425, %v2427
    %v2429 = vmul.f32 %v2421, %v2428
    %2430 = vrot.lane.b32.xlu0 %v2158, 56
    %v2431 = vpop.permute.xlu0 %2430
    %v2434 = vsel %vm307, %v2429, 0
    %2436 = vmatprep.subr.mxu0 0.0
    %2437 = vmatpush1.msra.mxu0 0.0
    %2438 = vmatprep.subr.mxu0 0.0
    %2439 = vmatpush1.msra.mxu0 0.0
    %2440 = vmatprep.subr.mxu0 0.0
    %2441 = vmatpush1.msra.mxu0 0.0
    %2442 = vmatprep.subr.mxu0 0.0
    %2443 = vmatpush1.msra.mxu0 0.0
    %2444 = vmatprep.subr.mxu0 0.0
    %2445 = vmatpush1.msra.mxu0 0.0
    %2446 = vmatprep.subr.mxu0 0.0
    %2447 = vmatpush1.msra.mxu0 0.0
    %2448 = vmatprep.subr.mxu0 0.0
    %2449 = vmatpush1.msra.mxu0 0.0
    %2450 = vmatprep.subr.mxu0 0.0
    %2451 = vmatpush1.msra.mxu0 0.0
    %2452 = vmatprep.subr.mxu0 0.0
    %2453 = vmatpush1.msra.mxu0 0.0
    %2454 = vmatprep.subr.mxu0 0.0
    %2455 = vmatpush1.msra.mxu0 0.0
    %2456 = vmatprep.subr.mxu0 0.0
    %2457 = vmatpush1.msra.mxu0 0.0
    %2458 = vmatprep.subr.mxu0 0.0
    %2459 = vmatpush1.msra.mxu0 0.0
    %2460 = vmatprep.subr.mxu0 0.0
    %2461 = vmatpush1.msra.mxu0 0.0
    %2462 = vmatprep.subr.mxu0 0.0
    %2463 = vmatpush1.msra.mxu0 0.0
    %2464 = vmatprep.subr.mxu0 0.0
    %2465 = vmatpush1.msra.mxu0 0.0
    %2466 = vmatprep.subr.mxu0 0.0
    %2467 = vmatpush1.msra.mxu0 %v2431
    %2468 = vmatprep.subr.mxu0 0.0
    %2469 = vmatpush2.msra.mxu0 0.0
    %2470 = vmatprep.subr.mxu0 0.0
    %2471 = vmatpush2.msra.mxu0 0.0
    %2472 = vmatprep.subr.mxu0 0.0
    %2473 = vmatpush2.msra.mxu0 0.0
    %2474 = vmatprep.subr.mxu0 0.0
    %2475 = vmatpush2.msra.mxu0 0.0
    %2476 = vmatprep.subr.mxu0 0.0
    %2477 = vmatpush2.msra.mxu0 0.0
    %2478 = vmatprep.subr.mxu0 0.0
    %2479 = vmatpush2.msra.mxu0 0.0
    %2480 = vmatprep.subr.mxu0 0.0
    %2481 = vmatpush2.msra.mxu0 0.0
    %2482 = vmatprep.subr.mxu0 0.0
    %2483 = vmatpush2.msra.mxu0 0.0
    %2484 = vmatprep.subr.mxu0 0.0
    %2485 = vmatpush2.msra.mxu0 0.0
    %2486 = vmatprep.subr.mxu0 0.0
    %2487 = vmatpush2.msra.mxu0 0.0
    %2488 = vmatprep.subr.mxu0 0.0
    %2489 = vmatpush2.msra.mxu0 0.0
    %2490 = vmatprep.subr.mxu0 0.0
    %2491 = vmatpush2.msra.mxu0 0.0
    %2492 = vmatprep.subr.mxu0 0.0
    %2493 = vmatpush2.msra.mxu0 0.0
    %2494 = vmatprep.subr.mxu0 0.0
    %2495 = vmatpush2.msra.mxu0 0.0
    %2496 = vmatprep.subr.mxu0 0.0
    %2497 = vmatpush2.msra.mxu0 0.0
    %2498 = vmatprep.subr.mxu0 0.0
    %2499 = vmatpush2.msra.mxu0 0.0
    %2500 = vmatprep.mubr.f32.mxu0 0.0
    %2501 = vmatmul.mubr.f32.gmra.mxu0 %v2434
    %v2502 = vpop.f32.mrf.mxu0
    %v2503 = vadd.f32 0.0, %v2502
    %v2504 = vpop.f32.mrf.mxu0
    %2505 = vdwg.mxu0
    %2507 = vrot.lane.b32.xlu0 %v2503, 8
    %v2508 = vpop.permute.xlu0 %2507
    %2510 = vst.msk [vmem:[#allocation2] sm:$0xff] %vm649, %v2508
    %2511 = vrot.lane.b32.xlu0 %v2158, 112
    %v2512 = vpop.permute.xlu0 %2511
    %2513 = vrot.lane.b32.xlu0 %v2158, 80
    %v2514 = vpop.permute.xlu0 %2513
    %v2515 = vsel %vm307, %v2512, 0
    %v2517 = vsel %vm307, %v2514, 0
    %2519 = vmatprep.subr.mxu0 0.0
    %2520 = vmatpush1.xpose.msra.mxu0 0.0
    %2521 = vmatprep.subr.mxu0 0.0
    %2522 = vmatpush1.xpose.msra.mxu0 0.0
    %2523 = vmatprep.subr.mxu0 0.0
    %2524 = vmatpush1.xpose.msra.mxu0 0.0
    %2525 = vmatprep.subr.mxu0 0.0
    %2526 = vmatpush1.xpose.msra.mxu0 0.0
    %2527 = vmatprep.subr.mxu0 0.0
    %2528 = vmatpush1.xpose.msra.mxu0 0.0
    %2529 = vmatprep.subr.mxu0 0.0
    %2530 = vmatpush1.xpose.msra.mxu0 0.0
    %2531 = vmatprep.subr.mxu0 0.0
    %2532 = vmatpush1.xpose.msra.mxu0 0.0
    %2533 = vmatprep.subr.mxu0 0.0
    %2534 = vmatpush1.xpose.msra.mxu0 0.0
    %2535 = vmatprep.subr.mxu0 0.0
    %2536 = vmatpush1.xpose.msra.mxu0 0.0
    %2537 = vmatprep.subr.mxu0 0.0
    %2538 = vmatpush1.xpose.msra.mxu0 0.0
    %2539 = vmatprep.subr.mxu0 0.0
    %2540 = vmatpush1.xpose.msra.mxu0 0.0
    %2541 = vmatprep.subr.mxu0 0.0
    %2542 = vmatpush1.xpose.msra.mxu0 0.0
    %2543 = vmatprep.subr.mxu0 0.0
    %2544 = vmatpush1.xpose.msra.mxu0 0.0
    %2545 = vmatprep.subr.mxu0 0.0
    %2546 = vmatpush1.xpose.msra.mxu0 0.0
    %2547 = vmatprep.subr.mxu0 0.0
    %2548 = vmatpush1.xpose.msra.mxu0 0.0
    %2549 = vmatprep.subr.mxu0 0.0
    %2550 = vmatpush1.xpose.msra.mxu0 %v2517
    %2551 = vmatprep.subr.mxu0 0.0
    %2552 = vmatpush2.xpose.msra.mxu0 0.0
    %2553 = vmatprep.subr.mxu0 0.0
    %2554 = vmatpush2.xpose.msra.mxu0 0.0
    %2555 = vmatprep.subr.mxu0 0.0
    %2556 = vmatpush2.xpose.msra.mxu0 0.0
    %2557 = vmatprep.subr.mxu0 0.0
    %2558 = vmatpush2.xpose.msra.mxu0 0.0
    %2559 = vmatprep.subr.mxu0 0.0
    %2560 = vmatpush2.xpose.msra.mxu0 0.0
    %2561 = vmatprep.subr.mxu0 0.0
    %2562 = vmatpush2.xpose.msra.mxu0 0.0
    %2563 = vmatprep.subr.mxu0 0.0
    %2564 = vmatpush2.xpose.msra.mxu0 0.0
    %2565 = vmatprep.subr.mxu0 0.0
    %2566 = vmatpush2.xpose.msra.mxu0 0.0
    %2567 = vmatprep.subr.mxu0 0.0
    %2568 = vmatpush2.xpose.msra.mxu0 0.0
    %2569 = vmatprep.subr.mxu0 0.0
    %2570 = vmatpush2.xpose.msra.mxu0 0.0
    %2571 = vmatprep.subr.mxu0 0.0
    %2572 = vmatpush2.xpose.msra.mxu0 0.0
    %2573 = vmatprep.subr.mxu0 0.0
    %2574 = vmatpush2.xpose.msra.mxu0 0.0
    %2575 = vmatprep.subr.mxu0 0.0
    %2576 = vmatpush2.xpose.msra.mxu0 0.0
    %2577 = vmatprep.subr.mxu0 0.0
    %2578 = vmatpush2.xpose.msra.mxu0 0.0
    %2579 = vmatprep.subr.mxu0 0.0
    %2580 = vmatpush2.xpose.msra.mxu0 0.0
    %2581 = vmatprep.subr.mxu0 0.0
    %2582 = vmatpush2.xpose.msra.mxu0 0.0
    %2583 = vmatprep.mubr.f32.mxu0 0.0
    %2584 = vmatmul.mubr.f32.gmra.mxu0 %v2515
    %v2585 = vpop.f32.mrf.mxu0
    %v2586 = vadd.f32 0.0, %v2585
    %v2587 = vpop.f32.mrf.mxu0
    %2588 = vdwg.mxu0
    %v2589 = vmul.f32 %v2586, 0.17677669
    %v2590 = vadd.f32 %v2589, %v172
    %v2591 = vsel %vm307, %v2590, -inf
    %2592 = vmax.xlane.f32.xlu0 %v2591
    %v2593 = vpop.xlane.xlu0 %2592
    %v2594 = vsub.f32 %v2590, %v2593
    %v2595 = vmul.f32 %v2594, 1.442695
    %v2596 = vpow.pop %v2595
    %v2597 = vsel %vm307, %v2596, 0.0
    %2598 = vadd.xlane.f32.xlu0 %v2597
    %v2599 = vpop.xlane.xlu0 %2598
    %v2600 = vrcp.pop %v2599
    %v2601 = vmul.f32 %v2599, %v2600
    %v2602 = vsub.f32 2.0, %v2601
    %v2603 = vmul.f32 %v2600, %v2602
    %v2604 = vmul.f32 %v2596, %v2603
    %2605 = vrot.lane.b32.xlu0 %v2158, 48
    %v2606 = vpop.permute.xlu0 %2605
    %v2609 = vsel %vm307, %v2604, 0
    %2611 = vmatprep.subr.mxu0 0.0
    %2612 = vmatpush1.msra.mxu0 0.0
    %2613 = vmatprep.subr.mxu0 0.0
    %2614 = vmatpush1.msra.mxu0 0.0
    %2615 = vmatprep.subr.mxu0 0.0
    %2616 = vmatpush1.msra.mxu0 0.0
    %2617 = vmatprep.subr.mxu0 0.0
    %2618 = vmatpush1.msra.mxu0 0.0
    %2619 = vmatprep.subr.mxu0 0.0
    %2620 = vmatpush1.msra.mxu0 0.0
    %2621 = vmatprep.subr.mxu0 0.0
    %2622 = vmatpush1.msra.mxu0 0.0
    %2623 = vmatprep.subr.mxu0 0.0
    %2624 = vmatpush1.msra.mxu0 0.0
    %2625 = vmatprep.subr.mxu0 0.0
    %2626 = vmatpush1.msra.mxu0 0.0
    %2627 = vmatprep.subr.mxu0 0.0
    %2628 = vmatpush1.msra.mxu0 0.0
    %2629 = vmatprep.subr.mxu0 0.0
    %2630 = vmatpush1.msra.mxu0 0.0
    %2631 = vmatprep.subr.mxu0 0.0
    %2632 = vmatpush1.msra.mxu0 0.0
    %2633 = vmatprep.subr.mxu0 0.0
    %2634 = vmatpush1.msra.mxu0 0.0
    %2635 = vmatprep.subr.mxu0 0.0
    %2636 = vmatpush1.msra.mxu0 0.0
    %2637 = vmatprep.subr.mxu0 0.0
    %2638 = vmatpush1.msra.mxu0 0.0
    %2639 = vmatprep.subr.mxu0 0.0
    %2640 = vmatpush1.msra.mxu0 0.0
    %2641 = vmatprep.subr.mxu0 0.0
    %2642 = vmatpush1.msra.mxu0 %v2606
    %2643 = vmatprep.subr.mxu0 0.0
    %2644 = vmatpush2.msra.mxu0 0.0
    %2645 = vmatprep.subr.mxu0 0.0
    %2646 = vmatpush2.msra.mxu0 0.0
    %2647 = vmatprep.subr.mxu0 0.0
    %2648 = vmatpush2.msra.mxu0 0.0
    %2649 = vmatprep.subr.mxu0 0.0
    %2650 = vmatpush2.msra.mxu0 0.0
    %2651 = vmatprep.subr.mxu0 0.0
    %2652 = vmatpush2.msra.mxu0 0.0
    %2653 = vmatprep.subr.mxu0 0.0
    %2654 = vmatpush2.msra.mxu0 0.0
    %2655 = vmatprep.subr.mxu0 0.0
    %2656 = vmatpush2.msra.mxu0 0.0
    %2657 = vmatprep.subr.mxu0 0.0
    %2658 = vmatpush2.msra.mxu0 0.0
    %2659 = vmatprep.subr.mxu0 0.0
    %2660 = vmatpush2.msra.mxu0 0.0
    %2661 = vmatprep.subr.mxu0 0.0
    %2662 = vmatpush2.msra.mxu0 0.0
    %2663 = vmatprep.subr.mxu0 0.0
    %2664 = vmatpush2.msra.mxu0 0.0
    %2665 = vmatprep.subr.mxu0 0.0
    %2666 = vmatpush2.msra.mxu0 0.0
    %2667 = vmatprep.subr.mxu0 0.0
    %2668 = vmatpush2.msra.mxu0 0.0
    %2669 = vmatprep.subr.mxu0 0.0
    %2670 = vmatpush2.msra.mxu0 0.0
    %2671 = vmatprep.subr.mxu0 0.0
    %2672 = vmatpush2.msra.mxu0 0.0
    %2673 = vmatprep.subr.mxu0 0.0
    %2674 = vmatpush2.msra.mxu0 0.0
    %2675 = vmatprep.mubr.f32.mxu0 0.0
    %2676 = vmatmul.mubr.f32.gmra.mxu0 %v2609
    %v2677 = vpop.f32.mrf.mxu0
    %v2678 = vadd.f32 0.0, %v2677
    %v2679 = vpop.f32.mrf.mxu0
    %2680 = vdwg.mxu0
    %2682 = vrot.lane.b32.xlu0 %v2678, 16
    %v2683 = vpop.permute.xlu0 %2682
    %2685 = vst.msk [vmem:[#allocation2] sm:$0xff] %vm825, %v2683
    %2686 = vrot.lane.b32.xlu0 %v2158, 104
    %v2687 = vpop.permute.xlu0 %2686
    %2688 = vrot.lane.b32.xlu0 %v2158, 72
    %v2689 = vpop.permute.xlu0 %2688
    %v2690 = vsel %vm307, %v2687, 0
    %v2692 = vsel %vm307, %v2689, 0
    %2694 = vmatprep.subr.mxu0 0.0
    %2695 = vmatpush1.xpose.msra.mxu0 0.0
    %2696 = vmatprep.subr.mxu0 0.0
    %2697 = vmatpush1.xpose.msra.mxu0 0.0
    %2698 = vmatprep.subr.mxu0 0.0
    %2699 = vmatpush1.xpose.msra.mxu0 0.0
    %2700 = vmatprep.subr.mxu0 0.0
    %2701 = vmatpush1.xpose.msra.mxu0 0.0
    %2702 = vmatprep.subr.mxu0 0.0
    %2703 = vmatpush1.xpose.msra.mxu0 0.0
    %2704 = vmatprep.subr.mxu0 0.0
    %2705 = vmatpush1.xpose.msra.mxu0 0.0
    %2706 = vmatprep.subr.mxu0 0.0
    %2707 = vmatpush1.xpose.msra.mxu0 0.0
    %2708 = vmatprep.subr.mxu0 0.0
    %2709 = vmatpush1.xpose.msra.mxu0 0.0
    %2710 = vmatprep.subr.mxu0 0.0
    %2711 = vmatpush1.xpose.msra.mxu0 0.0
    %2712 = vmatprep.subr.mxu0 0.0
    %2713 = vmatpush1.xpose.msra.mxu0 0.0
    %2714 = vmatprep.subr.mxu0 0.0
    %2715 = vmatpush1.xpose.msra.mxu0 0.0
    %2716 = vmatprep.subr.mxu0 0.0
    %2717 = vmatpush1.xpose.msra.mxu0 0.0
    %2718 = vmatprep.subr.mxu0 0.0
    %2719 = vmatpush1.xpose.msra.mxu0 0.0
    %2720 = vmatprep.subr.mxu0 0.0
    %2721 = vmatpush1.xpose.msra.mxu0 0.0
    %2722 = vmatprep.subr.mxu0 0.0
    %2723 = vmatpush1.xpose.msra.mxu0 0.0
    %2724 = vmatprep.subr.mxu0 0.0
    %2725 = vmatpush1.xpose.msra.mxu0 %v2692
    %2726 = vmatprep.subr.mxu0 0.0
    %2727 = vmatpush2.xpose.msra.mxu0 0.0
    %2728 = vmatprep.subr.mxu0 0.0
    %2729 = vmatpush2.xpose.msra.mxu0 0.0
    %2730 = vmatprep.subr.mxu0 0.0
    %2731 = vmatpush2.xpose.msra.mxu0 0.0
    %2732 = vmatprep.subr.mxu0 0.0
    %2733 = vmatpush2.xpose.msra.mxu0 0.0
    %2734 = vmatprep.subr.mxu0 0.0
    %2735 = vmatpush2.xpose.msra.mxu0 0.0
    %2736 = vmatprep.subr.mxu0 0.0
    %2737 = vmatpush2.xpose.msra.mxu0 0.0
    %2738 = vmatprep.subr.mxu0 0.0
    %2739 = vmatpush2.xpose.msra.mxu0 0.0
    %2740 = vmatprep.subr.mxu0 0.0
    %2741 = vmatpush2.xpose.msra.mxu0 0.0
    %2742 = vmatprep.subr.mxu0 0.0
    %2743 = vmatpush2.xpose.msra.mxu0 0.0
    %2744 = vmatprep.subr.mxu0 0.0
    %2745 = vmatpush2.xpose.msra.mxu0 0.0
    %2746 = vmatprep.subr.mxu0 0.0
    %2747 = vmatpush2.xpose.msra.mxu0 0.0
    %2748 = vmatprep.subr.mxu0 0.0
    %2749 = vmatpush2.xpose.msra.mxu0 0.0
    %2750 = vmatprep.subr.mxu0 0.0
    %2751 = vmatpush2.xpose.msra.mxu0 0.0
    %2752 = vmatprep.subr.mxu0 0.0
    %2753 = vmatpush2.xpose.msra.mxu0 0.0
    %2754 = vmatprep.subr.mxu0 0.0
    %2755 = vmatpush2.xpose.msra.mxu0 0.0
    %2756 = vmatprep.subr.mxu0 0.0
    %2757 = vmatpush2.xpose.msra.mxu0 0.0
    %2758 = vmatprep.mubr.f32.mxu0 0.0
    %2759 = vmatmul.mubr.f32.gmra.mxu0 %v2690
    %v2760 = vpop.f32.mrf.mxu0
    %v2761 = vadd.f32 0.0, %v2760
    %v2762 = vpop.f32.mrf.mxu0
    %2763 = vdwg.mxu0
    %v2764 = vmul.f32 %v2761, 0.17677669
    %v2765 = vadd.f32 %v2764, %v172
    %v2766 = vsel %vm307, %v2765, -inf
    %2767 = vmax.xlane.f32.xlu0 %v2766
    %v2768 = vpop.xlane.xlu0 %2767
    %v2769 = vsub.f32 %v2765, %v2768
    %v2770 = vmul.f32 %v2769, 1.442695
    %v2771 = vpow.pop %v2770
    %v2772 = vsel %vm307, %v2771, 0.0
    %2773 = vadd.xlane.f32.xlu0 %v2772
    %v2774 = vpop.xlane.xlu0 %2773
    %v2775 = vrcp.pop %v2774
    %v2776 = vmul.f32 %v2774, %v2775
    %v2777 = vsub.f32 2.0, %v2776
    %v2778 = vmul.f32 %v2775, %v2777
    %v2779 = vmul.f32 %v2771, %v2778
    %2780 = vrot.lane.b32.xlu0 %v2158, 40
    %v2781 = vpop.permute.xlu0 %2780
    %v2784 = vsel %vm307, %v2779, 0
    %2786 = vmatprep.subr.mxu0 0.0
    %2787 = vmatpush1.msra.mxu0 0.0
    %2788 = vmatprep.subr.mxu0 0.0
    %2789 = vmatpush1.msra.mxu0 0.0
    %2790 = vmatprep.subr.mxu0 0.0
    %2791 = vmatpush1.msra.mxu0 0.0
    %2792 = vmatprep.subr.mxu0 0.0
    %2793 = vmatpush1.msra.mxu0 0.0
    %2794 = vmatprep.subr.mxu0 0.0
    %2795 = vmatpush1.msra.mxu0 0.0
    %2796 = vmatprep.subr.mxu0 0.0
    %2797 = vmatpush1.msra.mxu0 0.0
    %2798 = vmatprep.subr.mxu0 0.0
    %2799 = vmatpush1.msra.mxu0 0.0
    %2800 = vmatprep.subr.mxu0 0.0
    %2801 = vmatpush1.msra.mxu0 0.0
    %2802 = vmatprep.subr.mxu0 0.0
    %2803 = vmatpush1.msra.mxu0 0.0
    %2804 = vmatprep.subr.mxu0 0.0
    %2805 = vmatpush1.msra.mxu0 0.0
    %2806 = vmatprep.subr.mxu0 0.0
    %2807 = vmatpush1.msra.mxu0 0.0
    %2808 = vmatprep.subr.mxu0 0.0
    %2809 = vmatpush1.msra.mxu0 0.0
    %2810 = vmatprep.subr.mxu0 0.0
    %2811 = vmatpush1.msra.mxu0 0.0
    %2812 = vmatprep.subr.mxu0 0.0
    %2813 = vmatpush1.msra.mxu0 0.0
    %2814 = vmatprep.subr.mxu0 0.0
    %2815 = vmatpush1.msra.mxu0 0.0
    %2816 = vmatprep.subr.mxu0 0.0
    %2817 = vmatpush1.msra.mxu0 %v2781
    %2818 = vmatprep.subr.mxu0 0.0
    %2819 = vmatpush2.msra.mxu0 0.0
    %2820 = vmatprep.subr.mxu0 0.0
    %2821 = vmatpush2.msra.mxu0 0.0
    %2822 = vmatprep.subr.mxu0 0.0
    %2823 = vmatpush2.msra.mxu0 0.0
    %2824 = vmatprep.subr.mxu0 0.0
    %2825 = vmatpush2.msra.mxu0 0.0
    %2826 = vmatprep.subr.mxu0 0.0
    %2827 = vmatpush2.msra.mxu0 0.0
    %2828 = vmatprep.subr.mxu0 0.0
    %2829 = vmatpush2.msra.mxu0 0.0
    %2830 = vmatprep.subr.mxu0 0.0
    %2831 = vmatpush2.msra.mxu0 0.0
    %2832 = vmatprep.subr.mxu0 0.0
    %2833 = vmatpush2.msra.mxu0 0.0
    %2834 = vmatprep.subr.mxu0 0.0
    %2835 = vmatpush2.msra.mxu0 0.0
    %2836 = vmatprep.subr.mxu0 0.0
    %2837 = vmatpush2.msra.mxu0 0.0
    %2838 = vmatprep.subr.mxu0 0.0
    %2839 = vmatpush2.msra.mxu0 0.0
    %2840 = vmatprep.subr.mxu0 0.0
    %2841 = vmatpush2.msra.mxu0 0.0
    %2842 = vmatprep.subr.mxu0 0.0
    %2843 = vmatpush2.msra.mxu0 0.0
    %2844 = vmatprep.subr.mxu0 0.0
    %2845 = vmatpush2.msra.mxu0 0.0
    %2846 = vmatprep.subr.mxu0 0.0
    %2847 = vmatpush2.msra.mxu0 0.0
    %2848 = vmatprep.subr.mxu0 0.0
    %2849 = vmatpush2.msra.mxu0 0.0
    %2850 = vmatprep.mubr.f32.mxu0 0.0
    %2851 = vmatmul.mubr.f32.gmra.mxu0 %v2784
    %v2852 = vpop.f32.mrf.mxu0
    %v2853 = vadd.f32 0.0, %v2852
    %v2854 = vpop.f32.mrf.mxu0
    %2855 = vdwg.mxu0
    %2857 = vrot.lane.b32.xlu0 %v2853, 24
    %v2858 = vpop.permute.xlu0 %2857
    %2860 = vst.msk [vmem:[#allocation2] sm:$0xff] %vm1001, %v2858
    %2862 = vrot.lane.b32.xlu0 %v2163, 96
    %v2863 = vpop.permute.xlu0 %2862
    %v2864 = vsel %vm307, %v2163, 0
    %v2866 = vsel %vm307, %v2863, 0
    %2868 = vmatprep.subr.mxu0 0.0
    %2869 = vmatpush1.xpose.msra.mxu0 0.0
    %2870 = vmatprep.subr.mxu0 0.0
    %2871 = vmatpush1.xpose.msra.mxu0 0.0
    %2872 = vmatprep.subr.mxu0 0.0
    %2873 = vmatpush1.xpose.msra.mxu0 0.0
    %2874 = vmatprep.subr.mxu0 0.0
    %2875 = vmatpush1.xpose.msra.mxu0 0.0
    %2876 = vmatprep.subr.mxu0 0.0
    %2877 = vmatpush1.xpose.msra.mxu0 0.0
    %2878 = vmatprep.subr.mxu0 0.0
    %2879 = vmatpush1.xpose.msra.mxu0 0.0
    %2880 = vmatprep.subr.mxu0 0.0
    %2881 = vmatpush1.xpose.msra.mxu0 0.0
    %2882 = vmatprep.subr.mxu0 0.0
    %2883 = vmatpush1.xpose.msra.mxu0 0.0
    %2884 = vmatprep.subr.mxu0 0.0
    %2885 = vmatpush1.xpose.msra.mxu0 0.0
    %2886 = vmatprep.subr.mxu0 0.0
    %2887 = vmatpush1.xpose.msra.mxu0 0.0
    %2888 = vmatprep.subr.mxu0 0.0
    %2889 = vmatpush1.xpose.msra.mxu0 0.0
    %2890 = vmatprep.subr.mxu0 0.0
    %2891 = vmatpush1.xpose.msra.mxu0 0.0
    %2892 = vmatprep.subr.mxu0 0.0
    %2893 = vmatpush1.xpose.msra.mxu0 0.0
    %2894 = vmatprep.subr.mxu0 0.0
    %2895 = vmatpush1.xpose.msra.mxu0 0.0
    %2896 = vmatprep.subr.mxu0 0.0
    %2897 = vmatpush1.xpose.msra.mxu0 0.0
    %2898 = vmatprep.subr.mxu0 0.0
    %2899 = vmatpush1.xpose.msra.mxu0 %v2866
    %2900 = vmatprep.subr.mxu0 0.0
    %2901 = vmatpush2.xpose.msra.mxu0 0.0
    %2902 = vmatprep.subr.mxu0 0.0
    %2903 = vmatpush2.xpose.msra.mxu0 0.0
    %2904 = vmatprep.subr.mxu0 0.0
    %2905 = vmatpush2.xpose.msra.mxu0 0.0
    %2906 = vmatprep.subr.mxu0 0.0
    %2907 = vmatpush2.xpose.msra.mxu0 0.0
    %2908 = vmatprep.subr.mxu0 0.0
    %2909 = vmatpush2.xpose.msra.mxu0 0.0
    %2910 = vmatprep.subr.mxu0 0.0
    %2911 = vmatpush2.xpose.msra.mxu0 0.0
    %2912 = vmatprep.subr.mxu0 0.0
    %2913 = vmatpush2.xpose.msra.mxu0 0.0
    %2914 = vmatprep.subr.mxu0 0.0
    %2915 = vmatpush2.xpose.msra.mxu0 0.0
    %2916 = vmatprep.subr.mxu0 0.0
    %2917 = vmatpush2.xpose.msra.mxu0 0.0
    %2918 = vmatprep.subr.mxu0 0.0
    %2919 = vmatpush2.xpose.msra.mxu0 0.0
    %2920 = vmatprep.subr.mxu0 0.0
    %2921 = vmatpush2.xpose.msra.mxu0 0.0
    %2922 = vmatprep.subr.mxu0 0.0
    %2923 = vmatpush2.xpose.msra.mxu0 0.0
    %2924 = vmatprep.subr.mxu0 0.0
    %2925 = vmatpush2.xpose.msra.mxu0 0.0
    %2926 = vmatprep.subr.mxu0 0.0
    %2927 = vmatpush2.xpose.msra.mxu0 0.0
    %2928 = vmatprep.subr.mxu0 0.0
    %2929 = vmatpush2.xpose.msra.mxu0 0.0
    %2930 = vmatprep.subr.mxu0 0.0
    %2931 = vmatpush2.xpose.msra.mxu0 0.0
    %2932 = vmatprep.mubr.f32.mxu0 0.0
    %2933 = vmatmul.mubr.f32.gmra.mxu0 %v2864
    %v2934 = vpop.f32.mrf.mxu0
    %v2935 = vadd.f32 0.0, %v2934
    %v2936 = vpop.f32.mrf.mxu0
    %2937 = vdwg.mxu0
    %v2938 = vmul.f32 %v2935, 0.17677669
    %v2939 = vadd.f32 %v2938, %v172
    %v2940 = vsel %vm307, %v2939, -inf
    %2941 = vmax.xlane.f32.xlu0 %v2940
    %v2942 = vpop.xlane.xlu0 %2941
    %v2943 = vsub.f32 %v2939, %v2942
    %v2944 = vmul.f32 %v2943, 1.442695
    %v2945 = vpow.pop %v2944
    %v2946 = vsel %vm307, %v2945, 0.0
    %2947 = vadd.xlane.f32.xlu0 %v2946
    %v2948 = vpop.xlane.xlu0 %2947
    %v2949 = vrcp.pop %v2948
    %v2950 = vmul.f32 %v2948, %v2949
    %v2951 = vsub.f32 2.0, %v2950
    %v2952 = vmul.f32 %v2949, %v2951
    %v2953 = vmul.f32 %v2945, %v2952
    %2954 = vrot.lane.b32.xlu0 %v2163, 64
    %v2955 = vpop.permute.xlu0 %2954
    %v2958 = vsel %vm307, %v2953, 0
    %2960 = vmatprep.subr.mxu0 0.0
    %2961 = vmatpush1.msra.mxu0 0.0
    %2962 = vmatprep.subr.mxu0 0.0
    %2963 = vmatpush1.msra.mxu0 0.0
    %2964 = vmatprep.subr.mxu0 0.0
    %2965 = vmatpush1.msra.mxu0 0.0
    %2966 = vmatprep.subr.mxu0 0.0
    %2967 = vmatpush1.msra.mxu0 0.0
    %2968 = vmatprep.subr.mxu0 0.0
    %2969 = vmatpush1.msra.mxu0 0.0
    %2970 = vmatprep.subr.mxu0 0.0
    %2971 = vmatpush1.msra.mxu0 0.0
    %2972 = vmatprep.subr.mxu0 0.0
    %2973 = vmatpush1.msra.mxu0 0.0
    %2974 = vmatprep.subr.mxu0 0.0
    %2975 = vmatpush1.msra.mxu0 0.0
    %2976 = vmatprep.subr.mxu0 0.0
    %2977 = vmatpush1.msra.mxu0 0.0
    %2978 = vmatprep.subr.mxu0 0.0
    %2979 = vmatpush1.msra.mxu0 0.0
    %2980 = vmatprep.subr.mxu0 0.0
    %2981 = vmatpush1.msra.mxu0 0.0
    %2982 = vmatprep.subr.mxu0 0.0
    %2983 = vmatpush1.msra.mxu0 0.0
    %2984 = vmatprep.subr.mxu0 0.0
    %2985 = vmatpush1.msra.mxu0 0.0
    %2986 = vmatprep.subr.mxu0 0.0
    %2987 = vmatpush1.msra.mxu0 0.0
    %2988 = vmatprep.subr.mxu0 0.0
    %2989 = vmatpush1.msra.mxu0 0.0
    %2990 = vmatprep.subr.mxu0 0.0
    %2991 = vmatpush1.msra.mxu0 %v2955
    %2992 = vmatprep.subr.mxu0 0.0
    %2993 = vmatpush2.msra.mxu0 0.0
    %2994 = vmatprep.subr.mxu0 0.0
    %2995 = vmatpush2.msra.mxu0 0.0
    %2996 = vmatprep.subr.mxu0 0.0
    %2997 = vmatpush2.msra.mxu0 0.0
    %2998 = vmatprep.subr.mxu0 0.0
    %2999 = vmatpush2.msra.mxu0 0.0
    %3000 = vmatprep.subr.mxu0 0.0
    %3001 = vmatpush2.msra.mxu0 0.0
    %3002 = vmatprep.subr.mxu0 0.0
    %3003 = vmatpush2.msra.mxu0 0.0
    %3004 = vmatprep.subr.mxu0 0.0
    %3005 = vmatpush2.msra.mxu0 0.0
    %3006 = vmatprep.subr.mxu0 0.0
    %3007 = vmatpush2.msra.mxu0 0.0
    %3008 = vmatprep.subr.mxu0 0.0
    %3009 = vmatpush2.msra.mxu0 0.0
    %3010 = vmatprep.subr.mxu0 0.0
    %3011 = vmatpush2.msra.mxu0 0.0
    %3012 = vmatprep.subr.mxu0 0.0
    %3013 = vmatpush2.msra.mxu0 0.0
    %3014 = vmatprep.subr.mxu0 0.0
    %3015 = vmatpush2.msra.mxu0 0.0
    %3016 = vmatprep.subr.mxu0 0.0
    %3017 = vmatpush2.msra.mxu0 0.0
    %3018 = vmatprep.subr.mxu0 0.0
    %3019 = vmatpush2.msra.mxu0 0.0
    %3020 = vmatprep.subr.mxu0 0.0
    %3021 = vmatpush2.msra.mxu0 0.0
    %3022 = vmatprep.subr.mxu0 0.0
    %3023 = vmatpush2.msra.mxu0 0.0
    %3024 = vmatprep.mubr.f32.mxu0 0.0
    %3025 = vmatmul.mubr.f32.gmra.mxu0 %v2958
    %v3026 = vpop.f32.mrf.mxu0
    %v3027 = vadd.f32 0.0, %v3026
    %v3028 = vpop.f32.mrf.mxu0
    %3029 = vdwg.mxu0
    %3030 = vst.msk [vmem:[#allocation2 + $0x8] sm:$0xff] %vm307, %v3027
    %3031 = vrot.lane.b32.xlu0 %v2163, 120
    %v3032 = vpop.permute.xlu0 %3031
    %3033 = vrot.lane.b32.xlu0 %v2163, 88
    %v3034 = vpop.permute.xlu0 %3033
    %v3035 = vsel %vm307, %v3032, 0
    %v3037 = vsel %vm307, %v3034, 0
    %3039 = vmatprep.subr.mxu0 0.0
    %3040 = vmatpush1.xpose.msra.mxu0 0.0
    %3041 = vmatprep.subr.mxu0 0.0
    %3042 = vmatpush1.xpose.msra.mxu0 0.0
    %3043 = vmatprep.subr.mxu0 0.0
    %3044 = vmatpush1.xpose.msra.mxu0 0.0
    %3045 = vmatprep.subr.mxu0 0.0
    %3046 = vmatpush1.xpose.msra.mxu0 0.0
    %3047 = vmatprep.subr.mxu0 0.0
    %3048 = vmatpush1.xpose.msra.mxu0 0.0
    %3049 = vmatprep.subr.mxu0 0.0
    %3050 = vmatpush1.xpose.msra.mxu0 0.0
    %3051 = vmatprep.subr.mxu0 0.0
    %3052 = vmatpush1.xpose.msra.mxu0 0.0
    %3053 = vmatprep.subr.mxu0 0.0
    %3054 = vmatpush1.xpose.msra.mxu0 0.0
    %3055 = vmatprep.subr.mxu0 0.0
    %3056 = vmatpush1.xpose.msra.mxu0 0.0
    %3057 = vmatprep.subr.mxu0 0.0
    %3058 = vmatpush1.xpose.msra.mxu0 0.0
    %3059 = vmatprep.subr.mxu0 0.0
    %3060 = vmatpush1.xpose.msra.mxu0 0.0
    %3061 = vmatprep.subr.mxu0 0.0
    %3062 = vmatpush1.xpose.msra.mxu0 0.0
    %3063 = vmatprep.subr.mxu0 0.0
    %3064 = vmatpush1.xpose.msra.mxu0 0.0
    %3065 = vmatprep.subr.mxu0 0.0
    %3066 = vmatpush1.xpose.msra.mxu0 0.0
    %3067 = vmatprep.subr.mxu0 0.0
    %3068 = vmatpush1.xpose.msra.mxu0 0.0
    %3069 = vmatprep.subr.mxu0 0.0
    %3070 = vmatpush1.xpose.msra.mxu0 %v3037
    %3071 = vmatprep.subr.mxu0 0.0
    %3072 = vmatpush2.xpose.msra.mxu0 0.0
    %3073 = vmatprep.subr.mxu0 0.0
    %3074 = vmatpush2.xpose.msra.mxu0 0.0
    %3075 = vmatprep.subr.mxu0 0.0
    %3076 = vmatpush2.xpose.msra.mxu0 0.0
    %3077 = vmatprep.subr.mxu0 0.0
    %3078 = vmatpush2.xpose.msra.mxu0 0.0
    %3079 = vmatprep.subr.mxu0 0.0
    %3080 = vmatpush2.xpose.msra.mxu0 0.0
    %3081 = vmatprep.subr.mxu0 0.0
    %3082 = vmatpush2.xpose.msra.mxu0 0.0
    %3083 = vmatprep.subr.mxu0 0.0
    %3084 = vmatpush2.xpose.msra.mxu0 0.0
    %3085 = vmatprep.subr.mxu0 0.0
    %3086 = vmatpush2.xpose.msra.mxu0 0.0
    %3087 = vmatprep.subr.mxu0 0.0
    %3088 = vmatpush2.xpose.msra.mxu0 0.0
    %3089 = vmatprep.subr.mxu0 0.0
    %3090 = vmatpush2.xpose.msra.mxu0 0.0
    %3091 = vmatprep.subr.mxu0 0.0
    %3092 = vmatpush2.xpose.msra.mxu0 0.0
    %3093 = vmatprep.subr.mxu0 0.0
    %3094 = vmatpush2.xpose.msra.mxu0 0.0
    %3095 = vmatprep.subr.mxu0 0.0
    %3096 = vmatpush2.xpose.msra.mxu0 0.0
    %3097 = vmatprep.subr.mxu0 0.0
    %3098 = vmatpush2.xpose.msra.mxu0 0.0
    %3099 = vmatprep.subr.mxu0 0.0
    %3100 = vmatpush2.xpose.msra.mxu0 0.0
    %3101 = vmatprep.subr.mxu0 0.0
    %3102 = vmatpush2.xpose.msra.mxu0 0.0
    %3103 = vmatprep.mubr.f32.mxu0 0.0
    %3104 = vmatmul.mubr.f32.gmra.mxu0 %v3035
    %v3105 = vpop.f32.mrf.mxu0
    %v3106 = vadd.f32 0.0, %v3105
    %v3107 = vpop.f32.mrf.mxu0
    %3108 = vdwg.mxu0
    %v3109 = vmul.f32 %v3106, 0.17677669
    %v3110 = vadd.f32 %v3109, %v172
    %v3111 = vsel %vm307, %v3110, -inf
    %3112 = vmax.xlane.f32.xlu0 %v3111
    %v3113 = vpop.xlane.xlu0 %3112
    %v3114 = vsub.f32 %v3110, %v3113
    %v3115 = vmul.f32 %v3114, 1.442695
    %v3116 = vpow.pop %v3115
    %v3117 = vsel %vm307, %v3116, 0.0
    %3118 = vadd.xlane.f32.xlu0 %v3117
    %v3119 = vpop.xlane.xlu0 %3118
    %v3120 = vrcp.pop %v3119
    %v3121 = vmul.f32 %v3119, %v3120
    %v3122 = vsub.f32 2.0, %v3121
    %v3123 = vmul.f32 %v3120, %v3122
    %v3124 = vmul.f32 %v3116, %v3123
    %3125 = vrot.lane.b32.xlu0 %v2163, 56
    %v3126 = vpop.permute.xlu0 %3125
    %v3129 = vsel %vm307, %v3124, 0
    %3131 = vmatprep.subr.mxu0 0.0
    %3132 = vmatpush1.msra.mxu0 0.0
    %3133 = vmatprep.subr.mxu0 0.0
    %3134 = vmatpush1.msra.mxu0 0.0
    %3135 = vmatprep.subr.mxu0 0.0
    %3136 = vmatpush1.msra.mxu0 0.0
    %3137 = vmatprep.subr.mxu0 0.0
    %3138 = vmatpush1.msra.mxu0 0.0
    %3139 = vmatprep.subr.mxu0 0.0
    %3140 = vmatpush1.msra.mxu0 0.0
    %3141 = vmatprep.subr.mxu0 0.0
    %3142 = vmatpush1.msra.mxu0 0.0
    %3143 = vmatprep.subr.mxu0 0.0
    %3144 = vmatpush1.msra.mxu0 0.0
    %3145 = vmatprep.subr.mxu0 0.0
    %3146 = vmatpush1.msra.mxu0 0.0
    %3147 = vmatprep.subr.mxu0 0.0
    %3148 = vmatpush1.msra.mxu0 0.0
    %3149 = vmatprep.subr.mxu0 0.0
    %3150 = vmatpush1.msra.mxu0 0.0
    %3151 = vmatprep.subr.mxu0 0.0
    %3152 = vmatpush1.msra.mxu0 0.0
    %3153 = vmatprep.subr.mxu0 0.0
    %3154 = vmatpush1.msra.mxu0 0.0
    %3155 = vmatprep.subr.mxu0 0.0
    %3156 = vmatpush1.msra.mxu0 0.0
    %3157 = vmatprep.subr.mxu0 0.0
    %3158 = vmatpush1.msra.mxu0 0.0
    %3159 = vmatprep.subr.mxu0 0.0
    %3160 = vmatpush1.msra.mxu0 0.0
    %3161 = vmatprep.subr.mxu0 0.0
    %3162 = vmatpush1.msra.mxu0 %v3126
    %3163 = vmatprep.subr.mxu0 0.0
    %3164 = vmatpush2.msra.mxu0 0.0
    %3165 = vmatprep.subr.mxu0 0.0
    %3166 = vmatpush2.msra.mxu0 0.0
    %3167 = vmatprep.subr.mxu0 0.0
    %3168 = vmatpush2.msra.mxu0 0.0
    %3169 = vmatprep.subr.mxu0 0.0
    %3170 = vmatpush2.msra.mxu0 0.0
    %3171 = vmatprep.subr.mxu0 0.0
    %3172 = vmatpush2.msra.mxu0 0.0
    %3173 = vmatprep.subr.mxu0 0.0
    %3174 = vmatpush2.msra.mxu0 0.0
    %3175 = vmatprep.subr.mxu0 0.0
    %3176 = vmatpush2.msra.mxu0 0.0
    %3177 = vmatprep.subr.mxu0 0.0
    %3178 = vmatpush2.msra.mxu0 0.0
    %3179 = vmatprep.subr.mxu0 0.0
    %3180 = vmatpush2.msra.mxu0 0.0
    %3181 = vmatprep.subr.mxu0 0.0
    %3182 = vmatpush2.msra.mxu0 0.0
    %3183 = vmatprep.subr.mxu0 0.0
    %3184 = vmatpush2.msra.mxu0 0.0
    %3185 = vmatprep.subr.mxu0 0.0
    %3186 = vmatpush2.msra.mxu0 0.0
    %3187 = vmatprep.subr.mxu0 0.0
    %3188 = vmatpush2.msra.mxu0 0.0
    %3189 = vmatprep.subr.mxu0 0.0
    %3190 = vmatpush2.msra.mxu0 0.0
    %3191 = vmatprep.subr.mxu0 0.0
    %3192 = vmatpush2.msra.mxu0 0.0
    %3193 = vmatprep.subr.mxu0 0.0
    %3194 = vmatpush2.msra.mxu0 0.0
    %3195 = vmatprep.mubr.f32.mxu0 0.0
    %3196 = vmatmul.mubr.f32.gmra.mxu0 %v3129
    %v3197 = vpop.f32.mrf.mxu0
    %v3198 = vadd.f32 0.0, %v3197
    %v3199 = vpop.f32.mrf.mxu0
    %3200 = vdwg.mxu0
    %3202 = vrot.lane.b32.xlu0 %v3198, 8
    %v3203 = vpop.permute.xlu0 %3202
    %3205 = vst.msk [vmem:[#allocation2 + $0x8] sm:$0xff] %vm649, %v3203
    %3206 = vrot.lane.b32.xlu0 %v2163, 112
    %v3207 = vpop.permute.xlu0 %3206
    %3208 = vrot.lane.b32.xlu0 %v2163, 80
    %v3209 = vpop.permute.xlu0 %3208
    %v3210 = vsel %vm307, %v3207, 0
    %v3212 = vsel %vm307, %v3209, 0
    %3214 = vmatprep.subr.mxu0 0.0
    %3215 = vmatpush1.xpose.msra.mxu0 0.0
    %3216 = vmatprep.subr.mxu0 0.0
    %3217 = vmatpush1.xpose.msra.mxu0 0.0
    %3218 = vmatprep.subr.mxu0 0.0
    %3219 = vmatpush1.xpose.msra.mxu0 0.0
    %3220 = vmatprep.subr.mxu0 0.0
    %3221 = vmatpush1.xpose.msra.mxu0 0.0
    %3222 = vmatprep.subr.mxu0 0.0
    %3223 = vmatpush1.xpose.msra.mxu0 0.0
    %3224 = vmatprep.subr.mxu0 0.0
    %3225 = vmatpush1.xpose.msra.mxu0 0.0
    %3226 = vmatprep.subr.mxu0 0.0
    %3227 = vmatpush1.xpose.msra.mxu0 0.0
    %3228 = vmatprep.subr.mxu0 0.0
    %3229 = vmatpush1.xpose.msra.mxu0 0.0
    %3230 = vmatprep.subr.mxu0 0.0
    %3231 = vmatpush1.xpose.msra.mxu0 0.0
    %3232 = vmatprep.subr.mxu0 0.0
    %3233 = vmatpush1.xpose.msra.mxu0 0.0
    %3234 = vmatprep.subr.mxu0 0.0
    %3235 = vmatpush1.xpose.msra.mxu0 0.0
    %3236 = vmatprep.subr.mxu0 0.0
    %3237 = vmatpush1.xpose.msra.mxu0 0.0
    %3238 = vmatprep.subr.mxu0 0.0
    %3239 = vmatpush1.xpose.msra.mxu0 0.0
    %3240 = vmatprep.subr.mxu0 0.0
    %3241 = vmatpush1.xpose.msra.mxu0 0.0
    %3242 = vmatprep.subr.mxu0 0.0
    %3243 = vmatpush1.xpose.msra.mxu0 0.0
    %3244 = vmatprep.subr.mxu0 0.0
    %3245 = vmatpush1.xpose.msra.mxu0 %v3212
    %3246 = vmatprep.subr.mxu0 0.0
    %3247 = vmatpush2.xpose.msra.mxu0 0.0
    %3248 = vmatprep.subr.mxu0 0.0
    %3249 = vmatpush2.xpose.msra.mxu0 0.0
    %3250 = vmatprep.subr.mxu0 0.0
    %3251 = vmatpush2.xpose.msra.mxu0 0.0
    %3252 = vmatprep.subr.mxu0 0.0
    %3253 = vmatpush2.xpose.msra.mxu0 0.0
    %3254 = vmatprep.subr.mxu0 0.0
    %3255 = vmatpush2.xpose.msra.mxu0 0.0
    %3256 = vmatprep.subr.mxu0 0.0
    %3257 = vmatpush2.xpose.msra.mxu0 0.0
    %3258 = vmatprep.subr.mxu0 0.0
    %3259 = vmatpush2.xpose.msra.mxu0 0.0
    %3260 = vmatprep.subr.mxu0 0.0
    %3261 = vmatpush2.xpose.msra.mxu0 0.0
    %3262 = vmatprep.subr.mxu0 0.0
    %3263 = vmatpush2.xpose.msra.mxu0 0.0
    %3264 = vmatprep.subr.mxu0 0.0
    %3265 = vmatpush2.xpose.msra.mxu0 0.0
    %3266 = vmatprep.subr.mxu0 0.0
    %3267 = vmatpush2.xpose.msra.mxu0 0.0
    %3268 = vmatprep.subr.mxu0 0.0
    %3269 = vmatpush2.xpose.msra.mxu0 0.0
    %3270 = vmatprep.subr.mxu0 0.0
    %3271 = vmatpush2.xpose.msra.mxu0 0.0
    %3272 = vmatprep.subr.mxu0 0.0
    %3273 = vmatpush2.xpose.msra.mxu0 0.0
    %3274 = vmatprep.subr.mxu0 0.0
    %3275 = vmatpush2.xpose.msra.mxu0 0.0
    %3276 = vmatprep.subr.mxu0 0.0
    %3277 = vmatpush2.xpose.msra.mxu0 0.0
    %3278 = vmatprep.mubr.f32.mxu0 0.0
    %3279 = vmatmul.mubr.f32.gmra.mxu0 %v3210
    %v3280 = vpop.f32.mrf.mxu0
    %v3281 = vadd.f32 0.0, %v3280
    %v3282 = vpop.f32.mrf.mxu0
    %3283 = vdwg.mxu0
    %v3284 = vmul.f32 %v3281, 0.17677669
    %v3285 = vadd.f32 %v3284, %v172
    %v3286 = vsel %vm307, %v3285, -inf
    %3287 = vmax.xlane.f32.xlu0 %v3286
    %v3288 = vpop.xlane.xlu0 %3287
    %v3289 = vsub.f32 %v3285, %v3288
    %v3290 = vmul.f32 %v3289, 1.442695
    %v3291 = vpow.pop %v3290
    %v3292 = vsel %vm307, %v3291, 0.0
    %3293 = vadd.xlane.f32.xlu0 %v3292
    %v3294 = vpop.xlane.xlu0 %3293
    %v3295 = vrcp.pop %v3294
    %v3296 = vmul.f32 %v3294, %v3295
    %v3297 = vsub.f32 2.0, %v3296
    %v3298 = vmul.f32 %v3295, %v3297
    %v3299 = vmul.f32 %v3291, %v3298
    %3300 = vrot.lane.b32.xlu0 %v2163, 48
    %v3301 = vpop.permute.xlu0 %3300
    %v3304 = vsel %vm307, %v3299, 0
    %3306 = vmatprep.subr.mxu0 0.0
    %3307 = vmatpush1.msra.mxu0 0.0
    %3308 = vmatprep.subr.mxu0 0.0
    %3309 = vmatpush1.msra.mxu0 0.0
    %3310 = vmatprep.subr.mxu0 0.0
    %3311 = vmatpush1.msra.mxu0 0.0
    %3312 = vmatprep.subr.mxu0 0.0
    %3313 = vmatpush1.msra.mxu0 0.0
    %3314 = vmatprep.subr.mxu0 0.0
    %3315 = vmatpush1.msra.mxu0 0.0
    %3316 = vmatprep.subr.mxu0 0.0
    %3317 = vmatpush1.msra.mxu0 0.0
    %3318 = vmatprep.subr.mxu0 0.0
    %3319 = vmatpush1.msra.mxu0 0.0
    %3320 = vmatprep.subr.mxu0 0.0
    %3321 = vmatpush1.msra.mxu0 0.0
    %3322 = vmatprep.subr.mxu0 0.0
    %3323 = vmatpush1.msra.mxu0 0.0
    %3324 = vmatprep.subr.mxu0 0.0
    %3325 = vmatpush1.msra.mxu0 0.0
    %3326 = vmatprep.subr.mxu0 0.0
    %3327 = vmatpush1.msra.mxu0 0.0
    %3328 = vmatprep.subr.mxu0 0.0
    %3329 = vmatpush1.msra.mxu0 0.0
    %3330 = vmatprep.subr.mxu0 0.0
    %3331 = vmatpush1.msra.mxu0 0.0
    %3332 = vmatprep.subr.mxu0 0.0
    %3333 = vmatpush1.msra.mxu0 0.0
    %3334 = vmatprep.subr.mxu0 0.0
    %3335 = vmatpush1.msra.mxu0 0.0
    %3336 = vmatprep.subr.mxu0 0.0
    %3337 = vmatpush1.msra.mxu0 %v3301
    %3338 = vmatprep.subr.mxu0 0.0
    %3339 = vmatpush2.msra.mxu0 0.0
    %3340 = vmatprep.subr.mxu0 0.0
    %3341 = vmatpush2.msra.mxu0 0.0
    %3342 = vmatprep.subr.mxu0 0.0
    %3343 = vmatpush2.msra.mxu0 0.0
    %3344 = vmatprep.subr.mxu0 0.0
    %3345 = vmatpush2.msra.mxu0 0.0
    %3346 = vmatprep.subr.mxu0 0.0
    %3347 = vmatpush2.msra.mxu0 0.0
    %3348 = vmatprep.subr.mxu0 0.0
    %3349 = vmatpush2.msra.mxu0 0.0
    %3350 = vmatprep.subr.mxu0 0.0
    %3351 = vmatpush2.msra.mxu0 0.0
    %3352 = vmatprep.subr.mxu0 0.0
    %3353 = vmatpush2.msra.mxu0 0.0
    %3354 = vmatprep.subr.mxu0 0.0
    %3355 = vmatpush2.msra.mxu0 0.0
    %3356 = vmatprep.subr.mxu0 0.0
    %3357 = vmatpush2.msra.mxu0 0.0
    %3358 = vmatprep.subr.mxu0 0.0
    %3359 = vmatpush2.msra.mxu0 0.0
    %3360 = vmatprep.subr.mxu0 0.0
    %3361 = vmatpush2.msra.mxu0 0.0
    %3362 = vmatprep.subr.mxu0 0.0
    %3363 = vmatpush2.msra.mxu0 0.0
    %3364 = vmatprep.subr.mxu0 0.0
    %3365 = vmatpush2.msra.mxu0 0.0
    %3366 = vmatprep.subr.mxu0 0.0
    %3367 = vmatpush2.msra.mxu0 0.0
    %3368 = vmatprep.subr.mxu0 0.0
    %3369 = vmatpush2.msra.mxu0 0.0
    %3370 = vmatprep.mubr.f32.mxu0 0.0
    %3371 = vmatmul.mubr.f32.gmra.mxu0 %v3304
    %v3372 = vpop.f32.mrf.mxu0
    %v3373 = vadd.f32 0.0, %v3372
    %v3374 = vpop.f32.mrf.mxu0
    %3375 = vdwg.mxu0
    %3377 = vrot.lane.b32.xlu0 %v3373, 16
    %v3378 = vpop.permute.xlu0 %3377
    %3380 = vst.msk [vmem:[#allocation2 + $0x8] sm:$0xff] %vm825, %v3378
    %3381 = vrot.lane.b32.xlu0 %v2163, 104
    %v3382 = vpop.permute.xlu0 %3381
    %3383 = vrot.lane.b32.xlu0 %v2163, 72
    %v3384 = vpop.permute.xlu0 %3383
    %v3385 = vsel %vm307, %v3382, 0
    %v3387 = vsel %vm307, %v3384, 0
    %3389 = vmatprep.subr.mxu0 0.0
    %3390 = vmatpush1.xpose.msra.mxu0 0.0
    %3391 = vmatprep.subr.mxu0 0.0
    %3392 = vmatpush1.xpose.msra.mxu0 0.0
    %3393 = vmatprep.subr.mxu0 0.0
    %3394 = vmatpush1.xpose.msra.mxu0 0.0
    %3395 = vmatprep.subr.mxu0 0.0
    %3396 = vmatpush1.xpose.msra.mxu0 0.0
    %3397 = vmatprep.subr.mxu0 0.0
    %3398 = vmatpush1.xpose.msra.mxu0 0.0
    %3399 = vmatprep.subr.mxu0 0.0
    %3400 = vmatpush1.xpose.msra.mxu0 0.0
    %3401 = vmatprep.subr.mxu0 0.0
    %3402 = vmatpush1.xpose.msra.mxu0 0.0
    %3403 = vmatprep.subr.mxu0 0.0
    %3404 = vmatpush1.xpose.msra.mxu0 0.0
    %3405 = vmatprep.subr.mxu0 0.0
    %3406 = vmatpush1.xpose.msra.mxu0 0.0
    %3407 = vmatprep.subr.mxu0 0.0
    %3408 = vmatpush1.xpose.msra.mxu0 0.0
    %3409 = vmatprep.subr.mxu0 0.0
    %3410 = vmatpush1.xpose.msra.mxu0 0.0
    %3411 = vmatprep.subr.mxu0 0.0
    %3412 = vmatpush1.xpose.msra.mxu0 0.0
    %3413 = vmatprep.subr.mxu0 0.0
    %3414 = vmatpush1.xpose.msra.mxu0 0.0
    %3415 = vmatprep.subr.mxu0 0.0
    %3416 = vmatpush1.xpose.msra.mxu0 0.0
    %3417 = vmatprep.subr.mxu0 0.0
    %3418 = vmatpush1.xpose.msra.mxu0 0.0
    %3419 = vmatprep.subr.mxu0 0.0
    %3420 = vmatpush1.xpose.msra.mxu0 %v3387
    %3421 = vmatprep.subr.mxu0 0.0
    %3422 = vmatpush2.xpose.msra.mxu0 0.0
    %3423 = vmatprep.subr.mxu0 0.0
    %3424 = vmatpush2.xpose.msra.mxu0 0.0
    %3425 = vmatprep.subr.mxu0 0.0
    %3426 = vmatpush2.xpose.msra.mxu0 0.0
    %3427 = vmatprep.subr.mxu0 0.0
    %3428 = vmatpush2.xpose.msra.mxu0 0.0
    %3429 = vmatprep.subr.mxu0 0.0
    %3430 = vmatpush2.xpose.msra.mxu0 0.0
    %3431 = vmatprep.subr.mxu0 0.0
    %3432 = vmatpush2.xpose.msra.mxu0 0.0
    %3433 = vmatprep.subr.mxu0 0.0
    %3434 = vmatpush2.xpose.msra.mxu0 0.0
    %3435 = vmatprep.subr.mxu0 0.0
    %3436 = vmatpush2.xpose.msra.mxu0 0.0
    %3437 = vmatprep.subr.mxu0 0.0
    %3438 = vmatpush2.xpose.msra.mxu0 0.0
    %3439 = vmatprep.subr.mxu0 0.0
    %3440 = vmatpush2.xpose.msra.mxu0 0.0
    %3441 = vmatprep.subr.mxu0 0.0
    %3442 = vmatpush2.xpose.msra.mxu0 0.0
    %3443 = vmatprep.subr.mxu0 0.0
    %3444 = vmatpush2.xpose.msra.mxu0 0.0
    %3445 = vmatprep.subr.mxu0 0.0
    %3446 = vmatpush2.xpose.msra.mxu0 0.0
    %3447 = vmatprep.subr.mxu0 0.0
    %3448 = vmatpush2.xpose.msra.mxu0 0.0
    %3449 = vmatprep.subr.mxu0 0.0
    %3450 = vmatpush2.xpose.msra.mxu0 0.0
    %3451 = vmatprep.subr.mxu0 0.0
    %3452 = vmatpush2.xpose.msra.mxu0 0.0
    %3453 = vmatprep.mubr.f32.mxu0 0.0
    %3454 = vmatmul.mubr.f32.gmra.mxu0 %v3385
    %v3455 = vpop.f32.mrf.mxu0
    %v3456 = vadd.f32 0.0, %v3455
    %v3457 = vpop.f32.mrf.mxu0
    %3458 = vdwg.mxu0
    %v3459 = vmul.f32 %v3456, 0.17677669
    %v3460 = vadd.f32 %v3459, %v172
    %v3461 = vsel %vm307, %v3460, -inf
    %3462 = vmax.xlane.f32.xlu0 %v3461
    %v3463 = vpop.xlane.xlu0 %3462
    %v3464 = vsub.f32 %v3460, %v3463
    %v3465 = vmul.f32 %v3464, 1.442695
    %v3466 = vpow.pop %v3465
    %v3467 = vsel %vm307, %v3466, 0.0
    %3468 = vadd.xlane.f32.xlu0 %v3467
    %v3469 = vpop.xlane.xlu0 %3468
    %v3470 = vrcp.pop %v3469
    %v3471 = vmul.f32 %v3469, %v3470
    %v3472 = vsub.f32 2.0, %v3471
    %v3473 = vmul.f32 %v3470, %v3472
    %v3474 = vmul.f32 %v3466, %v3473
    %3475 = vrot.lane.b32.xlu0 %v2163, 40
    %v3476 = vpop.permute.xlu0 %3475
    %v3479 = vsel %vm307, %v3474, 0
    %3481 = vmatprep.subr.mxu0 0.0
    %3482 = vmatpush1.msra.mxu0 0.0
    %3483 = vmatprep.subr.mxu0 0.0
    %3484 = vmatpush1.msra.mxu0 0.0
    %3485 = vmatprep.subr.mxu0 0.0
    %3486 = vmatpush1.msra.mxu0 0.0
    %3487 = vmatprep.subr.mxu0 0.0
    %3488 = vmatpush1.msra.mxu0 0.0
    %3489 = vmatprep.subr.mxu0 0.0
    %3490 = vmatpush1.msra.mxu0 0.0
    %3491 = vmatprep.subr.mxu0 0.0
    %3492 = vmatpush1.msra.mxu0 0.0
    %3493 = vmatprep.subr.mxu0 0.0
    %3494 = vmatpush1.msra.mxu0 0.0
    %3495 = vmatprep.subr.mxu0 0.0
    %3496 = vmatpush1.msra.mxu0 0.0
    %3497 = vmatprep.subr.mxu0 0.0
    %3498 = vmatpush1.msra.mxu0 0.0
    %3499 = vmatprep.subr.mxu0 0.0
    %3500 = vmatpush1.msra.mxu0 0.0
    %3501 = vmatprep.subr.mxu0 0.0
    %3502 = vmatpush1.msra.mxu0 0.0
    %3503 = vmatprep.subr.mxu0 0.0
    %3504 = vmatpush1.msra.mxu0 0.0
    %3505 = vmatprep.subr.mxu0 0.0
    %3506 = vmatpush1.msra.mxu0 0.0
    %3507 = vmatprep.subr.mxu0 0.0
    %3508 = vmatpush1.msra.mxu0 0.0
    %3509 = vmatprep.subr.mxu0 0.0
    %3510 = vmatpush1.msra.mxu0 0.0
    %3511 = vmatprep.subr.mxu0 0.0
    %3512 = vmatpush1.msra.mxu0 %v3476
    %3513 = vmatprep.subr.mxu0 0.0
    %3514 = vmatpush2.msra.mxu0 0.0
    %3515 = vmatprep.subr.mxu0 0.0
    %3516 = vmatpush2.msra.mxu0 0.0
    %3517 = vmatprep.subr.mxu0 0.0
    %3518 = vmatpush2.msra.mxu0 0.0
    %3519 = vmatprep.subr.mxu0 0.0
    %3520 = vmatpush2.msra.mxu0 0.0
    %3521 = vmatprep.subr.mxu0 0.0
    %3522 = vmatpush2.msra.mxu0 0.0
    %3523 = vmatprep.subr.mxu0 0.0
    %3524 = vmatpush2.msra.mxu0 0.0
    %3525 = vmatprep.subr.mxu0 0.0
    %3526 = vmatpush2.msra.mxu0 0.0
    %3527 = vmatprep.subr.mxu0 0.0
    %3528 = vmatpush2.msra.mxu0 0.0
    %3529 = vmatprep.subr.mxu0 0.0
    %3530 = vmatpush2.msra.mxu0 0.0
    %3531 = vmatprep.subr.mxu0 0.0
    %3532 = vmatpush2.msra.mxu0 0.0
    %3533 = vmatprep.subr.mxu0 0.0
    %3534 = vmatpush2.msra.mxu0 0.0
    %3535 = vmatprep.subr.mxu0 0.0
    %3536 = vmatpush2.msra.mxu0 0.0
    %3537 = vmatprep.subr.mxu0 0.0
    %3538 = vmatpush2.msra.mxu0 0.0
    %3539 = vmatprep.subr.mxu0 0.0
    %3540 = vmatpush2.msra.mxu0 0.0
    %3541 = vmatprep.subr.mxu0 0.0
    %3542 = vmatpush2.msra.mxu0 0.0
    %3543 = vmatprep.subr.mxu0 0.0
    %3544 = vmatpush2.msra.mxu0 0.0
    %3545 = vmatprep.mubr.f32.mxu0 0.0
    %3546 = vmatmul.mubr.f32.gmra.mxu0 %v3479
    %v3547 = vpop.f32.mrf.mxu0
    %v3548 = vadd.f32 0.0, %v3547
    %v3549 = vpop.f32.mrf.mxu0
    %3550 = vdwg.mxu0
    %3552 = vrot.lane.b32.xlu0 %v3548, 24
    %v3553 = vpop.permute.xlu0 %3552
    %3555 = vst.msk [vmem:[#allocation2 + $0x8] sm:$0xff] %vm1001, %v3553
    %v3556 = vld [vmem:[#allocation2] sm:$0xff]
    %v3557 = vld [vmem:[#allocation2 + $0x8] sm:$0xff]
    %s3558 = scalar_lea.vmem %s6, 32
    %v3559 = vld [vmem:[%s3558] sm:$0xff]
    %v3560 = vld [vmem:[%s3558 + $0x8] sm:$0xff]
    %v3561 = vld [vmem:[%s3558 + $0x10] sm:$0xff]
    %v3562 = vld [vmem:[%s3558 + $0x18] sm:$0xff]
    %s3563 = scalar_lea.vmem %s7, 1
    %v3564 = vld [vmem:[%s3563] sm:$0x1]
    %v3566 = vlaneseq
    %v3567 = vshrl.u32 %v3566, 7
    %v3568 = vsub.s32 0, %v3567
    %v3569 = vrot.slane %v3564, %v3568
    %v3572 = vsel %vm175, %v3556, 0
    %v3575 = vsel %vm175, %v3557, 0
    %3577 = vmatprep.subr.mxu0 0.0
    %3578 = vmatpush1.msra.mxu0 0.0
    %3579 = vmatprep.subr.mxu0 0.0
    %3580 = vmatpush1.msra.mxu0 0.0
    %3581 = vmatprep.subr.mxu0 0.0
    %3582 = vmatpush1.msra.mxu0 0.0
    %3583 = vmatprep.subr.mxu0 0.0
    %3584 = vmatpush1.msra.mxu0 0.0
    %3585 = vmatprep.subr.mxu0 0.0
    %3586 = vmatpush1.msra.mxu0 0.0
    %3587 = vmatprep.subr.mxu0 0.0
    %3588 = vmatpush1.msra.mxu0 0.0
    %3589 = vmatprep.subr.mxu0 0.0
    %3590 = vmatpush1.msra.mxu0 0.0
    %3591 = vmatprep.subr.mxu0 0.0
    %3592 = vmatpush1.msra.mxu0 0.0
    %3593 = vmatprep.subr.mxu0 0.0
    %3594 = vmatpush1.msra.mxu0 0.0
    %3595 = vmatprep.subr.mxu0 0.0
    %3596 = vmatpush1.msra.mxu0 0.0
    %3597 = vmatprep.subr.mxu0 0.0
    %3598 = vmatpush1.msra.mxu0 0.0
    %3599 = vmatprep.subr.mxu0 0.0
    %3600 = vmatpush1.msra.mxu0 0.0
    %3601 = vmatprep.subr.mxu0 0.0
    %3602 = vmatpush1.msra.mxu0 %v3562
    %3603 = vmatprep.subr.mxu0 0.0
    %3604 = vmatpush1.msra.mxu0 %v3561
    %3605 = vmatprep.subr.mxu0 0.0
    %3606 = vmatpush1.msra.mxu0 %v3560
    %3607 = vmatprep.subr.mxu0 0.0
    %3608 = vmatpush1.msra.mxu0 %v3559
    %3609 = vmatprep.subr.mxu0 0.0
    %3610 = vmatpush2.msra.mxu0 0.0
    %3611 = vmatprep.subr.mxu0 0.0
    %3612 = vmatpush2.msra.mxu0 0.0
    %3613 = vmatprep.subr.mxu0 0.0
    %3614 = vmatpush2.msra.mxu0 0.0
    %3615 = vmatprep.subr.mxu0 0.0
    %3616 = vmatpush2.msra.mxu0 0.0
    %3617 = vmatprep.subr.mxu0 0.0
    %3618 = vmatpush2.msra.mxu0 0.0
    %3619 = vmatprep.subr.mxu0 0.0
    %3620 = vmatpush2.msra.mxu0 0.0
    %3621 = vmatprep.subr.mxu0 0.0
    %3622 = vmatpush2.msra.mxu0 0.0
    %3623 = vmatprep.subr.mxu0 0.0
    %3624 = vmatpush2.msra.mxu0 0.0
    %3625 = vmatprep.subr.mxu0 0.0
    %3626 = vmatpush2.msra.mxu0 0.0
    %3627 = vmatprep.subr.mxu0 0.0
    %3628 = vmatpush2.msra.mxu0 0.0
    %3629 = vmatprep.subr.mxu0 0.0
    %3630 = vmatpush2.msra.mxu0 0.0
    %3631 = vmatprep.subr.mxu0 0.0
    %3632 = vmatpush2.msra.mxu0 0.0
    %3633 = vmatprep.subr.mxu0 0.0
    %3634 = vmatpush2.msra.mxu0 0.0
    %3635 = vmatprep.subr.mxu0 0.0
    %3636 = vmatpush2.msra.mxu0 0.0
    %3637 = vmatprep.subr.mxu0 0.0
    %3638 = vmatpush2.msra.mxu0 0.0
    %3639 = vmatprep.subr.mxu0 0.0
    %3640 = vmatpush2.msra.mxu0 0.0
    %3641 = vmatprep.mubr.f32.mxu0 0.0
    %3642 = vmatmul.mubr.f32.gmra.mxu0 %v3572
    %v3643 = vpop.f32.mrf.mxu0
    %v3644 = vadd.f32 %v3569, %v3643
    %v3645 = vpop.f32.mrf.mxu0
    %3646 = vmatprep.mubr.f32.mxu0 0.0
    %3647 = vmatmul.mubr.f32.gmra.mxu0 %v3575
    %v3648 = vpop.f32.mrf.mxu0
    %v3649 = vadd.f32 %v3569, %v3648
    %v3650 = vpop.f32.mrf.mxu0
    %3651 = vdwg.mxu0
    %v3652 = vadd.f32 %v2032, %v3644
    %v3653 = vadd.f32 %v2033, %v3649
    %s3654 = scalar_lea.vmem %s8, 1
    %v3655 = vld [vmem:[%s3654] sm:$0x1]
    %s3656 = scalar_lea.vmem %s9, 1
    %v3657 = vld [vmem:[%s3656] sm:$0x1]
    %v3658 = vsel %vm175, %v3652, 0.0
    %3659 = vadd.xlane.f32.xlu0 %v3658
    %v3660 = vpop.xlane.xlu0 %3659
    %v3661 = vsel %vm175, %v3653, 0.0
    %3662 = vadd.xlane.f32.xlu0 %v3661
    %v3663 = vpop.xlane.xlu0 %3662
    %v3664 = vmul.f32 %v3660, %v182
    %v3665 = vmul.f32 %v3663, %v182
    %v3666 = vsub.f32 %v3652, %v3664
    %v3667 = vsub.f32 %v3653, %v3665
    %v3668 = vmul.f32 %v3666, %v3666
    %v3669 = vmul.f32 %v3667, %v3667
    %v3670 = vsel %vm175, %v3668, 0.0
    %3671 = vadd.xlane.f32.xlu0 %v3670
    %v3672 = vpop.xlane.xlu0 %3671
    %v3673 = vsel %vm175, %v3669, 0.0
    %3674 = vadd.xlane.f32.xlu0 %v3673
    %v3675 = vpop.xlane.xlu0 %3674
    %v3676 = vmul.f32 %v3672, %v182
    %v3677 = vmul.f32 %v3675, %v182
    %v3678 = vadd.f32 %v3676, 1e-05
    %v3679 = vadd.f32 %v3677, 1e-05
    %v3680 = vrsqrt.pop %v3678
    %v3681 = vrsqrt.pop %v3679
    %v3682 = vmul.f32 %v3666, %v3680
    %v3683 = vmul.f32 %v3667, %v3681
    %v3685 = vlaneseq
    %v3686 = vshrl.u32 %v3685, 7
    %v3687 = vsub.s32 0, %v3686
    %v3688 = vrot.slane %v3655, %v3687
    %v3690 = vmul.f32 %v3682, %v3688
    %v3691 = vmul.f32 %v3683, %v3688
    %v3693 = vlaneseq
    %v3694 = vshrl.u32 %v3693, 7
    %v3695 = vsub.s32 0, %v3694
    %v3696 = vrot.slane %v3657, %v3695
    %v3698 = vadd.f32 %v3690, %v3696
    %v3699 = vadd.f32 %v3691, %v3696
    %s3700 = scalar_lea.vmem %s10, 32
    %v3701 = vld [vmem:[%s3700] sm:$0xff]
    %v3702 = vld [vmem:[%s3700 + $0x8] sm:$0xff]
    %v3703 = vld [vmem:[%s3700 + $0x10] sm:$0xff]
    %v3704 = vld [vmem:[%s3700 + $0x18] sm:$0xff]
    %s3705 = scalar_lea.vmem %s11, 1
    %v3706 = vld [vmem:[%s3705] sm:$0x1]
    %v3708 = vlaneseq
    %v3709 = vshrl.u32 %v3708, 7
    %v3710 = vsub.s32 0, %v3709
    %v3711 = vrot.slane %v3706, %v3710
    %v3714 = vsel %vm175, %v3698, 0
    %v3717 = vsel %vm175, %v3699, 0
    %3719 = vmatprep.subr.mxu0 0.0
    %3720 = vmatpush1.msra.mxu0 0.0
    %3721 = vmatprep.subr.mxu0 0.0
    %3722 = vmatpush1.msra.mxu0 0.0
    %3723 = vmatprep.subr.mxu0 0.0
    %3724 = vmatpush1.msra.mxu0 0.0
    %3725 = vmatprep.subr.mxu0 0.0
    %3726 = vmatpush1.msra.mxu0 0.0
    %3727 = vmatprep.subr.mxu0 0.0
    %3728 = vmatpush1.msra.mxu0 0.0
    %3729 = vmatprep.subr.mxu0 0.0
    %3730 = vmatpush1.msra.mxu0 0.0
    %3731 = vmatprep.subr.mxu0 0.0
    %3732 = vmatpush1.msra.mxu0 0.0
    %3733 = vmatprep.subr.mxu0 0.0
    %3734 = vmatpush1.msra.mxu0 0.0
    %3735 = vmatprep.subr.mxu0 0.0
    %3736 = vmatpush1.msra.mxu0 0.0
    %3737 = vmatprep.subr.mxu0 0.0
    %3738 = vmatpush1.msra.mxu0 0.0
    %3739 = vmatprep.subr.mxu0 0.0
    %3740 = vmatpush1.msra.mxu0 0.0
    %3741 = vmatprep.subr.mxu0 0.0
    %3742 = vmatpush1.msra.mxu0 0.0
    %3743 = vmatprep.subr.mxu0 0.0
    %3744 = vmatpush1.msra.mxu0 %v3704
    %3745 = vmatprep.subr.mxu0 0.0
    %3746 = vmatpush1.msra.mxu0 %v3703
    %3747 = vmatprep.subr.mxu0 0.0
    %3748 = vmatpush1.msra.mxu0 %v3702
    %3749 = vmatprep.subr.mxu0 0.0
    %3750 = vmatpush1.msra.mxu0 %v3701
    %3751 = vmatprep.subr.mxu0 0.0
    %3752 = vmatpush2.msra.mxu0 0.0
    %3753 = vmatprep.subr.mxu0 0.0
    %3754 = vmatpush2.msra.mxu0 0.0
    %3755 = vmatprep.subr.mxu0 0.0
    %3756 = vmatpush2.msra.mxu0 0.0
    %3757 = vmatprep.subr.mxu0 0.0
    %3758 = vmatpush2.msra.mxu0 0.0
    %3759 = vmatprep.subr.mxu0 0.0
    %3760 = vmatpush2.msra.mxu0 0.0
    %3761 = vmatprep.subr.mxu0 0.0
    %3762 = vmatpush2.msra.mxu0 0.0
    %3763 = vmatprep.subr.mxu0 0.0
    %3764 = vmatpush2.msra.mxu0 0.0
    %3765 = vmatprep.subr.mxu0 0.0
    %3766 = vmatpush2.msra.mxu0 0.0
    %3767 = vmatprep.subr.mxu0 0.0
    %3768 = vmatpush2.msra.mxu0 0.0
    %3769 = vmatprep.subr.mxu0 0.0
    %3770 = vmatpush2.msra.mxu0 0.0
    %3771 = vmatprep.subr.mxu0 0.0
    %3772 = vmatpush2.msra.mxu0 0.0
    %3773 = vmatprep.subr.mxu0 0.0
    %3774 = vmatpush2.msra.mxu0 0.0
    %3775 = vmatprep.subr.mxu0 0.0
    %3776 = vmatpush2.msra.mxu0 0.0
    %3777 = vmatprep.subr.mxu0 0.0
    %3778 = vmatpush2.msra.mxu0 0.0
    %3779 = vmatprep.subr.mxu0 0.0
    %3780 = vmatpush2.msra.mxu0 0.0
    %3781 = vmatprep.subr.mxu0 0.0
    %3782 = vmatpush2.msra.mxu0 0.0
    %3783 = vmatprep.mubr.f32.mxu0 0.0
    %3784 = vmatmul.mubr.f32.gmra.mxu0 %v3714
    %v3785 = vpop.f32.mrf.mxu0
    %v3786 = vadd.f32 %v3711, %v3785
    %v3787 = vpop.f32.mrf.mxu0
    %3788 = vmatprep.mubr.f32.mxu0 0.0
    %3789 = vmatmul.mubr.f32.gmra.mxu0 %v3717
    %v3790 = vpop.f32.mrf.mxu0
    %v3791 = vadd.f32 %v3711, %v3790
    %v3792 = vpop.f32.mrf.mxu0
    %3793 = vdwg.mxu0
    %v3794 = vmax.f32 %v3786, 0.0
    %v3795 = vmax.f32 %v3791, 0.0
    %s3796 = scalar_lea.vmem %s12, 128
    %v3797 = vld [vmem:[%s3796] sm:$0xff]
    %v3798 = vld [vmem:[%s3796 + $0x8] sm:$0xff]
    %v3799 = vld [vmem:[%s3796 + $0x10] sm:$0xff]
    %v3800 = vld [vmem:[%s3796 + $0x18] sm:$0xff]
    %v3801 = vld [vmem:[%s3796 + $0x20] sm:$0xff]
    %v3802 = vld [vmem:[%s3796 + $0x28] sm:$0xff]
    %v3803 = vld [vmem:[%s3796 + $0x30] sm:$0xff]
    %v3804 = vld [vmem:[%s3796 + $0x38] sm:$0xff]
    %v3805 = vld [vmem:[%s3796 + $0x40] sm:$0xff]
    %v3806 = vld [vmem:[%s3796 + $0x48] sm:$0xff]
    %v3807 = vld [vmem:[%s3796 + $0x50] sm:$0xff]
    %v3808 = vld [vmem:[%s3796 + $0x58] sm:$0xff]
    %v3809 = vld [vmem:[%s3796 + $0x60] sm:$0xff]
    %v3810 = vld [vmem:[%s3796 + $0x68] sm:$0xff]
    %v3811 = vld [vmem:[%s3796 + $0x70] sm:$0xff]
    %v3812 = vld [vmem:[%s3796 + $0x78] sm:$0xff]
    %3813 = vmatprep.subr.mxu0 0.0
    %3814 = vmatpush1.msra.mxu0 %v3812
    %3815 = vmatprep.subr.mxu0 0.0
    %3816 = vmatpush1.msra.mxu0 %v3811
    %3817 = vmatprep.subr.mxu0 0.0
    %3818 = vmatpush1.msra.mxu0 %v3810
    %3819 = vmatprep.subr.mxu0 0.0
    %3820 = vmatpush1.msra.mxu0 %v3809
    %3821 = vmatprep.subr.mxu0 0.0
    %3822 = vmatpush1.msra.mxu0 %v3808
    %3823 = vmatprep.subr.mxu0 0.0
    %3824 = vmatpush1.msra.mxu0 %v3807
    %3825 = vmatprep.subr.mxu0 0.0
    %3826 = vmatpush1.msra.mxu0 %v3806
    %3827 = vmatprep.subr.mxu0 0.0
    %3828 = vmatpush1.msra.mxu0 %v3805
    %3829 = vmatprep.subr.mxu0 0.0
    %3830 = vmatpush1.msra.mxu0 %v3804
    %3831 = vmatprep.subr.mxu0 0.0
    %3832 = vmatpush1.msra.mxu0 %v3803
    %3833 = vmatprep.subr.mxu0 0.0
    %3834 = vmatpush1.msra.mxu0 %v3802
    %3835 = vmatprep.subr.mxu0 0.0
    %3836 = vmatpush1.msra.mxu0 %v3801
    %3837 = vmatprep.subr.mxu0 0.0
    %3838 = vmatpush1.msra.mxu0 %v3800
    %3839 = vmatprep.subr.mxu0 0.0
    %3840 = vmatpush1.msra.mxu0 %v3799
    %3841 = vmatprep.subr.mxu0 0.0
    %3842 = vmatpush1.msra.mxu0 %v3798
    %3843 = vmatprep.subr.mxu0 0.0
    %3844 = vmatpush1.msra.mxu0 %v3797
    %3845 = vmatprep.subr.mxu0 0.0
    %3846 = vmatpush2.msra.mxu0 0.0
    %3847 = vmatprep.subr.mxu0 0.0
    %3848 = vmatpush2.msra.mxu0 0.0
    %3849 = vmatprep.subr.mxu0 0.0
    %3850 = vmatpush2.msra.mxu0 0.0
    %3851 = vmatprep.subr.mxu0 0.0
    %3852 = vmatpush2.msra.mxu0 0.0
    %3853 = vmatprep.subr.mxu0 0.0
    %3854 = vmatpush2.msra.mxu0 0.0
    %3855 = vmatprep.subr.mxu0 0.0
    %3856 = vmatpush2.msra.mxu0 0.0
    %3857 = vmatprep.subr.mxu0 0.0
    %3858 = vmatpush2.msra.mxu0 0.0
    %3859 = vmatprep.subr.mxu0 0.0
    %3860 = vmatpush2.msra.mxu0 0.0
    %3861 = vmatprep.subr.mxu0 0.0
    %3862 = vmatpush2.msra.mxu0 0.0
    %3863 = vmatprep.subr.mxu0 0.0
    %3864 = vmatpush2.msra.mxu0 0.0
    %3865 = vmatprep.subr.mxu0 0.0
    %3866 = vmatpush2.msra.mxu0 0.0
    %3867 = vmatprep.subr.mxu0 0.0
    %3868 = vmatpush2.msra.mxu0 0.0
    %3869 = vmatprep.subr.mxu0 0.0
    %3870 = vmatpush2.msra.mxu0 0.0
    %3871 = vmatprep.subr.mxu0 0.0
    %3872 = vmatpush2.msra.mxu0 0.0
    %3873 = vmatprep.subr.mxu0 0.0
    %3874 = vmatpush2.msra.mxu0 0.0
    %3875 = vmatprep.subr.mxu0 0.0
    %3876 = vmatpush2.msra.mxu0 0.0
    %3877 = vmatprep.mubr.f32.mxu0 0.0
    %3878 = vmatmul.mubr.f32.gmra.mxu0 %v3794
    %v3879 = vpop.f32.mrf.mxu0
    %v3880 = vadd.f32 0.0, %v3879
    %v3881 = vpop.f32.mrf.mxu0
    %3882 = vmatprep.mubr.f32.mxu0 0.0
    %3883 = vmatmul.mubr.f32.gmra.mxu0 %v3795
    %v3884 = vpop.f32.mrf.mxu0
    %v3885 = vadd.f32 0.0, %v3884
    %v3886 = vpop.f32.mrf.mxu0
    %3887 = vdwg.mxu0
    %v3888 = vadd.f32 %v3652, %v3880
    %v3889 = vadd.f32 %v3653, %v3885
    %s3890 = scalar_lea.vmem %s13, 1
    %v3891 = vld [vmem:[%s3890] sm:$0x1]
    %v3893 = vlaneseq
    %v3894 = vshrl.u32 %v3893, 7
    %v3895 = vsub.s32 0, %v3894
    %v3896 = vrot.slane %v3891, %v3895
    %v3898 = vadd.f32 %v3888, %v3896
    %v3899 = vadd.f32 %v3889, %v3896
    %v3900 = vld [vmem:[%s14] sm:$0x1]
    %v3901 = vld [vmem:[%s15] sm:$0x1]
    %v3902 = vsel %vm175, %v3898, 0.0
    %3903 = vadd.xlane.f32.xlu0 %v3902
    %v3904 = vpop.xlane.xlu0 %3903
    %v3905 = vsel %vm175, %v3899, 0.0
    %3906 = vadd.xlane.f32.xlu0 %v3905
    %v3907 = vpop.xlane.xlu0 %3906
    %v3908 = vmul.f32 %v3904, %v182
    %v3909 = vmul.f32 %v3907, %v182
    %v3910 = vsub.f32 %v3898, %v3908
    %v3911 = vsub.f32 %v3899, %v3909
    %v3912 = vmul.f32 %v3910, %v3910
    %v3913 = vmul.f32 %v3911, %v3911
    %v3914 = vsel %vm175, %v3912, 0.0
    %3915 = vadd.xlane.f32.xlu0 %v3914
    %v3916 = vpop.xlane.xlu0 %3915
    %v3917 = vsel %vm175, %v3913, 0.0
    %3918 = vadd.xlane.f32.xlu0 %v3917
    %v3919 = vpop.xlane.xlu0 %3918
    %v3920 = vmul.f32 %v3916, %v182
    %v3921 = vmul.f32 %v3919, %v182
    %v3922 = vadd.f32 %v3920, 1e-05
    %v3923 = vadd.f32 %v3921, 1e-05
    %v3924 = vrsqrt.pop %v3922
    %v3925 = vrsqrt.pop %v3923
    %v3926 = vmul.f32 %v3910, %v3924
    %v3927 = vmul.f32 %v3911, %v3925
    %v3929 = vlaneseq
    %v3930 = vshrl.u32 %v3929, 7
    %v3931 = vsub.s32 0, %v3930
    %v3932 = vrot.slane %v3900, %v3931
    %v3934 = vmul.f32 %v3926, %v3932
    %v3935 = vmul.f32 %v3927, %v3932
    %v3937 = vlaneseq
    %v3938 = vshrl.u32 %v3937, 7
    %v3939 = vsub.s32 0, %v3938
    %v3940 = vrot.slane %v3901, %v3939
    %v3942 = vadd.f32 %v3934, %v3940
    %v3943 = vadd.f32 %v3935, %v3940
    %v3944 = vld [vmem:[%s16] sm:$0xff]
    %v3945 = vld [vmem:[%s16 + $0x8] sm:$0xff]
    %v3946 = vld [vmem:[%s16 + $0x10] sm:$0xff]
    %v3947 = vld [vmem:[%s16 + $0x18] sm:$0xff]
    %v3948 = vld [vmem:[%s17] sm:$0x1]
    %v3950 = vlaneseq
    %v3951 = vshrl.u32 %v3950, 7
    %v3952 = vsub.s32 0, %v3951
    %v3953 = vrot.slane %v3948, %v3952
    %v3956 = vsel %vm175, %v3942, 0
    %v3959 = vsel %vm175, %v3943, 0
    %3961 = vmatprep.subr.mxu0 0.0
    %3962 = vmatpush1.msra.mxu0 0.0
    %3963 = vmatprep.subr.mxu0 0.0
    %3964 = vmatpush1.msra.mxu0 0.0
    %3965 = vmatprep.subr.mxu0 0.0
    %3966 = vmatpush1.msra.mxu0 0.0
    %3967 = vmatprep.subr.mxu0 0.0
    %3968 = vmatpush1.msra.mxu0 0.0
    %3969 = vmatprep.subr.mxu0 0.0
    %3970 = vmatpush1.msra.mxu0 0.0
    %3971 = vmatprep.subr.mxu0 0.0
    %3972 = vmatpush1.msra.mxu0 0.0
    %3973 = vmatprep.subr.mxu0 0.0
    %3974 = vmatpush1.msra.mxu0 0.0
    %3975 = vmatprep.subr.mxu0 0.0
    %3976 = vmatpush1.msra.mxu0 0.0
    %3977 = vmatprep.subr.mxu0 0.0
    %3978 = vmatpush1.msra.mxu0 0.0
    %3979 = vmatprep.subr.mxu0 0.0
    %3980 = vmatpush1.msra.mxu0 0.0
    %3981 = vmatprep.subr.mxu0 0.0
    %3982 = vmatpush1.msra.mxu0 0.0
    %3983 = vmatprep.subr.mxu0 0.0
    %3984 = vmatpush1.msra.mxu0 0.0
    %3985 = vmatprep.subr.mxu0 0.0
    %3986 = vmatpush1.msra.mxu0 %v3947
    %3987 = vmatprep.subr.mxu0 0.0
    %3988 = vmatpush1.msra.mxu0 %v3946
    %3989 = vmatprep.subr.mxu0 0.0
    %3990 = vmatpush1.msra.mxu0 %v3945
    %3991 = vmatprep.subr.mxu0 0.0
    %3992 = vmatpush1.msra.mxu0 %v3944
    %3993 = vmatprep.subr.mxu0 0.0
    %3994 = vmatpush2.msra.mxu0 0.0
    %3995 = vmatprep.subr.mxu0 0.0
    %3996 = vmatpush2.msra.mxu0 0.0
    %3997 = vmatprep.subr.mxu0 0.0
    %3998 = vmatpush2.msra.mxu0 0.0
    %3999 = vmatprep.subr.mxu0 0.0
    %4000 = vmatpush2.msra.mxu0 0.0
    %4001 = vmatprep.subr.mxu0 0.0
    %4002 = vmatpush2.msra.mxu0 0.0
    %4003 = vmatprep.subr.mxu0 0.0
    %4004 = vmatpush2.msra.mxu0 0.0
    %4005 = vmatprep.subr.mxu0 0.0
    %4006 = vmatpush2.msra.mxu0 0.0
    %4007 = vmatprep.subr.mxu0 0.0
    %4008 = vmatpush2.msra.mxu0 0.0
    %4009 = vmatprep.subr.mxu0 0.0
    %4010 = vmatpush2.msra.mxu0 0.0
    %4011 = vmatprep.subr.mxu0 0.0
    %4012 = vmatpush2.msra.mxu0 0.0
    %4013 = vmatprep.subr.mxu0 0.0
    %4014 = vmatpush2.msra.mxu0 0.0
    %4015 = vmatprep.subr.mxu0 0.0
    %4016 = vmatpush2.msra.mxu0 0.0
    %4017 = vmatprep.subr.mxu0 0.0
    %4018 = vmatpush2.msra.mxu0 0.0
    %4019 = vmatprep.subr.mxu0 0.0
    %4020 = vmatpush2.msra.mxu0 0.0
    %4021 = vmatprep.subr.mxu0 0.0
    %4022 = vmatpush2.msra.mxu0 0.0
    %4023 = vmatprep.subr.mxu0 0.0
    %4024 = vmatpush2.msra.mxu0 0.0
    %4025 = vmatprep.mubr.f32.mxu0 0.0
    %4026 = vmatmul.mubr.f32.gmra.mxu0 %v3956
    %v4027 = vpop.f32.mrf.mxu0
    %v4028 = vadd.f32 %v3953, %v4027
    %v4029 = vpop.f32.mrf.mxu0
    %4030 = vmatprep.mubr.f32.mxu0 0.0
    %4031 = vmatmul.mubr.f32.gmra.mxu0 %v3959
    %v4032 = vpop.f32.mrf.mxu0
    %v4033 = vadd.f32 %v3953, %v4032
    %v4034 = vpop.f32.mrf.mxu0
    %4035 = vdwg.mxu0
    %4036 = vst [vmem:[#allocation3] sm:$0xff] %v4028
    %4037 = vst [vmem:[#allocation3 + $0x8] sm:$0xff] %v4033
    // Predicated region
    $region74: #{_forward_logits.1} parent=1 // pred_check
      _
    $region75: #{_forward_logits.1} parent=1 // pred_check_branch
      %4039 = sbr.rel (0) target = $region77
    $region76: #{_forward_logits.1} parent=1 // pred_region
      %s4041 = ssub.s32 256, 256
      %4042 = vsyncadd [#allocation4], %s4041
      %s4043 = sshll.u32 [#allocation3], 4
      %s4044 = int_to_ptr.vmem [resolvable:$true] %s4043
      %4049 = dma.vmem_to_hbm [thread:$0]  %s4044, 256, %s18, [#allocation4], 128, 128, 8
    $region77: #{_forward_logits.1} parent=1 // pred_fallthru
      _
    // Predicated region
    $region78: #{_forward_logits.1} parent=1 // pred_check
      _
    $region79: #{_forward_logits.1} parent=1 // pred_check_branch
      %4051 = sbr.rel (0) target = $region81
    $region80: #{_forward_logits.1} parent=1 // pred_region
      %4052 = dma.done [#allocation4], 256
    $region81: #{_forward_logits.1} parent=1 // pred_fallthru
      _
    %4053 = vsyncpa [#allocation4], 1

</llo_original>
